<compile_context>
chip_gen: v7x
topology: tpu7x:2x2x1
jax: 0.10.0
libtpu: 0.0.40
codegen_flags: <defaults>
</compile_context>

<pallas_src>
import functools

import jax
import jax.numpy as jnp
import numpy as np
from jax.experimental import pallas as pl
from jax.experimental.pallas import tpu as pltpu

NUM_JOINTS = 8
FEATURE_DIM = 8
ENC_DIM = NUM_JOINTS * FEATURE_DIM      # 64
HIDDEN_DIM = 512
OUTPUT_DIM = 1
INIT_S = 2.3
NEG_SLOPE = 0.01      # torch.nn.LeakyReLU default negative_slope
MAX_TILE_B = 256      # batch tile cap (v6e/v7x); use 128 on v5e


def _leaky_relu(v):
  return jnp.where(v > 0, v, NEG_SLOPE * v)


def _round_up(v, m):
  return (v + m - 1) // m * m


# ---------------------------------------------------------------------------
# Kernel: one fused encoder-affine + 4-layer MLP + scalar head per batch tile.
# ---------------------------------------------------------------------------
def hyper_kernel(x_ref, w_enc_ref, b_enc_ref,
                 w1_ref, w2_ref, w3_ref, w4_ref, w5_ref,
                 b_hid_ref, b5_ref, out_ref):
  f32 = jnp.float32
  bf16 = jnp.bfloat16

  x = x_ref[...]                                            # (TB, 8) f32

  # Pre-composed HyperEnbedding encoder: single affine map (exactly equal to
  # cat([j0, j1, j2, j3, flatten], -1) of the torch module).
  feat = jnp.dot(x, w_enc_ref[...], preferred_element_type=f32) + b_enc_ref[...]

  bh = b_hid_ref[...]                                       # (4, H) f32

  # MLP: bf16 weights + bf16 LHS on the MXU, f32 accumulation.  LeakyReLU and
  # bias adds stay in f32 (portable to v5e; on v6e/v7x a bf16 epilogue is a
  # further option once tile_b grows large).
  h = jnp.dot(_leaky_relu(feat).astype(bf16), w1_ref[...],
              preferred_element_type=f32) + bh[0:1, :]
  h = jnp.dot(_leaky_relu(h).astype(bf16), w2_ref[...],
              preferred_element_type=f32) + bh[1:2, :]
  h = jnp.dot(_leaky_relu(h).astype(bf16), w3_ref[...],
              preferred_element_type=f32) + bh[2:3, :]
  h = jnp.dot(_leaky_relu(h).astype(bf16), w4_ref[...],
              preferred_element_type=f32) + bh[3:4, :]

  # Final Linear(HIDDEN, 1): VPU multiply + lane reduction instead of a
  # 1-output-column MXU pass.
  out = jnp.sum(_leaky_relu(h) * w5_ref[...], axis=-1, keepdims=True) + b5_ref[...]
  out_ref[...] = out.astype(out_ref.dtype)


# ---------------------------------------------------------------------------
# One-time (host-side) parameter preparation.  Runs OUTSIDE the jitted step:
# composes the encoder into (W_enc, b_enc) in float64, casts the hidden
# weights to bf16, packs the biases.  None of this HBM traffic recurs per call.
# ---------------------------------------------------------------------------
def prepare_params(p):
  f32, bf16 = jnp.float32, jnp.bfloat16
  F = FEATURE_DIM

  # --- compose the HyperEnbedding into a single affine map (float64) -------
  W = np.zeros((NUM_JOINTS, ENC_DIM), np.float64)
  b = np.zeros((1, ENC_DIM), np.float64)

  # j0 = x[:, 0:1] @ wj0 + bj0
  W[0, 0:F] = np.asarray(p["wj0"], np.float64)[0]
  b[0, 0:F] = np.asarray(p["bj0"], np.float64)[0]

  # j_i = j_{i-1} @ wj_i_f + x[:, i:i+1] * wj_i_x + bj_i   (i = 1, 2, 3)
  for i in range(1, 4):
    wf_ = np.asarray(p[f"wj{i}_f"], np.float64)             # (F, F)
    wx_ = np.asarray(p[f"wj{i}_x"], np.float64)             # (1, F)
    bb_ = np.asarray(p[f"bj{i}"], np.float64)               # (1, F)
    prev = slice((i - 1) * F, i * F)
    cur = slice(i * F, (i + 1) * F)
    W[:, cur] = W[:, prev] @ wf_
    W[i, cur] += wx_[0]
    b[:, cur] = b[:, prev] @ wf_ + bb_

  # flatten = x[:, 4:8] @ wf + bf
  W[4:8, 4 * F:8 * F] = np.asarray(p["wf"], np.float64)
  b[:, 4 * F:8 * F] = np.asarray(p["bf"], np.float64)

  return {
      "w_enc": jnp.asarray(W, f32),                         # (8, 64)  f32
      "b_enc": jnp.asarray(b, f32),                         # (1, 64)  f32
      "w1": p["w1"].astype(bf16),                           # (64, H)  bf16
      "w2": p["w2"].astype(bf16),                           # (H, H)   bf16
      "w3": p["w3"].astype(bf16),                           # (H, H)   bf16
      "w4": p["w4"].astype(bf16),                           # (H, H)   bf16
      "w5_row": p["w5"].astype(f32).T,                      # (1, H)   f32
      "b_hid": jnp.concatenate([p["b1"], p["b2"], p["b3"], p["b4"]],
                               axis=0).astype(f32),         # (4, H)   f32
      "b5": p["b5"].astype(f32),                            # (1, 1)   f32
      "s": p["s"].astype(f32),
  }


@functools.partial(jax.jit, static_argnames=("max_tile_b",))
def hyper_network_forward(x, prep, max_tile_b=MAX_TILE_B):
  B, nj = x.shape
  assert nj == NUM_JOINTS

  # Batch tiling: pad B to a sublane multiple; small batches run in a single
  # grid step so the weights are DMA'd exactly once; large batches use
  # max_tile_b-row tiles on a "parallel" grid (megacore sharding on v7x).
  b8 = _round_up(B, 8)
  tile_b = b8 if b8 <= max_tile_b else max_tile_b
  b_pad = _round_up(B, tile_b)
  x_in = x.astype(jnp.float32)
  if b_pad != B:
    x_in = jnp.pad(x_in, ((0, b_pad - B), (0, 0)))

  weights = [prep["w_enc"], prep["b_enc"], prep["w1"], prep["w2"], prep["w3"],
             prep["w4"], prep["w5_row"], prep["b_hid"], prep["b5"]]

  in_specs = [pl.BlockSpec((tile_b, NUM_JOINTS), lambda i: (i, 0))]
  for w in weights:
    # Constant index_map -> weights stay VMEM-resident across grid steps.
    # (v7x option: pipeline_mode=pl.Buffered(1) to single-buffer them.)
    in_specs.append(pl.BlockSpec(tuple(w.shape), lambda i: (0, 0)))
  out_spec = pl.BlockSpec((tile_b, OUTPUT_DIM), lambda i: (i, 0))

  mlp_out = pl.pallas_call(
      hyper_kernel,
      out_shape=jax.ShapeDtypeStruct((b_pad, OUTPUT_DIM), jnp.float32),
      grid=(b_pad // tile_b,),
      in_specs=in_specs,
      out_specs=out_spec,
      compiler_params=pltpu.CompilerParams(
          dimension_semantics=("parallel",)),
  )(x_in, *weights)
  if b_pad != B:
    mlp_out = mlp_out[:B]

  # scalar parameter output: exp(s).clamp(0.001, 1000)  (parameter glue)
  s_out = jnp.clip(jnp.exp(prep["s"]), 0.001, 1000.0)
  return mlp_out, s_out


# ---------------------------------------------------------------------------
# References.
# ---------------------------------------------------------------------------
def hyper_network_reference(x, p):
  """Pure-JAX f32 reference mirroring the torch forward exactly."""
  def lrelu(v):
    return jnp.where(v > 0, v, NEG_SLOPE * v)
  j0 = x[:, 0:1] @ p["wj0"] + p["bj0"]
  wj1 = jnp.concatenate([p["wj1_f"], p["wj1_x"]], 0)
  j1 = jnp.concatenate([j0, x[:, 1:2]], -1) @ wj1 + p["bj1"]
  wj2 = jnp.concatenate([p["wj2_f"], p["wj2_x"]], 0)
  j2 = jnp.concatenate([j1, x[:, 2:3]], -1) @ wj2 + p["bj2"]
  wj3 = jnp.concatenate([p["wj3_f"], p["wj3_x"]], 0)
  j3 = jnp.concatenate([j2, x[:, 3:4]], -1) @ wj3 + p["bj3"]
  flat = x[:, 4:8] @ p["wf"] + p["bf"]
  feat = jnp.concatenate([j0, j1, j2, j3, flat], -1)
  h = lrelu(feat) @ p["w1"] + p["b1"]
  h = lrelu(h) @ p["w2"] + p["b2"]
  h = lrelu(h) @ p["w3"] + p["b3"]
  h = lrelu(h) @ p["w4"] + p["b4"]
  out = lrelu(h) @ p["w5"] + p["b5"]
  return out, jnp.clip(jnp.exp(p["s"]), 0.001, 1000.0)


def hyper_network_reference_matched(x, prep):
  """Pure-JAX reference with the SAME numerics as the kernel (pre-composed
  encoder, bf16 w1..w4 operands with f32 accumulation, VPU final layer)."""
  f32, bf16 = jnp.float32, jnp.bfloat16
  def lrelu(v):
    return jnp.where(v > 0, v, NEG_SLOPE * v)
  feat = x.astype(f32) @ prep["w_enc"] + prep["b_enc"]
  bh = prep["b_hid"]
  h = jnp.dot(lrelu(feat).astype(bf16), prep["w1"],
              preferred_element_type=f32) + bh[0:1, :]
  h = jnp.dot(lrelu(h).astype(bf16), prep["w2"],
              preferred_element_type=f32) + bh[1:2, :]
  h = jnp.dot(lrelu(h).astype(bf16), prep["w3"],
              preferred_element_type=f32) + bh[2:3, :]
  h = jnp.dot(lrelu(h).astype(bf16), prep["w4"],
              preferred_element_type=f32) + bh[3:4, :]
  return jnp.sum(lrelu(h) * prep["w5_row"], axis=-1, keepdims=True) + prep["b5"]


def init_params(key):
  """Deterministic synthetic parameters (torch.nn.Linear-style uniform init)."""
  def linear(k, fan_in, fan_out):
    k1, k2 = jax.random.split(k)
    bound = 1.0 / np.sqrt(fan_in)
    w = jax.random.uniform(k1, (fan_in, fan_out), jnp.float32, -bound, bound)
    b = jax.random.uniform(k2, (1, fan_out), jnp.float32, -bound, bound)
    return w, b

  keys = jax.random.split(key, 10)
  p = {}
  p["wj0"], p["bj0"] = linear(keys[0], 1, FEATURE_DIM)
  for i, kk in zip((1, 2, 3), keys[1:4]):
    w, b = linear(kk, FEATURE_DIM + 1, FEATURE_DIM)
    p[f"wj{i}_f"], p[f"wj{i}_x"], p[f"bj{i}"] = w[:FEATURE_DIM], w[FEATURE_DIM:], b
  p["wf"], p["bf"] = linear(keys[4], 4, 4 * FEATURE_DIM)
  p["w1"], p["b1"] = linear(keys[5], NUM_JOINTS * FEATURE_DIM, HIDDEN_DIM)
  p["w2"], p["b2"] = linear(keys[6], HIDDEN_DIM, HIDDEN_DIM)
  p["w3"], p["b3"] = linear(keys[7], HIDDEN_DIM, HIDDEN_DIM)
  p["w4"], p["b4"] = linear(keys[8], HIDDEN_DIM, HIDDEN_DIM)
  p["w5"], p["b5"] = linear(keys[9], HIDDEN_DIM, OUTPUT_DIM)
  p["s"] = jnp.array([INIT_S], jnp.float32)
  return p


if __name__ == "__main__":
  key = jax.random.PRNGKey(0)
  pkey, xkey = jax.random.split(key)
  params = init_params(pkey)
  prep = prepare_params(params)          # one-time host-side prep (not per call)

  B = 16
  x = jax.random.uniform(xkey, (B, NUM_JOINTS), jnp.float32, -np.pi, np.pi)

  out, s = hyper_network_forward(x, prep)
  out = jax.block_until_ready(out)
  s = jax.block_until_ready(s)

  # Tight check vs a reference with identical numerics.
  q_out = hyper_network_reference_matched(x, prep)
  np.testing.assert_allclose(np.asarray(out), np.asarray(q_out),
                             rtol=1e-2, atol=1e-3)
  # Accuracy check vs the full-f32 torch-equivalent reference
  # (bf16 weight-quantization budget).
  f_out, f_s = hyper_network_reference(x, params)
  np.testing.assert_allclose(np.asarray(out), np.asarray(f_out),
                             rtol=5e-2, atol=5e-3)
  np.testing.assert_allclose(np.asarray(s), np.asarray(f_s), rtol=1e-5)

  print("KERNEL_OK")
</pallas_src>

<mosaic_0001>
module attributes {stable_mosaic.version = 11 : i64} {
  func.func @hyper_kernel(%arg0: i32, %arg1: memref<16x8xf32, #tpu.memory_space<vmem>>, %arg2: memref<8x64xf32, #tpu.memory_space<vmem>>, %arg3: memref<1x64xf32, #tpu.memory_space<vmem>>, %arg4: memref<64x512xbf16, #tpu.memory_space<vmem>>, %arg5: memref<512x512xbf16, #tpu.memory_space<vmem>>, %arg6: memref<512x512xbf16, #tpu.memory_space<vmem>>, %arg7: memref<512x512xbf16, #tpu.memory_space<vmem>>, %arg8: memref<1x512xf32, #tpu.memory_space<vmem>>, %arg9: memref<4x512xf32, #tpu.memory_space<vmem>>, %arg10: memref<1x1xf32, #tpu.memory_space<vmem>>, %arg11: memref<16x1xf32, #tpu.memory_space<vmem>>) attributes {dimension_semantics = [#tpu.dimension_semantics<parallel>], iteration_bounds = array<i64: 1>, scalar_prefetch = 0 : i64, scratch_operands = 0 : i64, tpu.core_type = #tpu.core_type<tc>, window_params = [{transform_indices = @transform_0, window_bounds = array<i64: 16, 8>}, {pipeline_mode = #tpu.pipeline_mode<synchronous>, transform_indices = @transform_1, window_bounds = array<i64: 8, 64>}, {pipeline_mode = #tpu.pipeline_mode<synchronous>, transform_indices = @transform_2, window_bounds = array<i64: 1, 64>}, {pipeline_mode = #tpu.pipeline_mode<synchronous>, transform_indices = @transform_3, window_bounds = array<i64: 64, 512>}, {pipeline_mode = #tpu.pipeline_mode<synchronous>, transform_indices = @transform_4, window_bounds = array<i64: 512, 512>}, {pipeline_mode = #tpu.pipeline_mode<synchronous>, transform_indices = @transform_5, window_bounds = array<i64: 512, 512>}, {pipeline_mode = #tpu.pipeline_mode<synchronous>, transform_indices = @transform_6, window_bounds = array<i64: 512, 512>}, {pipeline_mode = #tpu.pipeline_mode<synchronous>, transform_indices = @transform_7, window_bounds = array<i64: 1, 512>}, {pipeline_mode = #tpu.pipeline_mode<synchronous>, transform_indices = @transform_8, window_bounds = array<i64: 4, 512>}, {pipeline_mode = #tpu.pipeline_mode<synchronous>, transform_indices = @transform_9, window_bounds = array<i64: 1, 1>}, {transform_indices = @transform_10, window_bounds = array<i64: 16, 1>}]} {
    %c0 = arith.constant 0 : index
    %c0_0 = arith.constant 0 : index
    %0 = vector.load %arg1[%c0, %c0_0] : memref<16x8xf32, #tpu.memory_space<vmem>>, vector<16x8xf32>
    %c0_1 = arith.constant 0 : index
    %c0_2 = arith.constant 0 : index
    %1 = vector.load %arg2[%c0_1, %c0_2] : memref<8x64xf32, #tpu.memory_space<vmem>>, vector<8x64xf32>
    %cst = arith.constant dense<0.000000e+00> : vector<16x64xf32>
    %2 = tpu.matmul %0, %1, %cst {dimension_numbers = #tpu.dot_dimension_numbers<[1], [0], [0], [1], [0, 0, 1, 1], [], []>} : vector<16x8xf32>, vector<8x64xf32>, vector<16x64xf32> -> vector<16x64xf32>
    %c0_3 = arith.constant 0 : index
    %c0_4 = arith.constant 0 : index
    %3 = vector.load %arg3[%c0_3, %c0_4] : memref<1x64xf32, #tpu.memory_space<vmem>>, vector<1x64xf32>
    %4 = vector.broadcast %3 : vector<1x64xf32> to vector<16x64xf32>
    %5 = arith.addf %2, %4 : vector<16x64xf32>
    %c0_5 = arith.constant 0 : index
    %c0_6 = arith.constant 0 : index
    %6 = vector.load %arg9[%c0_5, %c0_6] : memref<4x512xf32, #tpu.memory_space<vmem>>, vector<4x512xf32>
    %cst_7 = arith.constant 0.000000e+00 : f32
    %7 = vector.broadcast %cst_7 : f32 to vector<16x64xf32>
    %8 = arith.cmpf ogt, %5, %7 : vector<16x64xf32>
    %cst_8 = arith.constant 0.00999999977 : f32
    %9 = vector.broadcast %cst_8 : f32 to vector<16x64xf32>
    %10 = arith.mulf %9, %5 : vector<16x64xf32>
    %11 = arith.select %8, %5, %10 : vector<16x64xi1>, vector<16x64xf32>
    %12 = arith.truncf %11 : vector<16x64xf32> to vector<16x64xbf16>
    %c0_9 = arith.constant 0 : index
    %c0_10 = arith.constant 0 : index
    %13 = vector.load %arg4[%c0_9, %c0_10] : memref<64x512xbf16, #tpu.memory_space<vmem>>, vector<64x512xbf16>
    %cst_11 = arith.constant dense<0.000000e+00> : vector<16x512xf32>
    %14 = tpu.matmul %12, %13, %cst_11 {dimension_numbers = #tpu.dot_dimension_numbers<[1], [0], [0], [1], [0, 0, 1, 1], [], []>} : vector<16x64xbf16>, vector<64x512xbf16>, vector<16x512xf32> -> vector<16x512xf32>
    %15 = vector.extract_strided_slice %6 {offsets = [0, 0], sizes = [1, 512], strides = [1, 1]} : vector<4x512xf32> to vector<1x512xf32>
    %16 = vector.broadcast %15 : vector<1x512xf32> to vector<16x512xf32>
    %17 = arith.addf %14, %16 : vector<16x512xf32>
    %cst_12 = arith.constant 0.000000e+00 : f32
    %18 = vector.broadcast %cst_12 : f32 to vector<16x512xf32>
    %19 = arith.cmpf ogt, %17, %18 : vector<16x512xf32>
    %cst_13 = arith.constant 0.00999999977 : f32
    %20 = vector.broadcast %cst_13 : f32 to vector<16x512xf32>
    %21 = arith.mulf %20, %17 : vector<16x512xf32>
    %22 = arith.select %19, %17, %21 : vector<16x512xi1>, vector<16x512xf32>
    %23 = arith.truncf %22 : vector<16x512xf32> to vector<16x512xbf16>
    %c0_14 = arith.constant 0 : index
    %c0_15 = arith.constant 0 : index
    %24 = vector.load %arg5[%c0_14, %c0_15] : memref<512x512xbf16, #tpu.memory_space<vmem>>, vector<512x512xbf16>
    %cst_16 = arith.constant dense<0.000000e+00> : vector<16x512xf32>
    %25 = tpu.matmul %23, %24, %cst_16 {dimension_numbers = #tpu.dot_dimension_numbers<[1], [0], [0], [1], [0, 0, 1, 1], [], []>} : vector<16x512xbf16>, vector<512x512xbf16>, vector<16x512xf32> -> vector<16x512xf32>
    %26 = vector.extract_strided_slice %6 {offsets = [1, 0], sizes = [1, 512], strides = [1, 1]} : vector<4x512xf32> to vector<1x512xf32>
    %27 = vector.broadcast %26 : vector<1x512xf32> to vector<16x512xf32>
    %28 = arith.addf %25, %27 : vector<16x512xf32>
    %cst_17 = arith.constant 0.000000e+00 : f32
    %29 = vector.broadcast %cst_17 : f32 to vector<16x512xf32>
    %30 = arith.cmpf ogt, %28, %29 : vector<16x512xf32>
    %cst_18 = arith.constant 0.00999999977 : f32
    %31 = vector.broadcast %cst_18 : f32 to vector<16x512xf32>
    %32 = arith.mulf %31, %28 : vector<16x512xf32>
    %33 = arith.select %30, %28, %32 : vector<16x512xi1>, vector<16x512xf32>
    %34 = arith.truncf %33 : vector<16x512xf32> to vector<16x512xbf16>
    %c0_19 = arith.constant 0 : index
    %c0_20 = arith.constant 0 : index
    %35 = vector.load %arg6[%c0_19, %c0_20] : memref<512x512xbf16, #tpu.memory_space<vmem>>, vector<512x512xbf16>
    %cst_21 = arith.constant dense<0.000000e+00> : vector<16x512xf32>
    %36 = tpu.matmul %34, %35, %cst_21 {dimension_numbers = #tpu.dot_dimension_numbers<[1], [0], [0], [1], [0, 0, 1, 1], [], []>} : vector<16x512xbf16>, vector<512x512xbf16>, vector<16x512xf32> -> vector<16x512xf32>
    %37 = vector.extract_strided_slice %6 {offsets = [2, 0], sizes = [1, 512], strides = [1, 1]} : vector<4x512xf32> to vector<1x512xf32>
    %38 = vector.broadcast %37 : vector<1x512xf32> to vector<16x512xf32>
    %39 = arith.addf %36, %38 : vector<16x512xf32>
    %cst_22 = arith.constant 0.000000e+00 : f32
    %40 = vector.broadcast %cst_22 : f32 to vector<16x512xf32>
    %41 = arith.cmpf ogt, %39, %40 : vector<16x512xf32>
    %cst_23 = arith.constant 0.00999999977 : f32
    %42 = vector.broadcast %cst_23 : f32 to vector<16x512xf32>
    %43 = arith.mulf %42, %39 : vector<16x512xf32>
    %44 = arith.select %41, %39, %43 : vector<16x512xi1>, vector<16x512xf32>
    %45 = arith.truncf %44 : vector<16x512xf32> to vector<16x512xbf16>
    %c0_24 = arith.constant 0 : index
    %c0_25 = arith.constant 0 : index
    %46 = vector.load %arg7[%c0_24, %c0_25] : memref<512x512xbf16, #tpu.memory_space<vmem>>, vector<512x512xbf16>
    %cst_26 = arith.constant dense<0.000000e+00> : vector<16x512xf32>
    %47 = tpu.matmul %45, %46, %cst_26 {dimension_numbers = #tpu.dot_dimension_numbers<[1], [0], [0], [1], [0, 0, 1, 1], [], []>} : vector<16x512xbf16>, vector<512x512xbf16>, vector<16x512xf32> -> vector<16x512xf32>
    %48 = vector.extract_strided_slice %6 {offsets = [3, 0], sizes = [1, 512], strides = [1, 1]} : vector<4x512xf32> to vector<1x512xf32>
    %49 = vector.broadcast %48 : vector<1x512xf32> to vector<16x512xf32>
    %50 = arith.addf %47, %49 : vector<16x512xf32>
    %cst_27 = arith.constant 0.000000e+00 : f32
    %51 = vector.broadcast %cst_27 : f32 to vector<16x512xf32>
    %52 = arith.cmpf ogt, %50, %51 : vector<16x512xf32>
    %cst_28 = arith.constant 0.00999999977 : f32
    %53 = vector.broadcast %cst_28 : f32 to vector<16x512xf32>
    %54 = arith.mulf %53, %50 : vector<16x512xf32>
    %55 = arith.select %52, %50, %54 : vector<16x512xi1>, vector<16x512xf32>
    %c0_29 = arith.constant 0 : index
    %c0_30 = arith.constant 0 : index
    %56 = vector.load %arg8[%c0_29, %c0_30] : memref<1x512xf32, #tpu.memory_space<vmem>>, vector<1x512xf32>
    %57 = vector.broadcast %56 : vector<1x512xf32> to vector<16x512xf32>
    %58 = arith.mulf %55, %57 : vector<16x512xf32>
    %cst_31 = arith.constant dense<0.000000e+00> : vector<16xf32>
    %59 = vector.multi_reduction <add>, %58, %cst_31 [1] : vector<16x512xf32> to vector<16xf32>
    %60 = vector.shape_cast %59 : vector<16xf32> to vector<16x1xf32>
    %c0_32 = arith.constant 0 : index
    %c0_33 = arith.constant 0 : index
    %61 = vector.load %arg10[%c0_32, %c0_33] : memref<1x1xf32, #tpu.memory_space<vmem>>, vector<1x1xf32>
    %62 = vector.broadcast %61 : vector<1x1xf32> to vector<16x1xf32>
    %63 = arith.addf %60, %62 : vector<16x1xf32>
    %c0_34 = arith.constant 0 : index
    %c0_35 = arith.constant 0 : index
    %64 = vector.load %arg11[%c0_34, %c0_35] : memref<16x1xf32, #tpu.memory_space<vmem>>, vector<16x1xf32>
    tpu.vector_store %arg11[%c0_34, %c0_35], %63 {strides = array<i32>} : memref<16x1xf32, #tpu.memory_space<vmem>>, vector<16x1xf32>,
    return
  }
  func.func @transform_0(%arg0: i32) -> (i32, i32) {
    %c0_i32 = arith.constant 0 : i32
    %c0_i32_0 = arith.constant 0 : i32
    return %arg0, %c0_i32 : i32, i32
  }
  func.func @transform_1(%arg0: i32) -> (i32, i32) {
    %c0_i32 = arith.constant 0 : i32
    %c0_i32_0 = arith.constant 0 : i32
    %c0_i32_1 = arith.constant 0 : i32
    return %c0_i32, %c0_i32_0 : i32, i32
  }
  func.func @transform_2(%arg0: i32) -> (i32, i32) {
    %c0_i32 = arith.constant 0 : i32
    %c0_i32_0 = arith.constant 0 : i32
    %c0_i32_1 = arith.constant 0 : i32
    return %c0_i32, %c0_i32_0 : i32, i32
  }
  func.func @transform_3(%arg0: i32) -> (i32, i32) {
    %c0_i32 = arith.constant 0 : i32
    %c0_i32_0 = arith.constant 0 : i32
    %c0_i32_1 = arith.constant 0 : i32
    return %c0_i32, %c0_i32_0 : i32, i32
  }
  func.func @transform_4(%arg0: i32) -> (i32, i32) {
    %c0_i32 = arith.constant 0 : i32
    %c0_i32_0 = arith.constant 0 : i32
    %c0_i32_1 = arith.constant 0 : i32
    return %c0_i32, %c0_i32_0 : i32, i32
  }
  func.func @transform_5(%arg0: i32) -> (i32, i32) {
    %c0_i32 = arith.constant 0 : i32
    %c0_i32_0 = arith.constant 0 : i32
    %c0_i32_1 = arith.constant 0 : i32
    return %c0_i32, %c0_i32_0 : i32, i32
  }
  func.func @transform_6(%arg0: i32) -> (i32, i32) {
    %c0_i32 = arith.constant 0 : i32
    %c0_i32_0 = arith.constant 0 : i32
    %c0_i32_1 = arith.constant 0 : i32
    return %c0_i32, %c0_i32_0 : i32, i32
  }
  func.func @transform_7(%arg0: i32) -> (i32, i32) {
    %c0_i32 = arith.constant 0 : i32
    %c0_i32_0 = arith.constant 0 : i32
    %c0_i32_1 = arith.constant 0 : i32
    return %c0_i32, %c0_i32_0 : i32, i32
  }
  func.func @transform_8(%arg0: i32) -> (i32, i32) {
    %c0_i32 = arith.constant 0 : i32
    %c0_i32_0 = arith.constant 0 : i32
    %c0_i32_1 = arith.constant 0 : i32
    return %c0_i32, %c0_i32_0 : i32, i32
  }
  func.func @transform_9(%arg0: i32) -> (i32, i32) {
    %c0_i32 = arith.constant 0 : i32
    %c0_i32_0 = arith.constant 0 : i32
    %c0_i32_1 = arith.constant 0 : i32
    return %c0_i32, %c0_i32_0 : i32, i32
  }
  func.func @transform_10(%arg0: i32) -> (i32, i32) {
    %c0_i32 = arith.constant 0 : i32
    %c0_i32_0 = arith.constant 0 : i32
    return %arg0, %c0_i32 : i32, i32
  }
}

</mosaic_0001>

<llo_original>
// kernel: hyper_network_forward.1
$region0: #{hyper_network_forward.1}
  #allocation0 [shape = 'u32[]', space=smem, size = 0x4, offset = 0x4, fixed_abs, tag = 'smem constant byte address 0x4 - core index']
  #allocation1 [shape = 'u32[144,128]{1,0:T(1,128)}', space=vmem, size = 0x12000, scoped, tag = 'internal scratch']
  #allocation2 [shape = 'f32[1,1]{1,0:T(1,128)S(1)}', space=vmem, size = 0x200, scoped, tag = 'scoped memory for hyper_network_forward.1']
  %s0 = inlined_call_operand.vmem [shape: f32[16,8], index: 0, kind: input, shape index: {}]
  %s1 = inlined_call_operand.vmem [shape: f32[8,64], index: 1, kind: input, shape index: {}]
  %s2 = inlined_call_operand.vmem [shape: f32[1,64], index: 2, kind: input, shape index: {}]
  %s3 = inlined_call_operand.hbm [shape: bf16[64,512], index: 3, kind: input, shape index: {}]
  %s4 = inlined_call_operand.hbm [shape: bf16[512,512], index: 4, kind: input, shape index: {}]
  %s5 = inlined_call_operand.hbm [shape: bf16[512,512], index: 5, kind: input, shape index: {}]
  %s6 = inlined_call_operand.hbm [shape: bf16[512,512], index: 6, kind: input, shape index: {}]
  %s7 = inlined_call_operand.vmem [shape: f32[1,512], index: 7, kind: input, shape index: {}]
  %s8 = inlined_call_operand.vmem [shape: f32[4,512], index: 8, kind: input, shape index: {}]
  %s9 = inlined_call_operand.<no memory space> [shape: f32[1,1], index: 9, kind: input, shape index: {}]
  %s10 = inlined_call_operand.vmem [shape: f32[16,1], index: 10, kind: output, shape index: {}]
  %s11 = sld [smem:[#allocation0]]
  $region66: #{hyper_network_forward.1} parent=0
    _
  %s13 = ssub.s32 1, %s11
  %s14 = scalar_select 0, %s13, %s11
  %v15 = vstv %s9
  %16 = vst [vmem:[#allocation2] sm:$0x1] %v15
  $region1: #{hyper_network_forward.1} parent=0
    #allocation3 [shape = 'u8[65536]{0}', space=vmem, size = 0x10000, scoped, tag = 'input window, operand 3, single buffered']
    #allocation4 [shape = 's32[1]{0}', space=sflag, size = 0x4, scoped, tag = 'scoped memory for hyper_network_forward.1']
    #allocation5 [shape = 'u8[524288]{0}', space=vmem, size = 0x80000, scoped, tag = 'input window, operand 4, single buffered']
    #allocation6 [shape = 's32[1]{0}', space=sflag, size = 0x4, scoped, tag = 'scoped memory for hyper_network_forward.1']
    #allocation7 [shape = 'u8[524288]{0}', space=vmem, size = 0x80000, scoped, tag = 'input window, operand 5, single buffered']
    #allocation8 [shape = 'u8[524288]{0}', space=vmem, size = 0x80000, scoped, tag = 'input window, operand 6, single buffered']
    #allocation9 [shape = 's32[1]{0}', space=sflag, size = 0x4, scoped, tag = 'scoped memory for hyper_network_forward.1']
    %17 = vsyncpa [#allocation4], 0
    %18 = vsyncpa [#allocation6], 0
    %19 = vsyncpa [#allocation9], 0
    // Predicated region
    $region2: #{hyper_network_forward.1} parent=1 // pred_check
      _
    $region3: #{hyper_network_forward.1} parent=1 // pred_check_branch
      %21 = sbr.rel (0) target = $region5
    $region4: #{hyper_network_forward.1} parent=1 // pred_region
      _
    $region5: #{hyper_network_forward.1} parent=1 // pred_fallthru
      _
    // Predicated region
    $region6: #{hyper_network_forward.1} parent=1 // pred_check
      _
    $region7: #{hyper_network_forward.1} parent=1 // pred_check_branch
      %23 = sbr.rel (0) target = $region9
    $region8: #{hyper_network_forward.1} parent=1 // pred_region
      _
    $region9: #{hyper_network_forward.1} parent=1 // pred_fallthru
      _
    // Predicated region
    $region10: #{hyper_network_forward.1} parent=1 // pred_check
      _
    $region11: #{hyper_network_forward.1} parent=1 // pred_check_branch
      %25 = sbr.rel (0) target = $region13
    $region12: #{hyper_network_forward.1} parent=1 // pred_region
      _
    $region13: #{hyper_network_forward.1} parent=1 // pred_fallthru
      _
    // Predicated region
    $region14: #{hyper_network_forward.1} parent=1 // pred_check
      _
    $region15: #{hyper_network_forward.1} parent=1 // pred_check_branch
      %27 = sbr.rel (0) target = $region17
    $region16: #{hyper_network_forward.1} parent=1 // pred_region
      %s29 = ssub.s32 2048, 2048
      %30 = vsyncadd [#allocation4], %s29
      %s31 = sshll.u32 [#allocation3], 4
      %s32 = int_to_ptr.vmem [resolvable:$true] %s31
      %37 = dma.hbm_to_vmem [thread:$0]  %s3, 2048, %s32, [#allocation4], 256, 256, 16
    $region17: #{hyper_network_forward.1} parent=1 // pred_fallthru
      _
    // Predicated region
    $region18: #{hyper_network_forward.1} parent=1 // pred_check
      _
    $region19: #{hyper_network_forward.1} parent=1 // pred_check_branch
      %39 = sbr.rel (0) target = $region21
    $region20: #{hyper_network_forward.1} parent=1 // pred_region
      %s41 = ssub.s32 16384, 16384
      %42 = vsyncadd [#allocation6], %s41
      %s43 = sshll.u32 [#allocation5], 4
      %s44 = int_to_ptr.vmem [resolvable:$true] %s43
      %49 = dma.hbm_to_vmem [thread:$0]  %s4, 16384, %s44, [#allocation6], 256, 256, 16
    $region21: #{hyper_network_forward.1} parent=1 // pred_fallthru
      _
    // Predicated region
    $region22: #{hyper_network_forward.1} parent=1 // pred_check
      _
    $region23: #{hyper_network_forward.1} parent=1 // pred_check_branch
      %51 = sbr.rel (0) target = $region25
    $region24: #{hyper_network_forward.1} parent=1 // pred_region
      %s53 = ssub.s32 16384, 16384
      %54 = vsyncadd [#allocation6], %s53
      %s55 = sshll.u32 [#allocation7], 4
      %s56 = int_to_ptr.vmem [resolvable:$true] %s55
      %61 = dma.hbm_to_vmem [thread:$0]  %s5, 16384, %s56, [#allocation6], 256, 256, 16
    $region25: #{hyper_network_forward.1} parent=1 // pred_fallthru
      _
    // Predicated region
    $region26: #{hyper_network_forward.1} parent=1 // pred_check
      _
    $region27: #{hyper_network_forward.1} parent=1 // pred_check_branch
      %63 = sbr.rel (0) target = $region29
    $region28: #{hyper_network_forward.1} parent=1 // pred_region
      %s65 = ssub.s32 16384, 16384
      %66 = vsyncadd [#allocation9], %s65
      %s67 = sshll.u32 [#allocation8], 4
      %s68 = int_to_ptr.vmem [resolvable:$true] %s67
      %73 = dma.hbm_to_vmem [thread:$0]  %s6, 16384, %s68, [#allocation9], 256, 256, 16
    $region29: #{hyper_network_forward.1} parent=1 // pred_fallthru
      _
    // Predicated region
    $region30: #{hyper_network_forward.1} parent=1 // pred_check
      _
    $region31: #{hyper_network_forward.1} parent=1 // pred_check_branch
      %75 = sbr.rel (0) target = $region33
    $region32: #{hyper_network_forward.1} parent=1 // pred_region
      _
    $region33: #{hyper_network_forward.1} parent=1 // pred_fallthru
      _
    // Predicated region
    $region34: #{hyper_network_forward.1} parent=1 // pred_check
      _
    $region35: #{hyper_network_forward.1} parent=1 // pred_check_branch
      %77 = sbr.rel (0) target = $region37
    $region36: #{hyper_network_forward.1} parent=1 // pred_region
      _
    $region37: #{hyper_network_forward.1} parent=1 // pred_fallthru
      _
    // Predicated region
    $region38: #{hyper_network_forward.1} parent=1 // pred_check
      _
    $region39: #{hyper_network_forward.1} parent=1 // pred_check_branch
      %79 = sbr.rel (0) target = $region41
    $region40: #{hyper_network_forward.1} parent=1 // pred_region
      _
    $region41: #{hyper_network_forward.1} parent=1 // pred_fallthru
      _
    // Predicated region
    $region42: #{hyper_network_forward.1} parent=1 // pred_check
      _
    $region43: #{hyper_network_forward.1} parent=1 // pred_check_branch
      %81 = sbr.rel (0) target = $region45
    $region44: #{hyper_network_forward.1} parent=1 // pred_region
      %82 = dma.done [#allocation4], 2048
    $region45: #{hyper_network_forward.1} parent=1 // pred_fallthru
      _
    // Predicated region
    $region46: #{hyper_network_forward.1} parent=1 // pred_check
      _
    $region47: #{hyper_network_forward.1} parent=1 // pred_check_branch
      %84 = sbr.rel (0) target = $region49
    $region48: #{hyper_network_forward.1} parent=1 // pred_region
      %85 = dma.done [#allocation6], 16384
    $region49: #{hyper_network_forward.1} parent=1 // pred_fallthru
      _
    // Predicated region
    $region50: #{hyper_network_forward.1} parent=1 // pred_check
      _
    $region51: #{hyper_network_forward.1} parent=1 // pred_check_branch
      %87 = sbr.rel (0) target = $region53
    $region52: #{hyper_network_forward.1} parent=1 // pred_region
      %88 = dma.done [#allocation6], 16384
    $region53: #{hyper_network_forward.1} parent=1 // pred_fallthru
      _
    // Predicated region
    $region54: #{hyper_network_forward.1} parent=1 // pred_check
      _
    $region55: #{hyper_network_forward.1} parent=1 // pred_check_branch
      %90 = sbr.rel (0) target = $region57
    $region56: #{hyper_network_forward.1} parent=1 // pred_region
      %91 = dma.done [#allocation9], 16384
    $region57: #{hyper_network_forward.1} parent=1 // pred_fallthru
      _
    %v93 = vld [vmem:[%s0] sm:$0xff]
    %v94 = vld [vmem:[%s0 + $0x8] sm:$0xff]
    %v95 = vld [vmem:[%s1] sm:$0xff]
    %v96 = vld [vmem:[%s2] sm:$0x1]
    %v98 = vlaneseq
    %v99 = vshrl.u32 %v98, 7
    %v100 = vsub.s32 0, %v99
    %v101 = vrot.slane %v96, %v100
    %vm103 = vcmask 64512
    %v105 = vsel %vm103, %v93, 0
    %v108 = vsel %vm103, %v94, 0
    %110 = vmatprep.subr.mxu0 0.0
    %111 = vmatpush1.msra.mxu0 %v95
    %112 = vmatprep.subr.mxu0 0.0
    %113 = vmatpush1.msra.mxu0 0.0
    %114 = vmatprep.subr.mxu0 0.0
    %115 = vmatpush1.msra.mxu0 0.0
    %116 = vmatprep.subr.mxu0 0.0
    %117 = vmatpush1.msra.mxu0 0.0
    %118 = vmatprep.subr.mxu0 0.0
    %119 = vmatpush1.msra.mxu0 0.0
    %120 = vmatprep.subr.mxu0 0.0
    %121 = vmatpush1.msra.mxu0 0.0
    %122 = vmatprep.subr.mxu0 0.0
    %123 = vmatpush1.msra.mxu0 0.0
    %124 = vmatprep.subr.mxu0 0.0
    %125 = vmatpush1.msra.mxu0 0.0
    %126 = vmatprep.subr.mxu0 0.0
    %127 = vmatpush1.msra.mxu0 0.0
    %128 = vmatprep.subr.mxu0 0.0
    %129 = vmatpush1.msra.mxu0 0.0
    %130 = vmatprep.subr.mxu0 0.0
    %131 = vmatpush1.msra.mxu0 0.0
    %132 = vmatprep.subr.mxu0 0.0
    %133 = vmatpush1.msra.mxu0 0.0
    %134 = vmatprep.subr.mxu0 0.0
    %135 = vmatpush1.msra.mxu0 0.0
    %136 = vmatprep.subr.mxu0 0.0
    %137 = vmatpush1.msra.mxu0 0.0
    %138 = vmatprep.subr.mxu0 0.0
    %139 = vmatpush1.msra.mxu0 0.0
    %140 = vmatprep.subr.mxu0 0.0
    %141 = vmatpush1.msra.mxu0 0.0
    %142 = vmatprep.subr.mxu0 0.0
    %143 = vmatpush1.msra.mxu0 0.0
    %144 = vmatprep.subr.mxu0 0.0
    %145 = vmatpush1.msra.mxu0 0.0
    %146 = vmatprep.subr.mxu0 0.0
    %147 = vmatpush1.msra.mxu0 0.0
    %148 = vmatprep.subr.mxu0 0.0
    %149 = vmatpush1.msra.mxu0 0.0
    %150 = vmatprep.subr.mxu0 0.0
    %151 = vmatpush1.msra.mxu0 0.0
    %152 = vmatprep.subr.mxu0 0.0
    %153 = vmatpush1.msra.mxu0 0.0
    %154 = vmatprep.subr.mxu0 0.0
    %155 = vmatpush1.msra.mxu0 0.0
    %156 = vmatprep.subr.mxu0 0.0
    %157 = vmatpush1.msra.mxu0 0.0
    %158 = vmatprep.subr.mxu0 0.0
    %159 = vmatpush1.msra.mxu0 0.0
    %160 = vmatprep.subr.mxu0 0.0
    %161 = vmatpush1.msra.mxu0 0.0
    %162 = vmatprep.subr.mxu0 0.0
    %163 = vmatpush1.msra.mxu0 0.0
    %164 = vmatprep.subr.mxu0 0.0
    %165 = vmatpush1.msra.mxu0 0.0
    %166 = vmatprep.subr.mxu0 0.0
    %167 = vmatpush1.msra.mxu0 0.0
    %168 = vmatprep.subr.mxu0 0.0
    %169 = vmatpush1.msra.mxu0 0.0
    %170 = vmatprep.subr.mxu0 0.0
    %171 = vmatpush1.msra.mxu0 0.0
    %172 = vmatprep.subr.mxu0 0.0
    %173 = vmatpush1.msra.mxu0 0.0
    %174 = vmatprep.mubr.f32.mxu0 0.0
    %175 = vmatmul.mubr.f32.gmra.mrb[0].mxu0 %v105
    %v176 = vpop.f32.mrb[0].mxu0
    %v177 = vadd.f32 %v101, %v176
    %v178 = vpop.f32.mrb[0].mxu0
    %179 = vmatprep.mubr.f32.mxu0 0.0
    %180 = vmatmul.mubr.f32.gmra.mrb[0].mxu0 %v108
    %v181 = vpop.f32.mrb[0].mxu0
    %v182 = vadd.f32 %v101, %v181
    %v183 = vpop.f32.mrb[0].mxu0
    %184 = vdwg.mxu0
    %v185 = vld [vmem:[%s8] sm:$0xff]
    %v186 = vld [vmem:[%s8 + $0x8] sm:$0xff]
    %vm187 = vcmp.gt.f32.partialorder %v177, 0.0
    %vm188 = vcmp.gt.f32.partialorder %v182, 0.0
    %v189 = vmul.f32 %v177, 0.01
    %v190 = vmul.f32 %v182, 0.01
    %v191 = vsel %vm187, %v177, %v189
    %v192 = vsel %vm188, %v182, %v190
    %v193 = vpack.c.bf16 %v192, %v191
    %v194 = vld [vmem:[#allocation3] sm:$0xff]
    %v195 = vld [vmem:[#allocation3 + $0x8] sm:$0xff]
    %v196 = vld [vmem:[#allocation3 + $0x10] sm:$0xff]
    %v197 = vld [vmem:[#allocation3 + $0x18] sm:$0xff]
    %v198 = vld [vmem:[#allocation3 + $0x20] sm:$0xff]
    %v199 = vld [vmem:[#allocation3 + $0x28] sm:$0xff]
    %v200 = vld [vmem:[#allocation3 + $0x30] sm:$0xff]
    %v201 = vld [vmem:[#allocation3 + $0x38] sm:$0xff]
    %v202 = vld [vmem:[#allocation3 + $0x40] sm:$0xff]
    %v203 = vld [vmem:[#allocation3 + $0x48] sm:$0xff]
    %v204 = vld [vmem:[#allocation3 + $0x50] sm:$0xff]
    %v205 = vld [vmem:[#allocation3 + $0x58] sm:$0xff]
    %v206 = vld [vmem:[#allocation3 + $0x60] sm:$0xff]
    %v207 = vld [vmem:[#allocation3 + $0x68] sm:$0xff]
    %v208 = vld [vmem:[#allocation3 + $0x70] sm:$0xff]
    %v209 = vld [vmem:[#allocation3 + $0x78] sm:$0xff]
    %v212 = vlaneseq
    %v213 = vshrl.u32 %v212, 7
    %v214 = vsub.s32 0, %v213
    %v215 = vrot.slane %v185, %v214
    %v216 = vlaneseq
    %v217 = vshrl.u32 %v216, 7
    %v218 = vsub.s32 4, %v217
    %v219 = vrot.slane %v185, %v218
    %v220 = vlaneseq
    %v221 = vshrl.u32 %v220, 7
    %v222 = vsub.s32 0, %v221
    %v223 = vrot.slane %v186, %v222
    %v224 = vlaneseq
    %v225 = vshrl.u32 %v224, 7
    %v226 = vsub.s32 4, %v225
    %v227 = vrot.slane %v186, %v226
    %v232 = vlaneseq
    %v233 = vshrl.u32 %v232, 7
    %v234 = vsub.s32 0, %v233
    %v235 = vrot.slane %v215, %v234
    %v236 = vlaneseq
    %v237 = vshrl.u32 %v236, 7
    %v238 = vsub.s32 0, %v237
    %v239 = vrot.slane %v219, %v238
    %v240 = vlaneseq
    %v241 = vshrl.u32 %v240, 7
    %v242 = vsub.s32 0, %v241
    %v243 = vrot.slane %v223, %v242
    %v244 = vlaneseq
    %v245 = vshrl.u32 %v244, 7
    %v246 = vsub.s32 0, %v245
    %v247 = vrot.slane %v227, %v246
    %v264 = vunpack.c.l.b16 %v194
    %v265 = vunpack.c.h.b16 %v194
    %v266 = vunpack.c.l.b16 %v195
    %v267 = vunpack.c.h.b16 %v195
    %v268 = vunpack.c.l.b16 %v196
    %v269 = vunpack.c.h.b16 %v196
    %v270 = vunpack.c.l.b16 %v197
    %v271 = vunpack.c.h.b16 %v197
    %v272 = vunpack.c.l.b16 %v198
    %v273 = vunpack.c.h.b16 %v198
    %v274 = vunpack.c.l.b16 %v199
    %v275 = vunpack.c.h.b16 %v199
    %v276 = vunpack.c.l.b16 %v200
    %v277 = vunpack.c.h.b16 %v200
    %v278 = vunpack.c.l.b16 %v201
    %v279 = vunpack.c.h.b16 %v201
    %v280 = vunpack.c.l.b16 %v202
    %v281 = vunpack.c.h.b16 %v202
    %v282 = vunpack.c.l.b16 %v203
    %v283 = vunpack.c.h.b16 %v203
    %v284 = vunpack.c.l.b16 %v204
    %v285 = vunpack.c.h.b16 %v204
    %v286 = vunpack.c.l.b16 %v205
    %v287 = vunpack.c.h.b16 %v205
    %v288 = vunpack.c.l.b16 %v206
    %v289 = vunpack.c.h.b16 %v206
    %v290 = vunpack.c.l.b16 %v207
    %v291 = vunpack.c.h.b16 %v207
    %v292 = vunpack.c.l.b16 %v208
    %v293 = vunpack.c.h.b16 %v208
    %v294 = vunpack.c.l.b16 %v209
    %v295 = vunpack.c.h.b16 %v209
    %v296 = vpack.c.b16 %v268, %v264
    %v297 = vpack.c.b16 %v269, %v265
    %v298 = vpack.c.b16 %v270, %v266
    %v299 = vpack.c.b16 %v271, %v267
    %v300 = vpack.c.b16 %v276, %v272
    %v301 = vpack.c.b16 %v277, %v273
    %v302 = vpack.c.b16 %v278, %v274
    %v303 = vpack.c.b16 %v279, %v275
    %v304 = vpack.c.b16 %v284, %v280
    %v305 = vpack.c.b16 %v285, %v281
    %v306 = vpack.c.b16 %v286, %v282
    %v307 = vpack.c.b16 %v287, %v283
    %v308 = vpack.c.b16 %v292, %v288
    %v309 = vpack.c.b16 %v293, %v289
    %v310 = vpack.c.b16 %v294, %v290
    %v311 = vpack.c.b16 %v295, %v291
    %vm328 = vcmask 523264
    %v330 = vsel %vm328, %v193, 0
    %332 = vmatprep.subr.bf16.mxu0 %v297
    %333 = vmatpush1.bf16.msra.mxu0 %v296
    %334 = vmatprep.subr.bf16.mxu0 %v301
    %335 = vmatpush1.bf16.msra.mxu0 %v300
    %336 = vmatprep.subr.bf16.mxu0 %v305
    %337 = vmatpush1.bf16.msra.mxu0 %v304
    %338 = vmatprep.subr.bf16.mxu0 %v309
    %339 = vmatpush1.bf16.msra.mxu0 %v308
    %340 = vmatprep.subr.bf16.mxu0 0
    %341 = vmatpush1.bf16.msra.mxu0 0
    %342 = vmatprep.subr.bf16.mxu0 0
    %343 = vmatpush1.bf16.msra.mxu0 0
    %344 = vmatprep.subr.bf16.mxu0 0
    %345 = vmatpush1.bf16.msra.mxu0 0
    %346 = vmatprep.subr.bf16.mxu0 0
    %347 = vmatpush1.bf16.msra.mxu0 0
    %348 = vmatprep.subr.bf16.mxu0 0
    %349 = vmatpush1.bf16.msra.mxu0 0
    %350 = vmatprep.subr.bf16.mxu0 0
    %351 = vmatpush1.bf16.msra.mxu0 0
    %352 = vmatprep.subr.bf16.mxu0 0
    %353 = vmatpush1.bf16.msra.mxu0 0
    %354 = vmatprep.subr.bf16.mxu0 0
    %355 = vmatpush1.bf16.msra.mxu0 0
    %356 = vmatprep.subr.bf16.mxu0 0
    %357 = vmatpush1.bf16.msra.mxu0 0
    %358 = vmatprep.subr.bf16.mxu0 0
    %359 = vmatpush1.bf16.msra.mxu0 0
    %360 = vmatprep.subr.bf16.mxu0 0
    %361 = vmatpush1.bf16.msra.mxu0 0
    %362 = vmatprep.subr.bf16.mxu0 0
    %363 = vmatpush1.bf16.msra.mxu0 0
    %364 = vmatprep.mubr.bf16.mxu0 0
    %365 = vmatmul.mubr.bf16.gmra.mrb[0].mxu0 %v330
    %v366 = vpop.f32.mrb[0].mxu0
    %v367 = vadd.f32 %v235, %v366
    %v368 = vpop.f32.mrb[0].mxu0
    %v369 = vadd.f32 %v239, %v368
    %v370 = vpop.f32.mrb[0].mxu0
    %v371 = vadd.f32 %v235, %v370
    %v372 = vpop.f32.mrb[0].mxu0
    %v373 = vadd.f32 %v239, %v372
    %374 = vdwg.mxu0
    %375 = vmatprep.subr.bf16.mxu0 %v299
    %376 = vmatpush1.bf16.msra.mxu0 %v298
    %377 = vmatprep.subr.bf16.mxu0 %v303
    %378 = vmatpush1.bf16.msra.mxu0 %v302
    %379 = vmatprep.subr.bf16.mxu0 %v307
    %380 = vmatpush1.bf16.msra.mxu0 %v306
    %381 = vmatprep.subr.bf16.mxu0 %v311
    %382 = vmatpush1.bf16.msra.mxu0 %v310
    %383 = vmatprep.subr.bf16.mxu0 0
    %384 = vmatpush1.bf16.msra.mxu0 0
    %385 = vmatprep.subr.bf16.mxu0 0
    %386 = vmatpush1.bf16.msra.mxu0 0
    %387 = vmatprep.subr.bf16.mxu0 0
    %388 = vmatpush1.bf16.msra.mxu0 0
    %389 = vmatprep.subr.bf16.mxu0 0
    %390 = vmatpush1.bf16.msra.mxu0 0
    %391 = vmatprep.subr.bf16.mxu0 0
    %392 = vmatpush1.bf16.msra.mxu0 0
    %393 = vmatprep.subr.bf16.mxu0 0
    %394 = vmatpush1.bf16.msra.mxu0 0
    %395 = vmatprep.subr.bf16.mxu0 0
    %396 = vmatpush1.bf16.msra.mxu0 0
    %397 = vmatprep.subr.bf16.mxu0 0
    %398 = vmatpush1.bf16.msra.mxu0 0
    %399 = vmatprep.subr.bf16.mxu0 0
    %400 = vmatpush1.bf16.msra.mxu0 0
    %401 = vmatprep.subr.bf16.mxu0 0
    %402 = vmatpush1.bf16.msra.mxu0 0
    %403 = vmatprep.subr.bf16.mxu0 0
    %404 = vmatpush1.bf16.msra.mxu0 0
    %405 = vmatprep.subr.bf16.mxu0 0
    %406 = vmatpush1.bf16.msra.mxu0 0
    %407 = vmatprep.mubr.bf16.mxu0 0
    %408 = vmatmul.mubr.bf16.gmra.mrb[0].mxu0 %v330
    %v409 = vpop.f32.mrb[0].mxu0
    %v410 = vadd.f32 %v243, %v409
    %v411 = vpop.f32.mrb[0].mxu0
    %v412 = vadd.f32 %v247, %v411
    %v413 = vpop.f32.mrb[0].mxu0
    %v414 = vadd.f32 %v243, %v413
    %v415 = vpop.f32.mrb[0].mxu0
    %v416 = vadd.f32 %v247, %v415
    %417 = vdwg.mxu0
    %vm418 = vcmp.gt.f32.partialorder %v367, 0.0
    %vm419 = vcmp.gt.f32.partialorder %v369, 0.0
    %vm420 = vcmp.gt.f32.partialorder %v410, 0.0
    %vm421 = vcmp.gt.f32.partialorder %v412, 0.0
    %vm422 = vcmp.gt.f32.partialorder %v371, 0.0
    %vm423 = vcmp.gt.f32.partialorder %v373, 0.0
    %vm424 = vcmp.gt.f32.partialorder %v414, 0.0
    %vm425 = vcmp.gt.f32.partialorder %v416, 0.0
    %v426 = vmul.f32 %v367, 0.01
    %v427 = vmul.f32 %v369, 0.01
    %v428 = vmul.f32 %v410, 0.01
    %v429 = vmul.f32 %v412, 0.01
    %v430 = vmul.f32 %v371, 0.01
    %v431 = vmul.f32 %v373, 0.01
    %v432 = vmul.f32 %v414, 0.01
    %v433 = vmul.f32 %v416, 0.01
    %v434 = vsel %vm418, %v367, %v426
    %v435 = vsel %vm419, %v369, %v427
    %v436 = vsel %vm420, %v410, %v428
    %v437 = vsel %vm421, %v412, %v429
    %v438 = vsel %vm422, %v371, %v430
    %v439 = vsel %vm423, %v373, %v431
    %v440 = vsel %vm424, %v414, %v432
    %v441 = vsel %vm425, %v416, %v433
    %v442 = vpack.c.bf16 %v438, %v434
    %v443 = vpack.c.bf16 %v439, %v435
    %v444 = vpack.c.bf16 %v440, %v436
    %v445 = vpack.c.bf16 %v441, %v437
    %v446 = vld [vmem:[#allocation5] sm:$0xff]
    %v447 = vld [vmem:[#allocation5 + $0x8] sm:$0xff]
    %v448 = vld [vmem:[#allocation5 + $0x10] sm:$0xff]
    %v449 = vld [vmem:[#allocation5 + $0x18] sm:$0xff]
    %v450 = vld [vmem:[#allocation5 + $0x20] sm:$0xff]
    %v451 = vld [vmem:[#allocation5 + $0x28] sm:$0xff]
    %v452 = vld [vmem:[#allocation5 + $0x30] sm:$0xff]
    %v453 = vld [vmem:[#allocation5 + $0x38] sm:$0xff]
    %v454 = vld [vmem:[#allocation5 + $0x40] sm:$0xff]
    %v455 = vld [vmem:[#allocation5 + $0x48] sm:$0xff]
    %v456 = vld [vmem:[#allocation5 + $0x50] sm:$0xff]
    %v457 = vld [vmem:[#allocation5 + $0x58] sm:$0xff]
    %v458 = vld [vmem:[#allocation5 + $0x60] sm:$0xff]
    %v459 = vld [vmem:[#allocation5 + $0x68] sm:$0xff]
    %v460 = vld [vmem:[#allocation5 + $0x70] sm:$0xff]
    %v461 = vld [vmem:[#allocation5 + $0x78] sm:$0xff]
    %v462 = vld [vmem:[#allocation5 + $0x80] sm:$0xff]
    %v463 = vld [vmem:[#allocation5 + $0x88] sm:$0xff]
    %v464 = vld [vmem:[#allocation5 + $0x90] sm:$0xff]
    %v465 = vld [vmem:[#allocation5 + $0x98] sm:$0xff]
    %v466 = vld [vmem:[#allocation5 + $0xa0] sm:$0xff]
    %v467 = vld [vmem:[#allocation5 + $0xa8] sm:$0xff]
    %v468 = vld [vmem:[#allocation5 + $0xb0] sm:$0xff]
    %v469 = vld [vmem:[#allocation5 + $0xb8] sm:$0xff]
    %v470 = vld [vmem:[#allocation5 + $0xc0] sm:$0xff]
    %v471 = vld [vmem:[#allocation5 + $0xc8] sm:$0xff]
    %v472 = vld [vmem:[#allocation5 + $0xd0] sm:$0xff]
    %v473 = vld [vmem:[#allocation5 + $0xd8] sm:$0xff]
    %v474 = vld [vmem:[#allocation5 + $0xe0] sm:$0xff]
    %v475 = vld [vmem:[#allocation5 + $0xe8] sm:$0xff]
    %v476 = vld [vmem:[#allocation5 + $0xf0] sm:$0xff]
    %v477 = vld [vmem:[#allocation5 + $0xf8] sm:$0xff]
    %v478 = vld [vmem:[#allocation5 + $0x100] sm:$0xff]
    %v479 = vld [vmem:[#allocation5 + $0x108] sm:$0xff]
    %v480 = vld [vmem:[#allocation5 + $0x110] sm:$0xff]
    %v481 = vld [vmem:[#allocation5 + $0x118] sm:$0xff]
    %v482 = vld [vmem:[#allocation5 + $0x120] sm:$0xff]
    %v483 = vld [vmem:[#allocation5 + $0x128] sm:$0xff]
    %v484 = vld [vmem:[#allocation5 + $0x130] sm:$0xff]
    %v485 = vld [vmem:[#allocation5 + $0x138] sm:$0xff]
    %v486 = vld [vmem:[#allocation5 + $0x140] sm:$0xff]
    %v487 = vld [vmem:[#allocation5 + $0x148] sm:$0xff]
    %v488 = vld [vmem:[#allocation5 + $0x150] sm:$0xff]
    %v489 = vld [vmem:[#allocation5 + $0x158] sm:$0xff]
    %v490 = vld [vmem:[#allocation5 + $0x160] sm:$0xff]
    %v491 = vld [vmem:[#allocation5 + $0x168] sm:$0xff]
    %v492 = vld [vmem:[#allocation5 + $0x170] sm:$0xff]
    %v493 = vld [vmem:[#allocation5 + $0x178] sm:$0xff]
    %v494 = vld [vmem:[#allocation5 + $0x180] sm:$0xff]
    %v495 = vld [vmem:[#allocation5 + $0x188] sm:$0xff]
    %v496 = vld [vmem:[#allocation5 + $0x190] sm:$0xff]
    %v497 = vld [vmem:[#allocation5 + $0x198] sm:$0xff]
    %v498 = vld [vmem:[#allocation5 + $0x1a0] sm:$0xff]
    %v499 = vld [vmem:[#allocation5 + $0x1a8] sm:$0xff]
    %v500 = vld [vmem:[#allocation5 + $0x1b0] sm:$0xff]
    %v501 = vld [vmem:[#allocation5 + $0x1b8] sm:$0xff]
    %v502 = vld [vmem:[#allocation5 + $0x1c0] sm:$0xff]
    %v503 = vld [vmem:[#allocation5 + $0x1c8] sm:$0xff]
    %v504 = vld [vmem:[#allocation5 + $0x1d0] sm:$0xff]
    %v505 = vld [vmem:[#allocation5 + $0x1d8] sm:$0xff]
    %v506 = vld [vmem:[#allocation5 + $0x1e0] sm:$0xff]
    %v507 = vld [vmem:[#allocation5 + $0x1e8] sm:$0xff]
    %v508 = vld [vmem:[#allocation5 + $0x1f0] sm:$0xff]
    %v509 = vld [vmem:[#allocation5 + $0x1f8] sm:$0xff]
    %v510 = vld [vmem:[#allocation5 + $0x200] sm:$0xff]
    %v511 = vld [vmem:[#allocation5 + $0x208] sm:$0xff]
    %v512 = vld [vmem:[#allocation5 + $0x210] sm:$0xff]
    %v513 = vld [vmem:[#allocation5 + $0x218] sm:$0xff]
    %v514 = vld [vmem:[#allocation5 + $0x220] sm:$0xff]
    %v515 = vld [vmem:[#allocation5 + $0x228] sm:$0xff]
    %v516 = vld [vmem:[#allocation5 + $0x230] sm:$0xff]
    %v517 = vld [vmem:[#allocation5 + $0x238] sm:$0xff]
    %v518 = vld [vmem:[#allocation5 + $0x240] sm:$0xff]
    %v519 = vld [vmem:[#allocation5 + $0x248] sm:$0xff]
    %v520 = vld [vmem:[#allocation5 + $0x250] sm:$0xff]
    %v521 = vld [vmem:[#allocation5 + $0x258] sm:$0xff]
    %v522 = vld [vmem:[#allocation5 + $0x260] sm:$0xff]
    %v523 = vld [vmem:[#allocation5 + $0x268] sm:$0xff]
    %v524 = vld [vmem:[#allocation5 + $0x270] sm:$0xff]
    %v525 = vld [vmem:[#allocation5 + $0x278] sm:$0xff]
    %v526 = vld [vmem:[#allocation5 + $0x280] sm:$0xff]
    %v527 = vld [vmem:[#allocation5 + $0x288] sm:$0xff]
    %v528 = vld [vmem:[#allocation5 + $0x290] sm:$0xff]
    %v529 = vld [vmem:[#allocation5 + $0x298] sm:$0xff]
    %v530 = vld [vmem:[#allocation5 + $0x2a0] sm:$0xff]
    %v531 = vld [vmem:[#allocation5 + $0x2a8] sm:$0xff]
    %v532 = vld [vmem:[#allocation5 + $0x2b0] sm:$0xff]
    %v533 = vld [vmem:[#allocation5 + $0x2b8] sm:$0xff]
    %v534 = vld [vmem:[#allocation5 + $0x2c0] sm:$0xff]
    %v535 = vld [vmem:[#allocation5 + $0x2c8] sm:$0xff]
    %v536 = vld [vmem:[#allocation5 + $0x2d0] sm:$0xff]
    %v537 = vld [vmem:[#allocation5 + $0x2d8] sm:$0xff]
    %v538 = vld [vmem:[#allocation5 + $0x2e0] sm:$0xff]
    %v539 = vld [vmem:[#allocation5 + $0x2e8] sm:$0xff]
    %v540 = vld [vmem:[#allocation5 + $0x2f0] sm:$0xff]
    %v541 = vld [vmem:[#allocation5 + $0x2f8] sm:$0xff]
    %v542 = vld [vmem:[#allocation5 + $0x300] sm:$0xff]
    %v543 = vld [vmem:[#allocation5 + $0x308] sm:$0xff]
    %v544 = vld [vmem:[#allocation5 + $0x310] sm:$0xff]
    %v545 = vld [vmem:[#allocation5 + $0x318] sm:$0xff]
    %v546 = vld [vmem:[#allocation5 + $0x320] sm:$0xff]
    %v547 = vld [vmem:[#allocation5 + $0x328] sm:$0xff]
    %v548 = vld [vmem:[#allocation5 + $0x330] sm:$0xff]
    %v549 = vld [vmem:[#allocation5 + $0x338] sm:$0xff]
    %v550 = vld [vmem:[#allocation5 + $0x340] sm:$0xff]
    %v551 = vld [vmem:[#allocation5 + $0x348] sm:$0xff]
    %v552 = vld [vmem:[#allocation5 + $0x350] sm:$0xff]
    %v553 = vld [vmem:[#allocation5 + $0x358] sm:$0xff]
    %v554 = vld [vmem:[#allocation5 + $0x360] sm:$0xff]
    %v555 = vld [vmem:[#allocation5 + $0x368] sm:$0xff]
    %v556 = vld [vmem:[#allocation5 + $0x370] sm:$0xff]
    %v557 = vld [vmem:[#allocation5 + $0x378] sm:$0xff]
    %v558 = vld [vmem:[#allocation5 + $0x380] sm:$0xff]
    %v559 = vld [vmem:[#allocation5 + $0x388] sm:$0xff]
    %v560 = vld [vmem:[#allocation5 + $0x390] sm:$0xff]
    %v561 = vld [vmem:[#allocation5 + $0x398] sm:$0xff]
    %v562 = vld [vmem:[#allocation5 + $0x3a0] sm:$0xff]
    %v563 = vld [vmem:[#allocation5 + $0x3a8] sm:$0xff]
    %v564 = vld [vmem:[#allocation5 + $0x3b0] sm:$0xff]
    %v565 = vld [vmem:[#allocation5 + $0x3b8] sm:$0xff]
    %v566 = vld [vmem:[#allocation5 + $0x3c0] sm:$0xff]
    %v567 = vld [vmem:[#allocation5 + $0x3c8] sm:$0xff]
    %v568 = vld [vmem:[#allocation5 + $0x3d0] sm:$0xff]
    %v569 = vld [vmem:[#allocation5 + $0x3d8] sm:$0xff]
    %v570 = vld [vmem:[#allocation5 + $0x3e0] sm:$0xff]
    %v571 = vld [vmem:[#allocation5 + $0x3e8] sm:$0xff]
    %v572 = vld [vmem:[#allocation5 + $0x3f0] sm:$0xff]
    %v573 = vld [vmem:[#allocation5 + $0x3f8] sm:$0xff]
    %v574 = vlaneseq
    %v575 = vshrl.u32 %v574, 7
    %v576 = vsub.s32 1, %v575
    %v577 = vrot.slane %v185, %v576
    %v578 = vlaneseq
    %v579 = vshrl.u32 %v578, 7
    %v580 = vsub.s32 5, %v579
    %v581 = vrot.slane %v185, %v580
    %v582 = vlaneseq
    %v583 = vshrl.u32 %v582, 7
    %v584 = vsub.s32 1, %v583
    %v585 = vrot.slane %v186, %v584
    %v586 = vlaneseq
    %v587 = vshrl.u32 %v586, 7
    %v588 = vsub.s32 5, %v587
    %v589 = vrot.slane %v186, %v588
    %v594 = vlaneseq
    %v595 = vshrl.u32 %v594, 7
    %v596 = vsub.s32 1, %v595
    %v597 = vrot.slane %v577, %v596
    %v598 = vlaneseq
    %v599 = vshrl.u32 %v598, 7
    %v600 = vsub.s32 1, %v599
    %v601 = vrot.slane %v581, %v600
    %v602 = vlaneseq
    %v603 = vshrl.u32 %v602, 7
    %v604 = vsub.s32 1, %v603
    %v605 = vrot.slane %v585, %v604
    %v606 = vlaneseq
    %v607 = vshrl.u32 %v606, 7
    %v608 = vsub.s32 1, %v607
    %v609 = vrot.slane %v589, %v608
    %v738 = vunpack.c.l.b16 %v446
    %v739 = vunpack.c.h.b16 %v446
    %v740 = vunpack.c.l.b16 %v447
    %v741 = vunpack.c.h.b16 %v447
    %v742 = vunpack.c.l.b16 %v448
    %v743 = vunpack.c.h.b16 %v448
    %v744 = vunpack.c.l.b16 %v449
    %v745 = vunpack.c.h.b16 %v449
    %v746 = vunpack.c.l.b16 %v450
    %v747 = vunpack.c.h.b16 %v450
    %v748 = vunpack.c.l.b16 %v451
    %v749 = vunpack.c.h.b16 %v451
    %v750 = vunpack.c.l.b16 %v452
    %v751 = vunpack.c.h.b16 %v452
    %v752 = vunpack.c.l.b16 %v453
    %v753 = vunpack.c.h.b16 %v453
    %v754 = vunpack.c.l.b16 %v454
    %v755 = vunpack.c.h.b16 %v454
    %v756 = vunpack.c.l.b16 %v455
    %v757 = vunpack.c.h.b16 %v455
    %v758 = vunpack.c.l.b16 %v456
    %v759 = vunpack.c.h.b16 %v456
    %v760 = vunpack.c.l.b16 %v457
    %v761 = vunpack.c.h.b16 %v457
    %v762 = vunpack.c.l.b16 %v458
    %v763 = vunpack.c.h.b16 %v458
    %v764 = vunpack.c.l.b16 %v459
    %v765 = vunpack.c.h.b16 %v459
    %v766 = vunpack.c.l.b16 %v460
    %v767 = vunpack.c.h.b16 %v460
    %v768 = vunpack.c.l.b16 %v461
    %v769 = vunpack.c.h.b16 %v461
    %v770 = vunpack.c.l.b16 %v462
    %v771 = vunpack.c.h.b16 %v462
    %v772 = vunpack.c.l.b16 %v463
    %v773 = vunpack.c.h.b16 %v463
    %v774 = vunpack.c.l.b16 %v464
    %v775 = vunpack.c.h.b16 %v464
    %v776 = vunpack.c.l.b16 %v465
    %v777 = vunpack.c.h.b16 %v465
    %v778 = vunpack.c.l.b16 %v466
    %v779 = vunpack.c.h.b16 %v466
    %v780 = vunpack.c.l.b16 %v467
    %v781 = vunpack.c.h.b16 %v467
    %v782 = vunpack.c.l.b16 %v468
    %v783 = vunpack.c.h.b16 %v468
    %v784 = vunpack.c.l.b16 %v469
    %v785 = vunpack.c.h.b16 %v469
    %v786 = vunpack.c.l.b16 %v470
    %v787 = vunpack.c.h.b16 %v470
    %v788 = vunpack.c.l.b16 %v471
    %v789 = vunpack.c.h.b16 %v471
    %v790 = vunpack.c.l.b16 %v472
    %v791 = vunpack.c.h.b16 %v472
    %v792 = vunpack.c.l.b16 %v473
    %v793 = vunpack.c.h.b16 %v473
    %v794 = vunpack.c.l.b16 %v474
    %v795 = vunpack.c.h.b16 %v474
    %v796 = vunpack.c.l.b16 %v475
    %v797 = vunpack.c.h.b16 %v475
    %v798 = vunpack.c.l.b16 %v476
    %v799 = vunpack.c.h.b16 %v476
    %v800 = vunpack.c.l.b16 %v477
    %v801 = vunpack.c.h.b16 %v477
    %v802 = vunpack.c.l.b16 %v478
    %v803 = vunpack.c.h.b16 %v478
    %v804 = vunpack.c.l.b16 %v479
    %v805 = vunpack.c.h.b16 %v479
    %v806 = vunpack.c.l.b16 %v480
    %v807 = vunpack.c.h.b16 %v480
    %v808 = vunpack.c.l.b16 %v481
    %v809 = vunpack.c.h.b16 %v481
    %v810 = vunpack.c.l.b16 %v482
    %v811 = vunpack.c.h.b16 %v482
    %v812 = vunpack.c.l.b16 %v483
    %v813 = vunpack.c.h.b16 %v483
    %v814 = vunpack.c.l.b16 %v484
    %v815 = vunpack.c.h.b16 %v484
    %v816 = vunpack.c.l.b16 %v485
    %v817 = vunpack.c.h.b16 %v485
    %v818 = vunpack.c.l.b16 %v486
    %v819 = vunpack.c.h.b16 %v486
    %v820 = vunpack.c.l.b16 %v487
    %v821 = vunpack.c.h.b16 %v487
    %v822 = vunpack.c.l.b16 %v488
    %v823 = vunpack.c.h.b16 %v488
    %v824 = vunpack.c.l.b16 %v489
    %v825 = vunpack.c.h.b16 %v489
    %v826 = vunpack.c.l.b16 %v490
    %v827 = vunpack.c.h.b16 %v490
    %v828 = vunpack.c.l.b16 %v491
    %v829 = vunpack.c.h.b16 %v491
    %v830 = vunpack.c.l.b16 %v492
    %v831 = vunpack.c.h.b16 %v492
    %v832 = vunpack.c.l.b16 %v493
    %v833 = vunpack.c.h.b16 %v493
    %v834 = vunpack.c.l.b16 %v494
    %v835 = vunpack.c.h.b16 %v494
    %v836 = vunpack.c.l.b16 %v495
    %v837 = vunpack.c.h.b16 %v495
    %v838 = vunpack.c.l.b16 %v496
    %v839 = vunpack.c.h.b16 %v496
    %v840 = vunpack.c.l.b16 %v497
    %v841 = vunpack.c.h.b16 %v497
    %v842 = vunpack.c.l.b16 %v498
    %v843 = vunpack.c.h.b16 %v498
    %v844 = vunpack.c.l.b16 %v499
    %v845 = vunpack.c.h.b16 %v499
    %v846 = vunpack.c.l.b16 %v500
    %v847 = vunpack.c.h.b16 %v500
    %v848 = vunpack.c.l.b16 %v501
    %v849 = vunpack.c.h.b16 %v501
    %v850 = vunpack.c.l.b16 %v502
    %v851 = vunpack.c.h.b16 %v502
    %v852 = vunpack.c.l.b16 %v503
    %v853 = vunpack.c.h.b16 %v503
    %v854 = vunpack.c.l.b16 %v504
    %v855 = vunpack.c.h.b16 %v504
    %v856 = vunpack.c.l.b16 %v505
    %v857 = vunpack.c.h.b16 %v505
    %v858 = vunpack.c.l.b16 %v506
    %v859 = vunpack.c.h.b16 %v506
    %v860 = vunpack.c.l.b16 %v507
    %v861 = vunpack.c.h.b16 %v507
    %v862 = vunpack.c.l.b16 %v508
    %v863 = vunpack.c.h.b16 %v508
    %v864 = vunpack.c.l.b16 %v509
    %v865 = vunpack.c.h.b16 %v509
    %v866 = vunpack.c.l.b16 %v510
    %v867 = vunpack.c.h.b16 %v510
    %v868 = vunpack.c.l.b16 %v511
    %v869 = vunpack.c.h.b16 %v511
    %v870 = vunpack.c.l.b16 %v512
    %v871 = vunpack.c.h.b16 %v512
    %v872 = vunpack.c.l.b16 %v513
    %v873 = vunpack.c.h.b16 %v513
    %v874 = vunpack.c.l.b16 %v514
    %v875 = vunpack.c.h.b16 %v514
    %v876 = vunpack.c.l.b16 %v515
    %v877 = vunpack.c.h.b16 %v515
    %v878 = vunpack.c.l.b16 %v516
    %v879 = vunpack.c.h.b16 %v516
    %v880 = vunpack.c.l.b16 %v517
    %v881 = vunpack.c.h.b16 %v517
    %v882 = vunpack.c.l.b16 %v518
    %v883 = vunpack.c.h.b16 %v518
    %v884 = vunpack.c.l.b16 %v519
    %v885 = vunpack.c.h.b16 %v519
    %v886 = vunpack.c.l.b16 %v520
    %v887 = vunpack.c.h.b16 %v520
    %v888 = vunpack.c.l.b16 %v521
    %v889 = vunpack.c.h.b16 %v521
    %v890 = vunpack.c.l.b16 %v522
    %v891 = vunpack.c.h.b16 %v522
    %v892 = vunpack.c.l.b16 %v523
    %v893 = vunpack.c.h.b16 %v523
    %v894 = vunpack.c.l.b16 %v524
    %v895 = vunpack.c.h.b16 %v524
    %v896 = vunpack.c.l.b16 %v525
    %v897 = vunpack.c.h.b16 %v525
    %v898 = vunpack.c.l.b16 %v526
    %v899 = vunpack.c.h.b16 %v526
    %v900 = vunpack.c.l.b16 %v527
    %v901 = vunpack.c.h.b16 %v527
    %v902 = vunpack.c.l.b16 %v528
    %v903 = vunpack.c.h.b16 %v528
    %v904 = vunpack.c.l.b16 %v529
    %v905 = vunpack.c.h.b16 %v529
    %v906 = vunpack.c.l.b16 %v530
    %v907 = vunpack.c.h.b16 %v530
    %v908 = vunpack.c.l.b16 %v531
    %v909 = vunpack.c.h.b16 %v531
    %v910 = vunpack.c.l.b16 %v532
    %v911 = vunpack.c.h.b16 %v532
    %v912 = vunpack.c.l.b16 %v533
    %v913 = vunpack.c.h.b16 %v533
    %v914 = vunpack.c.l.b16 %v534
    %v915 = vunpack.c.h.b16 %v534
    %v916 = vunpack.c.l.b16 %v535
    %v917 = vunpack.c.h.b16 %v535
    %v918 = vunpack.c.l.b16 %v536
    %v919 = vunpack.c.h.b16 %v536
    %v920 = vunpack.c.l.b16 %v537
    %v921 = vunpack.c.h.b16 %v537
    %v922 = vunpack.c.l.b16 %v538
    %v923 = vunpack.c.h.b16 %v538
    %v924 = vunpack.c.l.b16 %v539
    %v925 = vunpack.c.h.b16 %v539
    %v926 = vunpack.c.l.b16 %v540
    %v927 = vunpack.c.h.b16 %v540
    %v928 = vunpack.c.l.b16 %v541
    %v929 = vunpack.c.h.b16 %v541
    %v930 = vunpack.c.l.b16 %v542
    %v931 = vunpack.c.h.b16 %v542
    %v932 = vunpack.c.l.b16 %v543
    %v933 = vunpack.c.h.b16 %v543
    %v934 = vunpack.c.l.b16 %v544
    %v935 = vunpack.c.h.b16 %v544
    %v936 = vunpack.c.l.b16 %v545
    %v937 = vunpack.c.h.b16 %v545
    %v938 = vunpack.c.l.b16 %v546
    %v939 = vunpack.c.h.b16 %v546
    %v940 = vunpack.c.l.b16 %v547
    %v941 = vunpack.c.h.b16 %v547
    %v942 = vunpack.c.l.b16 %v548
    %v943 = vunpack.c.h.b16 %v548
    %v944 = vunpack.c.l.b16 %v549
    %v945 = vunpack.c.h.b16 %v549
    %v946 = vunpack.c.l.b16 %v550
    %v947 = vunpack.c.h.b16 %v550
    %v948 = vunpack.c.l.b16 %v551
    %v949 = vunpack.c.h.b16 %v551
    %v950 = vunpack.c.l.b16 %v552
    %v951 = vunpack.c.h.b16 %v552
    %v952 = vunpack.c.l.b16 %v553
    %v953 = vunpack.c.h.b16 %v553
    %v954 = vunpack.c.l.b16 %v554
    %v955 = vunpack.c.h.b16 %v554
    %v956 = vunpack.c.l.b16 %v555
    %v957 = vunpack.c.h.b16 %v555
    %v958 = vunpack.c.l.b16 %v556
    %v959 = vunpack.c.h.b16 %v556
    %v960 = vunpack.c.l.b16 %v557
    %v961 = vunpack.c.h.b16 %v557
    %v962 = vunpack.c.l.b16 %v558
    %v963 = vunpack.c.h.b16 %v558
    %v964 = vunpack.c.l.b16 %v559
    %v965 = vunpack.c.h.b16 %v559
    %v966 = vunpack.c.l.b16 %v560
    %v967 = vunpack.c.h.b16 %v560
    %v968 = vunpack.c.l.b16 %v561
    %v969 = vunpack.c.h.b16 %v561
    %v970 = vunpack.c.l.b16 %v562
    %v971 = vunpack.c.h.b16 %v562
    %v972 = vunpack.c.l.b16 %v563
    %v973 = vunpack.c.h.b16 %v563
    %v974 = vunpack.c.l.b16 %v564
    %v975 = vunpack.c.h.b16 %v564
    %v976 = vunpack.c.l.b16 %v565
    %v977 = vunpack.c.h.b16 %v565
    %v978 = vunpack.c.l.b16 %v566
    %v979 = vunpack.c.h.b16 %v566
    %v980 = vunpack.c.l.b16 %v567
    %v981 = vunpack.c.h.b16 %v567
    %v982 = vunpack.c.l.b16 %v568
    %v983 = vunpack.c.h.b16 %v568
    %v984 = vunpack.c.l.b16 %v569
    %v985 = vunpack.c.h.b16 %v569
    %v986 = vunpack.c.l.b16 %v570
    %v987 = vunpack.c.h.b16 %v570
    %v988 = vunpack.c.l.b16 %v571
    %v989 = vunpack.c.h.b16 %v571
    %v990 = vunpack.c.l.b16 %v572
    %v991 = vunpack.c.h.b16 %v572
    %v992 = vunpack.c.l.b16 %v573
    %v993 = vunpack.c.h.b16 %v573
    %v994 = vpack.c.b16 %v742, %v738
    %v995 = vpack.c.b16 %v743, %v739
    %v996 = vpack.c.b16 %v744, %v740
    %v997 = vpack.c.b16 %v745, %v741
    %v998 = vpack.c.b16 %v750, %v746
    %v999 = vpack.c.b16 %v751, %v747
    %v1000 = vpack.c.b16 %v752, %v748
    %v1001 = vpack.c.b16 %v753, %v749
    %v1002 = vpack.c.b16 %v758, %v754
    %v1003 = vpack.c.b16 %v759, %v755
    %v1004 = vpack.c.b16 %v760, %v756
    %v1005 = vpack.c.b16 %v761, %v757
    %v1006 = vpack.c.b16 %v766, %v762
    %v1007 = vpack.c.b16 %v767, %v763
    %v1008 = vpack.c.b16 %v768, %v764
    %v1009 = vpack.c.b16 %v769, %v765
    %v1010 = vpack.c.b16 %v774, %v770
    %v1011 = vpack.c.b16 %v775, %v771
    %v1012 = vpack.c.b16 %v776, %v772
    %v1013 = vpack.c.b16 %v777, %v773
    %v1014 = vpack.c.b16 %v782, %v778
    %v1015 = vpack.c.b16 %v783, %v779
    %v1016 = vpack.c.b16 %v784, %v780
    %v1017 = vpack.c.b16 %v785, %v781
    %v1018 = vpack.c.b16 %v790, %v786
    %v1019 = vpack.c.b16 %v791, %v787
    %v1020 = vpack.c.b16 %v792, %v788
    %v1021 = vpack.c.b16 %v793, %v789
    %v1022 = vpack.c.b16 %v798, %v794
    %v1023 = vpack.c.b16 %v799, %v795
    %v1024 = vpack.c.b16 %v800, %v796
    %v1025 = vpack.c.b16 %v801, %v797
    %v1026 = vpack.c.b16 %v806, %v802
    %v1027 = vpack.c.b16 %v807, %v803
    %v1028 = vpack.c.b16 %v808, %v804
    %v1029 = vpack.c.b16 %v809, %v805
    %v1030 = vpack.c.b16 %v814, %v810
    %v1031 = vpack.c.b16 %v815, %v811
    %v1032 = vpack.c.b16 %v816, %v812
    %v1033 = vpack.c.b16 %v817, %v813
    %v1034 = vpack.c.b16 %v822, %v818
    %v1035 = vpack.c.b16 %v823, %v819
    %v1036 = vpack.c.b16 %v824, %v820
    %v1037 = vpack.c.b16 %v825, %v821
    %v1038 = vpack.c.b16 %v830, %v826
    %v1039 = vpack.c.b16 %v831, %v827
    %v1040 = vpack.c.b16 %v832, %v828
    %v1041 = vpack.c.b16 %v833, %v829
    %v1042 = vpack.c.b16 %v838, %v834
    %v1043 = vpack.c.b16 %v839, %v835
    %v1044 = vpack.c.b16 %v840, %v836
    %v1045 = vpack.c.b16 %v841, %v837
    %v1046 = vpack.c.b16 %v846, %v842
    %v1047 = vpack.c.b16 %v847, %v843
    %v1048 = vpack.c.b16 %v848, %v844
    %v1049 = vpack.c.b16 %v849, %v845
    %v1050 = vpack.c.b16 %v854, %v850
    %v1051 = vpack.c.b16 %v855, %v851
    %v1052 = vpack.c.b16 %v856, %v852
    %v1053 = vpack.c.b16 %v857, %v853
    %v1054 = vpack.c.b16 %v862, %v858
    %v1055 = vpack.c.b16 %v863, %v859
    %v1056 = vpack.c.b16 %v864, %v860
    %v1057 = vpack.c.b16 %v865, %v861
    %v1058 = vpack.c.b16 %v870, %v866
    %v1059 = vpack.c.b16 %v871, %v867
    %v1060 = vpack.c.b16 %v872, %v868
    %v1061 = vpack.c.b16 %v873, %v869
    %v1062 = vpack.c.b16 %v878, %v874
    %v1063 = vpack.c.b16 %v879, %v875
    %v1064 = vpack.c.b16 %v880, %v876
    %v1065 = vpack.c.b16 %v881, %v877
    %v1066 = vpack.c.b16 %v886, %v882
    %v1067 = vpack.c.b16 %v887, %v883
    %v1068 = vpack.c.b16 %v888, %v884
    %v1069 = vpack.c.b16 %v889, %v885
    %v1070 = vpack.c.b16 %v894, %v890
    %v1071 = vpack.c.b16 %v895, %v891
    %v1072 = vpack.c.b16 %v896, %v892
    %v1073 = vpack.c.b16 %v897, %v893
    %v1074 = vpack.c.b16 %v902, %v898
    %v1075 = vpack.c.b16 %v903, %v899
    %v1076 = vpack.c.b16 %v904, %v900
    %v1077 = vpack.c.b16 %v905, %v901
    %v1078 = vpack.c.b16 %v910, %v906
    %v1079 = vpack.c.b16 %v911, %v907
    %v1080 = vpack.c.b16 %v912, %v908
    %v1081 = vpack.c.b16 %v913, %v909
    %v1082 = vpack.c.b16 %v918, %v914
    %v1083 = vpack.c.b16 %v919, %v915
    %v1084 = vpack.c.b16 %v920, %v916
    %v1085 = vpack.c.b16 %v921, %v917
    %v1086 = vpack.c.b16 %v926, %v922
    %v1087 = vpack.c.b16 %v927, %v923
    %v1088 = vpack.c.b16 %v928, %v924
    %v1089 = vpack.c.b16 %v929, %v925
    %v1090 = vpack.c.b16 %v934, %v930
    %v1091 = vpack.c.b16 %v935, %v931
    %v1092 = vpack.c.b16 %v936, %v932
    %v1093 = vpack.c.b16 %v937, %v933
    %v1094 = vpack.c.b16 %v942, %v938
    %v1095 = vpack.c.b16 %v943, %v939
    %v1096 = vpack.c.b16 %v944, %v940
    %v1097 = vpack.c.b16 %v945, %v941
    %v1098 = vpack.c.b16 %v950, %v946
    %v1099 = vpack.c.b16 %v951, %v947
    %v1100 = vpack.c.b16 %v952, %v948
    %v1101 = vpack.c.b16 %v953, %v949
    %v1102 = vpack.c.b16 %v958, %v954
    %v1103 = vpack.c.b16 %v959, %v955
    %v1104 = vpack.c.b16 %v960, %v956
    %v1105 = vpack.c.b16 %v961, %v957
    %v1106 = vpack.c.b16 %v966, %v962
    %v1107 = vpack.c.b16 %v967, %v963
    %v1108 = vpack.c.b16 %v968, %v964
    %v1109 = vpack.c.b16 %v969, %v965
    %v1110 = vpack.c.b16 %v974, %v970
    %v1111 = vpack.c.b16 %v975, %v971
    %v1112 = vpack.c.b16 %v976, %v972
    %v1113 = vpack.c.b16 %v977, %v973
    %v1114 = vpack.c.b16 %v982, %v978
    %v1115 = vpack.c.b16 %v983, %v979
    %v1116 = vpack.c.b16 %v984, %v980
    %v1117 = vpack.c.b16 %v985, %v981
    %v1118 = vpack.c.b16 %v990, %v986
    %v1119 = vpack.c.b16 %v991, %v987
    %v1120 = vpack.c.b16 %v992, %v988
    %v1121 = vpack.c.b16 %v993, %v989
    %1250 = vmatprep.subr.bf16.mxu0 %v995
    %1251 = vmatpush1.bf16.msra.mxu0 %v994
    %1252 = vmatprep.subr.bf16.mxu0 %v999
    %1253 = vmatpush1.bf16.msra.mxu0 %v998
    %1254 = vmatprep.subr.bf16.mxu0 %v1003
    %1255 = vmatpush1.bf16.msra.mxu0 %v1002
    %1256 = vmatprep.subr.bf16.mxu0 %v1007
    %1257 = vmatpush1.bf16.msra.mxu0 %v1006
    %1258 = vmatprep.subr.bf16.mxu0 %v1011
    %1259 = vmatpush1.bf16.msra.mxu0 %v1010
    %1260 = vmatprep.subr.bf16.mxu0 %v1015
    %1261 = vmatpush1.bf16.msra.mxu0 %v1014
    %1262 = vmatprep.subr.bf16.mxu0 %v1019
    %1263 = vmatpush1.bf16.msra.mxu0 %v1018
    %1264 = vmatprep.subr.bf16.mxu0 %v1023
    %1265 = vmatpush1.bf16.msra.mxu0 %v1022
    %1266 = vmatprep.subr.bf16.mxu0 %v1027
    %1267 = vmatpush1.bf16.msra.mxu0 %v1026
    %1268 = vmatprep.subr.bf16.mxu0 %v1031
    %1269 = vmatpush1.bf16.msra.mxu0 %v1030
    %1270 = vmatprep.subr.bf16.mxu0 %v1035
    %1271 = vmatpush1.bf16.msra.mxu0 %v1034
    %1272 = vmatprep.subr.bf16.mxu0 %v1039
    %1273 = vmatpush1.bf16.msra.mxu0 %v1038
    %1274 = vmatprep.subr.bf16.mxu0 %v1043
    %1275 = vmatpush1.bf16.msra.mxu0 %v1042
    %1276 = vmatprep.subr.bf16.mxu0 %v1047
    %1277 = vmatpush1.bf16.msra.mxu0 %v1046
    %1278 = vmatprep.subr.bf16.mxu0 %v1051
    %1279 = vmatpush1.bf16.msra.mxu0 %v1050
    %1280 = vmatprep.subr.bf16.mxu0 %v1055
    %1281 = vmatpush1.bf16.msra.mxu0 %v1054
    %1282 = vmatprep.mubr.bf16.mxu0 %v443
    %1283 = vmatmul.mubr.bf16.gmra.mrb[0].mxu0 %v442
    %v1284 = vpop.f32.mrb[0].mxu0
    %v1285 = vadd.f32 %v597, %v1284
    %v1286 = vpop.f32.mrb[0].mxu0
    %v1287 = vadd.f32 %v601, %v1286
    %v1288 = vpop.f32.mrb[0].mxu0
    %v1289 = vadd.f32 %v597, %v1288
    %v1290 = vpop.f32.mrb[0].mxu0
    %v1291 = vadd.f32 %v601, %v1290
    %1292 = vdwg.mxu0
    %1293 = vmatprep.subr.bf16.mxu0 %v1059
    %1294 = vmatpush1.bf16.msra.mxu0 %v1058
    %1295 = vmatprep.subr.bf16.mxu0 %v1063
    %1296 = vmatpush1.bf16.msra.mxu0 %v1062
    %1297 = vmatprep.subr.bf16.mxu0 %v1067
    %1298 = vmatpush1.bf16.msra.mxu0 %v1066
    %1299 = vmatprep.subr.bf16.mxu0 %v1071
    %1300 = vmatpush1.bf16.msra.mxu0 %v1070
    %1301 = vmatprep.subr.bf16.mxu0 %v1075
    %1302 = vmatpush1.bf16.msra.mxu0 %v1074
    %1303 = vmatprep.subr.bf16.mxu0 %v1079
    %1304 = vmatpush1.bf16.msra.mxu0 %v1078
    %1305 = vmatprep.subr.bf16.mxu0 %v1083
    %1306 = vmatpush1.bf16.msra.mxu0 %v1082
    %1307 = vmatprep.subr.bf16.mxu0 %v1087
    %1308 = vmatpush1.bf16.msra.mxu0 %v1086
    %1309 = vmatprep.subr.bf16.mxu0 %v1091
    %1310 = vmatpush1.bf16.msra.mxu0 %v1090
    %1311 = vmatprep.subr.bf16.mxu0 %v1095
    %1312 = vmatpush1.bf16.msra.mxu0 %v1094
    %1313 = vmatprep.subr.bf16.mxu0 %v1099
    %1314 = vmatpush1.bf16.msra.mxu0 %v1098
    %1315 = vmatprep.subr.bf16.mxu0 %v1103
    %1316 = vmatpush1.bf16.msra.mxu0 %v1102
    %1317 = vmatprep.subr.bf16.mxu0 %v1107
    %1318 = vmatpush1.bf16.msra.mxu0 %v1106
    %1319 = vmatprep.subr.bf16.mxu0 %v1111
    %1320 = vmatpush1.bf16.msra.mxu0 %v1110
    %1321 = vmatprep.subr.bf16.mxu0 %v1115
    %1322 = vmatpush1.bf16.msra.mxu0 %v1114
    %1323 = vmatprep.subr.bf16.mxu0 %v1119
    %1324 = vmatpush1.bf16.msra.mxu0 %v1118
    %1325 = vmatprep.mubr.bf16.mxu0 %v445
    %1326 = vmatmul.mubr.bf16.gmra.mrb[0].mxu0 %v444
    %v1327 = vpop.f32.mrb[0].mxu0
    %v1328 = vadd.f32 %v1285, %v1327
    %v1329 = vpop.f32.mrb[0].mxu0
    %v1330 = vadd.f32 %v1287, %v1329
    %v1331 = vpop.f32.mrb[0].mxu0
    %v1332 = vadd.f32 %v1289, %v1331
    %v1333 = vpop.f32.mrb[0].mxu0
    %v1334 = vadd.f32 %v1291, %v1333
    %1335 = vdwg.mxu0
    %1336 = vmatprep.subr.bf16.mxu0 %v997
    %1337 = vmatpush1.bf16.msra.mxu0 %v996
    %1338 = vmatprep.subr.bf16.mxu0 %v1001
    %1339 = vmatpush1.bf16.msra.mxu0 %v1000
    %1340 = vmatprep.subr.bf16.mxu0 %v1005
    %1341 = vmatpush1.bf16.msra.mxu0 %v1004
    %1342 = vmatprep.subr.bf16.mxu0 %v1009
    %1343 = vmatpush1.bf16.msra.mxu0 %v1008
    %1344 = vmatprep.subr.bf16.mxu0 %v1013
    %1345 = vmatpush1.bf16.msra.mxu0 %v1012
    %1346 = vmatprep.subr.bf16.mxu0 %v1017
    %1347 = vmatpush1.bf16.msra.mxu0 %v1016
    %1348 = vmatprep.subr.bf16.mxu0 %v1021
    %1349 = vmatpush1.bf16.msra.mxu0 %v1020
    %1350 = vmatprep.subr.bf16.mxu0 %v1025
    %1351 = vmatpush1.bf16.msra.mxu0 %v1024
    %1352 = vmatprep.subr.bf16.mxu0 %v1029
    %1353 = vmatpush1.bf16.msra.mxu0 %v1028
    %1354 = vmatprep.subr.bf16.mxu0 %v1033
    %1355 = vmatpush1.bf16.msra.mxu0 %v1032
    %1356 = vmatprep.subr.bf16.mxu0 %v1037
    %1357 = vmatpush1.bf16.msra.mxu0 %v1036
    %1358 = vmatprep.subr.bf16.mxu0 %v1041
    %1359 = vmatpush1.bf16.msra.mxu0 %v1040
    %1360 = vmatprep.subr.bf16.mxu0 %v1045
    %1361 = vmatpush1.bf16.msra.mxu0 %v1044
    %1362 = vmatprep.subr.bf16.mxu0 %v1049
    %1363 = vmatpush1.bf16.msra.mxu0 %v1048
    %1364 = vmatprep.subr.bf16.mxu0 %v1053
    %1365 = vmatpush1.bf16.msra.mxu0 %v1052
    %1366 = vmatprep.subr.bf16.mxu0 %v1057
    %1367 = vmatpush1.bf16.msra.mxu0 %v1056
    %1368 = vmatprep.mubr.bf16.mxu0 %v443
    %1369 = vmatmul.mubr.bf16.gmra.mrb[0].mxu0 %v442
    %v1370 = vpop.f32.mrb[0].mxu0
    %v1371 = vadd.f32 %v605, %v1370
    %v1372 = vpop.f32.mrb[0].mxu0
    %v1373 = vadd.f32 %v609, %v1372
    %v1374 = vpop.f32.mrb[0].mxu0
    %v1375 = vadd.f32 %v605, %v1374
    %v1376 = vpop.f32.mrb[0].mxu0
    %v1377 = vadd.f32 %v609, %v1376
    %1378 = vdwg.mxu0
    %1379 = vmatprep.subr.bf16.mxu0 %v1061
    %1380 = vmatpush1.bf16.msra.mxu0 %v1060
    %1381 = vmatprep.subr.bf16.mxu0 %v1065
    %1382 = vmatpush1.bf16.msra.mxu0 %v1064
    %1383 = vmatprep.subr.bf16.mxu0 %v1069
    %1384 = vmatpush1.bf16.msra.mxu0 %v1068
    %1385 = vmatprep.subr.bf16.mxu0 %v1073
    %1386 = vmatpush1.bf16.msra.mxu0 %v1072
    %1387 = vmatprep.subr.bf16.mxu0 %v1077
    %1388 = vmatpush1.bf16.msra.mxu0 %v1076
    %1389 = vmatprep.subr.bf16.mxu0 %v1081
    %1390 = vmatpush1.bf16.msra.mxu0 %v1080
    %1391 = vmatprep.subr.bf16.mxu0 %v1085
    %1392 = vmatpush1.bf16.msra.mxu0 %v1084
    %1393 = vmatprep.subr.bf16.mxu0 %v1089
    %1394 = vmatpush1.bf16.msra.mxu0 %v1088
    %1395 = vmatprep.subr.bf16.mxu0 %v1093
    %1396 = vmatpush1.bf16.msra.mxu0 %v1092
    %1397 = vmatprep.subr.bf16.mxu0 %v1097
    %1398 = vmatpush1.bf16.msra.mxu0 %v1096
    %1399 = vmatprep.subr.bf16.mxu0 %v1101
    %1400 = vmatpush1.bf16.msra.mxu0 %v1100
    %1401 = vmatprep.subr.bf16.mxu0 %v1105
    %1402 = vmatpush1.bf16.msra.mxu0 %v1104
    %1403 = vmatprep.subr.bf16.mxu0 %v1109
    %1404 = vmatpush1.bf16.msra.mxu0 %v1108
    %1405 = vmatprep.subr.bf16.mxu0 %v1113
    %1406 = vmatpush1.bf16.msra.mxu0 %v1112
    %1407 = vmatprep.subr.bf16.mxu0 %v1117
    %1408 = vmatpush1.bf16.msra.mxu0 %v1116
    %1409 = vmatprep.subr.bf16.mxu0 %v1121
    %1410 = vmatpush1.bf16.msra.mxu0 %v1120
    %1411 = vmatprep.mubr.bf16.mxu0 %v445
    %1412 = vmatmul.mubr.bf16.gmra.mrb[0].mxu0 %v444
    %v1413 = vpop.f32.mrb[0].mxu0
    %v1414 = vadd.f32 %v1371, %v1413
    %v1415 = vpop.f32.mrb[0].mxu0
    %v1416 = vadd.f32 %v1373, %v1415
    %v1417 = vpop.f32.mrb[0].mxu0
    %v1418 = vadd.f32 %v1375, %v1417
    %v1419 = vpop.f32.mrb[0].mxu0
    %v1420 = vadd.f32 %v1377, %v1419
    %1421 = vdwg.mxu0
    %vm1422 = vcmp.gt.f32.partialorder %v1328, 0.0
    %vm1423 = vcmp.gt.f32.partialorder %v1330, 0.0
    %vm1424 = vcmp.gt.f32.partialorder %v1414, 0.0
    %vm1425 = vcmp.gt.f32.partialorder %v1416, 0.0
    %vm1426 = vcmp.gt.f32.partialorder %v1332, 0.0
    %vm1427 = vcmp.gt.f32.partialorder %v1334, 0.0
    %vm1428 = vcmp.gt.f32.partialorder %v1418, 0.0
    %vm1429 = vcmp.gt.f32.partialorder %v1420, 0.0
    %v1430 = vmul.f32 %v1328, 0.01
    %v1431 = vmul.f32 %v1330, 0.01
    %v1432 = vmul.f32 %v1414, 0.01
    %v1433 = vmul.f32 %v1416, 0.01
    %v1434 = vmul.f32 %v1332, 0.01
    %v1435 = vmul.f32 %v1334, 0.01
    %v1436 = vmul.f32 %v1418, 0.01
    %v1437 = vmul.f32 %v1420, 0.01
    %v1438 = vsel %vm1422, %v1328, %v1430
    %v1439 = vsel %vm1423, %v1330, %v1431
    %v1440 = vsel %vm1424, %v1414, %v1432
    %v1441 = vsel %vm1425, %v1416, %v1433
    %v1442 = vsel %vm1426, %v1332, %v1434
    %v1443 = vsel %vm1427, %v1334, %v1435
    %v1444 = vsel %vm1428, %v1418, %v1436
    %v1445 = vsel %vm1429, %v1420, %v1437
    %v1446 = vpack.c.bf16 %v1442, %v1438
    %v1447 = vpack.c.bf16 %v1443, %v1439
    %v1448 = vpack.c.bf16 %v1444, %v1440
    %v1449 = vpack.c.bf16 %v1445, %v1441
    %v1450 = vld [vmem:[#allocation7] sm:$0xff]
    %v1451 = vld [vmem:[#allocation7 + $0x8] sm:$0xff]
    %v1452 = vld [vmem:[#allocation7 + $0x10] sm:$0xff]
    %v1453 = vld [vmem:[#allocation7 + $0x18] sm:$0xff]
    %v1454 = vld [vmem:[#allocation7 + $0x20] sm:$0xff]
    %v1455 = vld [vmem:[#allocation7 + $0x28] sm:$0xff]
    %v1456 = vld [vmem:[#allocation7 + $0x30] sm:$0xff]
    %v1457 = vld [vmem:[#allocation7 + $0x38] sm:$0xff]
    %v1458 = vld [vmem:[#allocation7 + $0x40] sm:$0xff]
    %v1459 = vld [vmem:[#allocation7 + $0x48] sm:$0xff]
    %v1460 = vld [vmem:[#allocation7 + $0x50] sm:$0xff]
    %v1461 = vld [vmem:[#allocation7 + $0x58] sm:$0xff]
    %v1462 = vld [vmem:[#allocation7 + $0x60] sm:$0xff]
    %v1463 = vld [vmem:[#allocation7 + $0x68] sm:$0xff]
    %v1464 = vld [vmem:[#allocation7 + $0x70] sm:$0xff]
    %v1465 = vld [vmem:[#allocation7 + $0x78] sm:$0xff]
    %v1466 = vld [vmem:[#allocation7 + $0x80] sm:$0xff]
    %v1467 = vld [vmem:[#allocation7 + $0x88] sm:$0xff]
    %v1468 = vld [vmem:[#allocation7 + $0x90] sm:$0xff]
    %v1469 = vld [vmem:[#allocation7 + $0x98] sm:$0xff]
    %v1470 = vld [vmem:[#allocation7 + $0xa0] sm:$0xff]
    %v1471 = vld [vmem:[#allocation7 + $0xa8] sm:$0xff]
    %v1472 = vld [vmem:[#allocation7 + $0xb0] sm:$0xff]
    %v1473 = vld [vmem:[#allocation7 + $0xb8] sm:$0xff]
    %v1474 = vld [vmem:[#allocation7 + $0xc0] sm:$0xff]
    %v1475 = vld [vmem:[#allocation7 + $0xc8] sm:$0xff]
    %v1476 = vld [vmem:[#allocation7 + $0xd0] sm:$0xff]
    %v1477 = vld [vmem:[#allocation7 + $0xd8] sm:$0xff]
    %v1478 = vld [vmem:[#allocation7 + $0xe0] sm:$0xff]
    %v1479 = vld [vmem:[#allocation7 + $0xe8] sm:$0xff]
    %v1480 = vld [vmem:[#allocation7 + $0xf0] sm:$0xff]
    %v1481 = vld [vmem:[#allocation7 + $0xf8] sm:$0xff]
    %v1482 = vld [vmem:[#allocation7 + $0x100] sm:$0xff]
    %v1483 = vld [vmem:[#allocation7 + $0x108] sm:$0xff]
    %v1484 = vld [vmem:[#allocation7 + $0x110] sm:$0xff]
    %v1485 = vld [vmem:[#allocation7 + $0x118] sm:$0xff]
    %v1486 = vld [vmem:[#allocation7 + $0x120] sm:$0xff]
    %v1487 = vld [vmem:[#allocation7 + $0x128] sm:$0xff]
    %v1488 = vld [vmem:[#allocation7 + $0x130] sm:$0xff]
    %v1489 = vld [vmem:[#allocation7 + $0x138] sm:$0xff]
    %v1490 = vld [vmem:[#allocation7 + $0x140] sm:$0xff]
    %v1491 = vld [vmem:[#allocation7 + $0x148] sm:$0xff]
    %v1492 = vld [vmem:[#allocation7 + $0x150] sm:$0xff]
    %v1493 = vld [vmem:[#allocation7 + $0x158] sm:$0xff]
    %v1494 = vld [vmem:[#allocation7 + $0x160] sm:$0xff]
    %v1495 = vld [vmem:[#allocation7 + $0x168] sm:$0xff]
    %v1496 = vld [vmem:[#allocation7 + $0x170] sm:$0xff]
    %v1497 = vld [vmem:[#allocation7 + $0x178] sm:$0xff]
    %v1498 = vld [vmem:[#allocation7 + $0x180] sm:$0xff]
    %v1499 = vld [vmem:[#allocation7 + $0x188] sm:$0xff]
    %v1500 = vld [vmem:[#allocation7 + $0x190] sm:$0xff]
    %v1501 = vld [vmem:[#allocation7 + $0x198] sm:$0xff]
    %v1502 = vld [vmem:[#allocation7 + $0x1a0] sm:$0xff]
    %v1503 = vld [vmem:[#allocation7 + $0x1a8] sm:$0xff]
    %v1504 = vld [vmem:[#allocation7 + $0x1b0] sm:$0xff]
    %v1505 = vld [vmem:[#allocation7 + $0x1b8] sm:$0xff]
    %v1506 = vld [vmem:[#allocation7 + $0x1c0] sm:$0xff]
    %v1507 = vld [vmem:[#allocation7 + $0x1c8] sm:$0xff]
    %v1508 = vld [vmem:[#allocation7 + $0x1d0] sm:$0xff]
    %v1509 = vld [vmem:[#allocation7 + $0x1d8] sm:$0xff]
    %v1510 = vld [vmem:[#allocation7 + $0x1e0] sm:$0xff]
    %v1511 = vld [vmem:[#allocation7 + $0x1e8] sm:$0xff]
    %v1512 = vld [vmem:[#allocation7 + $0x1f0] sm:$0xff]
    %v1513 = vld [vmem:[#allocation7 + $0x1f8] sm:$0xff]
    %v1514 = vld [vmem:[#allocation7 + $0x200] sm:$0xff]
    %v1515 = vld [vmem:[#allocation7 + $0x208] sm:$0xff]
    %v1516 = vld [vmem:[#allocation7 + $0x210] sm:$0xff]
    %v1517 = vld [vmem:[#allocation7 + $0x218] sm:$0xff]
    %v1518 = vld [vmem:[#allocation7 + $0x220] sm:$0xff]
    %v1519 = vld [vmem:[#allocation7 + $0x228] sm:$0xff]
    %v1520 = vld [vmem:[#allocation7 + $0x230] sm:$0xff]
    %v1521 = vld [vmem:[#allocation7 + $0x238] sm:$0xff]
    %v1522 = vld [vmem:[#allocation7 + $0x240] sm:$0xff]
    %v1523 = vld [vmem:[#allocation7 + $0x248] sm:$0xff]
    %v1524 = vld [vmem:[#allocation7 + $0x250] sm:$0xff]
    %v1525 = vld [vmem:[#allocation7 + $0x258] sm:$0xff]
    %v1526 = vld [vmem:[#allocation7 + $0x260] sm:$0xff]
    %v1527 = vld [vmem:[#allocation7 + $0x268] sm:$0xff]
    %v1528 = vld [vmem:[#allocation7 + $0x270] sm:$0xff]
    %v1529 = vld [vmem:[#allocation7 + $0x278] sm:$0xff]
    %v1530 = vld [vmem:[#allocation7 + $0x280] sm:$0xff]
    %v1531 = vld [vmem:[#allocation7 + $0x288] sm:$0xff]
    %v1532 = vld [vmem:[#allocation7 + $0x290] sm:$0xff]
    %v1533 = vld [vmem:[#allocation7 + $0x298] sm:$0xff]
    %v1534 = vld [vmem:[#allocation7 + $0x2a0] sm:$0xff]
    %v1535 = vld [vmem:[#allocation7 + $0x2a8] sm:$0xff]
    %v1536 = vld [vmem:[#allocation7 + $0x2b0] sm:$0xff]
    %v1537 = vld [vmem:[#allocation7 + $0x2b8] sm:$0xff]
    %v1538 = vld [vmem:[#allocation7 + $0x2c0] sm:$0xff]
    %v1539 = vld [vmem:[#allocation7 + $0x2c8] sm:$0xff]
    %v1540 = vld [vmem:[#allocation7 + $0x2d0] sm:$0xff]
    %v1541 = vld [vmem:[#allocation7 + $0x2d8] sm:$0xff]
    %v1542 = vld [vmem:[#allocation7 + $0x2e0] sm:$0xff]
    %v1543 = vld [vmem:[#allocation7 + $0x2e8] sm:$0xff]
    %v1544 = vld [vmem:[#allocation7 + $0x2f0] sm:$0xff]
    %v1545 = vld [vmem:[#allocation7 + $0x2f8] sm:$0xff]
    %v1546 = vld [vmem:[#allocation7 + $0x300] sm:$0xff]
    %v1547 = vld [vmem:[#allocation7 + $0x308] sm:$0xff]
    %v1548 = vld [vmem:[#allocation7 + $0x310] sm:$0xff]
    %v1549 = vld [vmem:[#allocation7 + $0x318] sm:$0xff]
    %v1550 = vld [vmem:[#allocation7 + $0x320] sm:$0xff]
    %v1551 = vld [vmem:[#allocation7 + $0x328] sm:$0xff]
    %v1552 = vld [vmem:[#allocation7 + $0x330] sm:$0xff]
    %v1553 = vld [vmem:[#allocation7 + $0x338] sm:$0xff]
    %v1554 = vld [vmem:[#allocation7 + $0x340] sm:$0xff]
    %v1555 = vld [vmem:[#allocation7 + $0x348] sm:$0xff]
    %v1556 = vld [vmem:[#allocation7 + $0x350] sm:$0xff]
    %v1557 = vld [vmem:[#allocation7 + $0x358] sm:$0xff]
    %v1558 = vld [vmem:[#allocation7 + $0x360] sm:$0xff]
    %v1559 = vld [vmem:[#allocation7 + $0x368] sm:$0xff]
    %v1560 = vld [vmem:[#allocation7 + $0x370] sm:$0xff]
    %v1561 = vld [vmem:[#allocation7 + $0x378] sm:$0xff]
    %v1562 = vld [vmem:[#allocation7 + $0x380] sm:$0xff]
    %v1563 = vld [vmem:[#allocation7 + $0x388] sm:$0xff]
    %v1564 = vld [vmem:[#allocation7 + $0x390] sm:$0xff]
    %v1565 = vld [vmem:[#allocation7 + $0x398] sm:$0xff]
    %v1566 = vld [vmem:[#allocation7 + $0x3a0] sm:$0xff]
    %v1567 = vld [vmem:[#allocation7 + $0x3a8] sm:$0xff]
    %v1568 = vld [vmem:[#allocation7 + $0x3b0] sm:$0xff]
    %v1569 = vld [vmem:[#allocation7 + $0x3b8] sm:$0xff]
    %v1570 = vld [vmem:[#allocation7 + $0x3c0] sm:$0xff]
    %v1571 = vld [vmem:[#allocation7 + $0x3c8] sm:$0xff]
    %v1572 = vld [vmem:[#allocation7 + $0x3d0] sm:$0xff]
    %v1573 = vld [vmem:[#allocation7 + $0x3d8] sm:$0xff]
    %v1574 = vld [vmem:[#allocation7 + $0x3e0] sm:$0xff]
    %v1575 = vld [vmem:[#allocation7 + $0x3e8] sm:$0xff]
    %v1576 = vld [vmem:[#allocation7 + $0x3f0] sm:$0xff]
    %v1577 = vld [vmem:[#allocation7 + $0x3f8] sm:$0xff]
    %v1578 = vlaneseq
    %v1579 = vshrl.u32 %v1578, 7
    %v1580 = vsub.s32 2, %v1579
    %v1581 = vrot.slane %v185, %v1580
    %v1582 = vlaneseq
    %v1583 = vshrl.u32 %v1582, 7
    %v1584 = vsub.s32 6, %v1583
    %v1585 = vrot.slane %v185, %v1584
    %v1586 = vlaneseq
    %v1587 = vshrl.u32 %v1586, 7
    %v1588 = vsub.s32 2, %v1587
    %v1589 = vrot.slane %v186, %v1588
    %v1590 = vlaneseq
    %v1591 = vshrl.u32 %v1590, 7
    %v1592 = vsub.s32 6, %v1591
    %v1593 = vrot.slane %v186, %v1592
    %v1598 = vlaneseq
    %v1599 = vshrl.u32 %v1598, 7
    %v1600 = vsub.s32 2, %v1599
    %v1601 = vrot.slane %v1581, %v1600
    %v1602 = vlaneseq
    %v1603 = vshrl.u32 %v1602, 7
    %v1604 = vsub.s32 2, %v1603
    %v1605 = vrot.slane %v1585, %v1604
    %v1606 = vlaneseq
    %v1607 = vshrl.u32 %v1606, 7
    %v1608 = vsub.s32 2, %v1607
    %v1609 = vrot.slane %v1589, %v1608
    %v1610 = vlaneseq
    %v1611 = vshrl.u32 %v1610, 7
    %v1612 = vsub.s32 2, %v1611
    %v1613 = vrot.slane %v1593, %v1612
    %v1742 = vunpack.c.l.b16 %v1450
    %v1743 = vunpack.c.h.b16 %v1450
    %v1744 = vunpack.c.l.b16 %v1451
    %v1745 = vunpack.c.h.b16 %v1451
    %v1746 = vunpack.c.l.b16 %v1452
    %v1747 = vunpack.c.h.b16 %v1452
    %v1748 = vunpack.c.l.b16 %v1453
    %v1749 = vunpack.c.h.b16 %v1453
    %v1750 = vunpack.c.l.b16 %v1454
    %v1751 = vunpack.c.h.b16 %v1454
    %v1752 = vunpack.c.l.b16 %v1455
    %v1753 = vunpack.c.h.b16 %v1455
    %v1754 = vunpack.c.l.b16 %v1456
    %v1755 = vunpack.c.h.b16 %v1456
    %v1756 = vunpack.c.l.b16 %v1457
    %v1757 = vunpack.c.h.b16 %v1457
    %v1758 = vunpack.c.l.b16 %v1458
    %v1759 = vunpack.c.h.b16 %v1458
    %v1760 = vunpack.c.l.b16 %v1459
    %v1761 = vunpack.c.h.b16 %v1459
    %v1762 = vunpack.c.l.b16 %v1460
    %v1763 = vunpack.c.h.b16 %v1460
    %v1764 = vunpack.c.l.b16 %v1461
    %v1765 = vunpack.c.h.b16 %v1461
    %v1766 = vunpack.c.l.b16 %v1462
    %v1767 = vunpack.c.h.b16 %v1462
    %v1768 = vunpack.c.l.b16 %v1463
    %v1769 = vunpack.c.h.b16 %v1463
    %v1770 = vunpack.c.l.b16 %v1464
    %v1771 = vunpack.c.h.b16 %v1464
    %v1772 = vunpack.c.l.b16 %v1465
    %v1773 = vunpack.c.h.b16 %v1465
    %v1774 = vunpack.c.l.b16 %v1466
    %v1775 = vunpack.c.h.b16 %v1466
    %v1776 = vunpack.c.l.b16 %v1467
    %v1777 = vunpack.c.h.b16 %v1467
    %v1778 = vunpack.c.l.b16 %v1468
    %v1779 = vunpack.c.h.b16 %v1468
    %v1780 = vunpack.c.l.b16 %v1469
    %v1781 = vunpack.c.h.b16 %v1469
    %v1782 = vunpack.c.l.b16 %v1470
    %v1783 = vunpack.c.h.b16 %v1470
    %v1784 = vunpack.c.l.b16 %v1471
    %v1785 = vunpack.c.h.b16 %v1471
    %v1786 = vunpack.c.l.b16 %v1472
    %v1787 = vunpack.c.h.b16 %v1472
    %v1788 = vunpack.c.l.b16 %v1473
    %v1789 = vunpack.c.h.b16 %v1473
    %v1790 = vunpack.c.l.b16 %v1474
    %v1791 = vunpack.c.h.b16 %v1474
    %v1792 = vunpack.c.l.b16 %v1475
    %v1793 = vunpack.c.h.b16 %v1475
    %v1794 = vunpack.c.l.b16 %v1476
    %v1795 = vunpack.c.h.b16 %v1476
    %v1796 = vunpack.c.l.b16 %v1477
    %v1797 = vunpack.c.h.b16 %v1477
    %v1798 = vunpack.c.l.b16 %v1478
    %v1799 = vunpack.c.h.b16 %v1478
    %v1800 = vunpack.c.l.b16 %v1479
    %v1801 = vunpack.c.h.b16 %v1479
    %v1802 = vunpack.c.l.b16 %v1480
    %v1803 = vunpack.c.h.b16 %v1480
    %v1804 = vunpack.c.l.b16 %v1481
    %v1805 = vunpack.c.h.b16 %v1481
    %v1806 = vunpack.c.l.b16 %v1482
    %v1807 = vunpack.c.h.b16 %v1482
    %v1808 = vunpack.c.l.b16 %v1483
    %v1809 = vunpack.c.h.b16 %v1483
    %v1810 = vunpack.c.l.b16 %v1484
    %v1811 = vunpack.c.h.b16 %v1484
    %v1812 = vunpack.c.l.b16 %v1485
    %v1813 = vunpack.c.h.b16 %v1485
    %v1814 = vunpack.c.l.b16 %v1486
    %v1815 = vunpack.c.h.b16 %v1486
    %v1816 = vunpack.c.l.b16 %v1487
    %v1817 = vunpack.c.h.b16 %v1487
    %v1818 = vunpack.c.l.b16 %v1488
    %v1819 = vunpack.c.h.b16 %v1488
    %v1820 = vunpack.c.l.b16 %v1489
    %v1821 = vunpack.c.h.b16 %v1489
    %v1822 = vunpack.c.l.b16 %v1490
    %v1823 = vunpack.c.h.b16 %v1490
    %v1824 = vunpack.c.l.b16 %v1491
    %v1825 = vunpack.c.h.b16 %v1491
    %v1826 = vunpack.c.l.b16 %v1492
    %v1827 = vunpack.c.h.b16 %v1492
    %v1828 = vunpack.c.l.b16 %v1493
    %v1829 = vunpack.c.h.b16 %v1493
    %v1830 = vunpack.c.l.b16 %v1494
    %v1831 = vunpack.c.h.b16 %v1494
    %v1832 = vunpack.c.l.b16 %v1495
    %v1833 = vunpack.c.h.b16 %v1495
    %v1834 = vunpack.c.l.b16 %v1496
    %v1835 = vunpack.c.h.b16 %v1496
    %v1836 = vunpack.c.l.b16 %v1497
    %v1837 = vunpack.c.h.b16 %v1497
    %v1838 = vunpack.c.l.b16 %v1498
    %v1839 = vunpack.c.h.b16 %v1498
    %v1840 = vunpack.c.l.b16 %v1499
    %v1841 = vunpack.c.h.b16 %v1499
    %v1842 = vunpack.c.l.b16 %v1500
    %v1843 = vunpack.c.h.b16 %v1500
    %v1844 = vunpack.c.l.b16 %v1501
    %v1845 = vunpack.c.h.b16 %v1501
    %v1846 = vunpack.c.l.b16 %v1502
    %v1847 = vunpack.c.h.b16 %v1502
    %v1848 = vunpack.c.l.b16 %v1503
    %v1849 = vunpack.c.h.b16 %v1503
    %v1850 = vunpack.c.l.b16 %v1504
    %v1851 = vunpack.c.h.b16 %v1504
    %v1852 = vunpack.c.l.b16 %v1505
    %v1853 = vunpack.c.h.b16 %v1505
    %v1854 = vunpack.c.l.b16 %v1506
    %v1855 = vunpack.c.h.b16 %v1506
    %v1856 = vunpack.c.l.b16 %v1507
    %v1857 = vunpack.c.h.b16 %v1507
    %v1858 = vunpack.c.l.b16 %v1508
    %v1859 = vunpack.c.h.b16 %v1508
    %v1860 = vunpack.c.l.b16 %v1509
    %v1861 = vunpack.c.h.b16 %v1509
    %v1862 = vunpack.c.l.b16 %v1510
    %v1863 = vunpack.c.h.b16 %v1510
    %v1864 = vunpack.c.l.b16 %v1511
    %v1865 = vunpack.c.h.b16 %v1511
    %v1866 = vunpack.c.l.b16 %v1512
    %v1867 = vunpack.c.h.b16 %v1512
    %v1868 = vunpack.c.l.b16 %v1513
    %v1869 = vunpack.c.h.b16 %v1513
    %v1870 = vunpack.c.l.b16 %v1514
    %v1871 = vunpack.c.h.b16 %v1514
    %v1872 = vunpack.c.l.b16 %v1515
    %v1873 = vunpack.c.h.b16 %v1515
    %v1874 = vunpack.c.l.b16 %v1516
    %v1875 = vunpack.c.h.b16 %v1516
    %v1876 = vunpack.c.l.b16 %v1517
    %v1877 = vunpack.c.h.b16 %v1517
    %v1878 = vunpack.c.l.b16 %v1518
    %v1879 = vunpack.c.h.b16 %v1518
    %v1880 = vunpack.c.l.b16 %v1519
    %v1881 = vunpack.c.h.b16 %v1519
    %v1882 = vunpack.c.l.b16 %v1520
    %v1883 = vunpack.c.h.b16 %v1520
    %v1884 = vunpack.c.l.b16 %v1521
    %v1885 = vunpack.c.h.b16 %v1521
    %v1886 = vunpack.c.l.b16 %v1522
    %v1887 = vunpack.c.h.b16 %v1522
    %v1888 = vunpack.c.l.b16 %v1523
    %v1889 = vunpack.c.h.b16 %v1523
    %v1890 = vunpack.c.l.b16 %v1524
    %v1891 = vunpack.c.h.b16 %v1524
    %v1892 = vunpack.c.l.b16 %v1525
    %v1893 = vunpack.c.h.b16 %v1525
    %v1894 = vunpack.c.l.b16 %v1526
    %v1895 = vunpack.c.h.b16 %v1526
    %v1896 = vunpack.c.l.b16 %v1527
    %v1897 = vunpack.c.h.b16 %v1527
    %v1898 = vunpack.c.l.b16 %v1528
    %v1899 = vunpack.c.h.b16 %v1528
    %v1900 = vunpack.c.l.b16 %v1529
    %v1901 = vunpack.c.h.b16 %v1529
    %v1902 = vunpack.c.l.b16 %v1530
    %v1903 = vunpack.c.h.b16 %v1530
    %v1904 = vunpack.c.l.b16 %v1531
    %v1905 = vunpack.c.h.b16 %v1531
    %v1906 = vunpack.c.l.b16 %v1532
    %v1907 = vunpack.c.h.b16 %v1532
    %v1908 = vunpack.c.l.b16 %v1533
    %v1909 = vunpack.c.h.b16 %v1533
    %v1910 = vunpack.c.l.b16 %v1534
    %v1911 = vunpack.c.h.b16 %v1534
    %v1912 = vunpack.c.l.b16 %v1535
    %v1913 = vunpack.c.h.b16 %v1535
    %v1914 = vunpack.c.l.b16 %v1536
    %v1915 = vunpack.c.h.b16 %v1536
    %v1916 = vunpack.c.l.b16 %v1537
    %v1917 = vunpack.c.h.b16 %v1537
    %v1918 = vunpack.c.l.b16 %v1538
    %v1919 = vunpack.c.h.b16 %v1538
    %v1920 = vunpack.c.l.b16 %v1539
    %v1921 = vunpack.c.h.b16 %v1539
    %v1922 = vunpack.c.l.b16 %v1540
    %v1923 = vunpack.c.h.b16 %v1540
    %v1924 = vunpack.c.l.b16 %v1541
    %v1925 = vunpack.c.h.b16 %v1541
    %v1926 = vunpack.c.l.b16 %v1542
    %v1927 = vunpack.c.h.b16 %v1542
    %v1928 = vunpack.c.l.b16 %v1543
    %v1929 = vunpack.c.h.b16 %v1543
    %v1930 = vunpack.c.l.b16 %v1544
    %v1931 = vunpack.c.h.b16 %v1544
    %v1932 = vunpack.c.l.b16 %v1545
    %v1933 = vunpack.c.h.b16 %v1545
    %v1934 = vunpack.c.l.b16 %v1546
    %v1935 = vunpack.c.h.b16 %v1546
    %v1936 = vunpack.c.l.b16 %v1547
    %v1937 = vunpack.c.h.b16 %v1547
    %v1938 = vunpack.c.l.b16 %v1548
    %v1939 = vunpack.c.h.b16 %v1548
    %v1940 = vunpack.c.l.b16 %v1549
    %v1941 = vunpack.c.h.b16 %v1549
    %v1942 = vunpack.c.l.b16 %v1550
    %v1943 = vunpack.c.h.b16 %v1550
    %v1944 = vunpack.c.l.b16 %v1551
    %v1945 = vunpack.c.h.b16 %v1551
    %v1946 = vunpack.c.l.b16 %v1552
    %v1947 = vunpack.c.h.b16 %v1552
    %v1948 = vunpack.c.l.b16 %v1553
    %v1949 = vunpack.c.h.b16 %v1553
    %v1950 = vunpack.c.l.b16 %v1554
    %v1951 = vunpack.c.h.b16 %v1554
    %v1952 = vunpack.c.l.b16 %v1555
    %v1953 = vunpack.c.h.b16 %v1555
    %v1954 = vunpack.c.l.b16 %v1556
    %v1955 = vunpack.c.h.b16 %v1556
    %v1956 = vunpack.c.l.b16 %v1557
    %v1957 = vunpack.c.h.b16 %v1557
    %v1958 = vunpack.c.l.b16 %v1558
    %v1959 = vunpack.c.h.b16 %v1558
    %v1960 = vunpack.c.l.b16 %v1559
    %v1961 = vunpack.c.h.b16 %v1559
    %v1962 = vunpack.c.l.b16 %v1560
    %v1963 = vunpack.c.h.b16 %v1560
    %v1964 = vunpack.c.l.b16 %v1561
    %v1965 = vunpack.c.h.b16 %v1561
    %v1966 = vunpack.c.l.b16 %v1562
    %v1967 = vunpack.c.h.b16 %v1562
    %v1968 = vunpack.c.l.b16 %v1563
    %v1969 = vunpack.c.h.b16 %v1563
    %v1970 = vunpack.c.l.b16 %v1564
    %v1971 = vunpack.c.h.b16 %v1564
    %v1972 = vunpack.c.l.b16 %v1565
    %v1973 = vunpack.c.h.b16 %v1565
    %v1974 = vunpack.c.l.b16 %v1566
    %v1975 = vunpack.c.h.b16 %v1566
    %v1976 = vunpack.c.l.b16 %v1567
    %v1977 = vunpack.c.h.b16 %v1567
    %v1978 = vunpack.c.l.b16 %v1568
    %v1979 = vunpack.c.h.b16 %v1568
    %v1980 = vunpack.c.l.b16 %v1569
    %v1981 = vunpack.c.h.b16 %v1569
    %v1982 = vunpack.c.l.b16 %v1570
    %v1983 = vunpack.c.h.b16 %v1570
    %v1984 = vunpack.c.l.b16 %v1571
    %v1985 = vunpack.c.h.b16 %v1571
    %v1986 = vunpack.c.l.b16 %v1572
    %v1987 = vunpack.c.h.b16 %v1572
    %v1988 = vunpack.c.l.b16 %v1573
    %v1989 = vunpack.c.h.b16 %v1573
    %v1990 = vunpack.c.l.b16 %v1574
    %v1991 = vunpack.c.h.b16 %v1574
    %v1992 = vunpack.c.l.b16 %v1575
    %v1993 = vunpack.c.h.b16 %v1575
    %v1994 = vunpack.c.l.b16 %v1576
    %v1995 = vunpack.c.h.b16 %v1576
    %v1996 = vunpack.c.l.b16 %v1577
    %v1997 = vunpack.c.h.b16 %v1577
    %v1998 = vpack.c.b16 %v1746, %v1742
    %v1999 = vpack.c.b16 %v1747, %v1743
    %v2000 = vpack.c.b16 %v1748, %v1744
    %v2001 = vpack.c.b16 %v1749, %v1745
    %v2002 = vpack.c.b16 %v1754, %v1750
    %v2003 = vpack.c.b16 %v1755, %v1751
    %v2004 = vpack.c.b16 %v1756, %v1752
    %v2005 = vpack.c.b16 %v1757, %v1753
    %v2006 = vpack.c.b16 %v1762, %v1758
    %v2007 = vpack.c.b16 %v1763, %v1759
    %v2008 = vpack.c.b16 %v1764, %v1760
    %v2009 = vpack.c.b16 %v1765, %v1761
    %v2010 = vpack.c.b16 %v1770, %v1766
    %v2011 = vpack.c.b16 %v1771, %v1767
    %v2012 = vpack.c.b16 %v1772, %v1768
    %v2013 = vpack.c.b16 %v1773, %v1769
    %v2014 = vpack.c.b16 %v1778, %v1774
    %v2015 = vpack.c.b16 %v1779, %v1775
    %v2016 = vpack.c.b16 %v1780, %v1776
    %v2017 = vpack.c.b16 %v1781, %v1777
    %v2018 = vpack.c.b16 %v1786, %v1782
    %v2019 = vpack.c.b16 %v1787, %v1783
    %v2020 = vpack.c.b16 %v1788, %v1784
    %v2021 = vpack.c.b16 %v1789, %v1785
    %v2022 = vpack.c.b16 %v1794, %v1790
    %v2023 = vpack.c.b16 %v1795, %v1791
    %v2024 = vpack.c.b16 %v1796, %v1792
    %v2025 = vpack.c.b16 %v1797, %v1793
    %v2026 = vpack.c.b16 %v1802, %v1798
    %v2027 = vpack.c.b16 %v1803, %v1799
    %v2028 = vpack.c.b16 %v1804, %v1800
    %v2029 = vpack.c.b16 %v1805, %v1801
    %v2030 = vpack.c.b16 %v1810, %v1806
    %v2031 = vpack.c.b16 %v1811, %v1807
    %v2032 = vpack.c.b16 %v1812, %v1808
    %v2033 = vpack.c.b16 %v1813, %v1809
    %v2034 = vpack.c.b16 %v1818, %v1814
    %v2035 = vpack.c.b16 %v1819, %v1815
    %v2036 = vpack.c.b16 %v1820, %v1816
    %v2037 = vpack.c.b16 %v1821, %v1817
    %v2038 = vpack.c.b16 %v1826, %v1822
    %v2039 = vpack.c.b16 %v1827, %v1823
    %v2040 = vpack.c.b16 %v1828, %v1824
    %v2041 = vpack.c.b16 %v1829, %v1825
    %v2042 = vpack.c.b16 %v1834, %v1830
    %v2043 = vpack.c.b16 %v1835, %v1831
    %v2044 = vpack.c.b16 %v1836, %v1832
    %v2045 = vpack.c.b16 %v1837, %v1833
    %v2046 = vpack.c.b16 %v1842, %v1838
    %v2047 = vpack.c.b16 %v1843, %v1839
    %v2048 = vpack.c.b16 %v1844, %v1840
    %v2049 = vpack.c.b16 %v1845, %v1841
    %v2050 = vpack.c.b16 %v1850, %v1846
    %v2051 = vpack.c.b16 %v1851, %v1847
    %v2052 = vpack.c.b16 %v1852, %v1848
    %v2053 = vpack.c.b16 %v1853, %v1849
    %v2054 = vpack.c.b16 %v1858, %v1854
    %v2055 = vpack.c.b16 %v1859, %v1855
    %v2056 = vpack.c.b16 %v1860, %v1856
    %v2057 = vpack.c.b16 %v1861, %v1857
    %v2058 = vpack.c.b16 %v1866, %v1862
    %v2059 = vpack.c.b16 %v1867, %v1863
    %v2060 = vpack.c.b16 %v1868, %v1864
    %v2061 = vpack.c.b16 %v1869, %v1865
    %v2062 = vpack.c.b16 %v1874, %v1870
    %v2063 = vpack.c.b16 %v1875, %v1871
    %v2064 = vpack.c.b16 %v1876, %v1872
    %v2065 = vpack.c.b16 %v1877, %v1873
    %v2066 = vpack.c.b16 %v1882, %v1878
    %v2067 = vpack.c.b16 %v1883, %v1879
    %v2068 = vpack.c.b16 %v1884, %v1880
    %v2069 = vpack.c.b16 %v1885, %v1881
    %v2070 = vpack.c.b16 %v1890, %v1886
    %v2071 = vpack.c.b16 %v1891, %v1887
    %v2072 = vpack.c.b16 %v1892, %v1888
    %v2073 = vpack.c.b16 %v1893, %v1889
    %v2074 = vpack.c.b16 %v1898, %v1894
    %v2075 = vpack.c.b16 %v1899, %v1895
    %v2076 = vpack.c.b16 %v1900, %v1896
    %v2077 = vpack.c.b16 %v1901, %v1897
    %v2078 = vpack.c.b16 %v1906, %v1902
    %v2079 = vpack.c.b16 %v1907, %v1903
    %v2080 = vpack.c.b16 %v1908, %v1904
    %v2081 = vpack.c.b16 %v1909, %v1905
    %v2082 = vpack.c.b16 %v1914, %v1910
    %v2083 = vpack.c.b16 %v1915, %v1911
    %v2084 = vpack.c.b16 %v1916, %v1912
    %v2085 = vpack.c.b16 %v1917, %v1913
    %v2086 = vpack.c.b16 %v1922, %v1918
    %v2087 = vpack.c.b16 %v1923, %v1919
    %v2088 = vpack.c.b16 %v1924, %v1920
    %v2089 = vpack.c.b16 %v1925, %v1921
    %v2090 = vpack.c.b16 %v1930, %v1926
    %v2091 = vpack.c.b16 %v1931, %v1927
    %v2092 = vpack.c.b16 %v1932, %v1928
    %v2093 = vpack.c.b16 %v1933, %v1929
    %v2094 = vpack.c.b16 %v1938, %v1934
    %v2095 = vpack.c.b16 %v1939, %v1935
    %v2096 = vpack.c.b16 %v1940, %v1936
    %v2097 = vpack.c.b16 %v1941, %v1937
    %v2098 = vpack.c.b16 %v1946, %v1942
    %v2099 = vpack.c.b16 %v1947, %v1943
    %v2100 = vpack.c.b16 %v1948, %v1944
    %v2101 = vpack.c.b16 %v1949, %v1945
    %v2102 = vpack.c.b16 %v1954, %v1950
    %v2103 = vpack.c.b16 %v1955, %v1951
    %v2104 = vpack.c.b16 %v1956, %v1952
    %v2105 = vpack.c.b16 %v1957, %v1953
    %v2106 = vpack.c.b16 %v1962, %v1958
    %v2107 = vpack.c.b16 %v1963, %v1959
    %v2108 = vpack.c.b16 %v1964, %v1960
    %v2109 = vpack.c.b16 %v1965, %v1961
    %v2110 = vpack.c.b16 %v1970, %v1966
    %v2111 = vpack.c.b16 %v1971, %v1967
    %v2112 = vpack.c.b16 %v1972, %v1968
    %v2113 = vpack.c.b16 %v1973, %v1969
    %v2114 = vpack.c.b16 %v1978, %v1974
    %v2115 = vpack.c.b16 %v1979, %v1975
    %v2116 = vpack.c.b16 %v1980, %v1976
    %v2117 = vpack.c.b16 %v1981, %v1977
    %v2118 = vpack.c.b16 %v1986, %v1982
    %v2119 = vpack.c.b16 %v1987, %v1983
    %v2120 = vpack.c.b16 %v1988, %v1984
    %v2121 = vpack.c.b16 %v1989, %v1985
    %v2122 = vpack.c.b16 %v1994, %v1990
    %v2123 = vpack.c.b16 %v1995, %v1991
    %v2124 = vpack.c.b16 %v1996, %v1992
    %v2125 = vpack.c.b16 %v1997, %v1993
    %2254 = vmatprep.subr.bf16.mxu0 %v1999
    %2255 = vmatpush1.bf16.msra.mxu0 %v1998
    %2256 = vmatprep.subr.bf16.mxu0 %v2003
    %2257 = vmatpush1.bf16.msra.mxu0 %v2002
    %2258 = vmatprep.subr.bf16.mxu0 %v2007
    %2259 = vmatpush1.bf16.msra.mxu0 %v2006
    %2260 = vmatprep.subr.bf16.mxu0 %v2011
    %2261 = vmatpush1.bf16.msra.mxu0 %v2010
    %2262 = vmatprep.subr.bf16.mxu0 %v2015
    %2263 = vmatpush1.bf16.msra.mxu0 %v2014
    %2264 = vmatprep.subr.bf16.mxu0 %v2019
    %2265 = vmatpush1.bf16.msra.mxu0 %v2018
    %2266 = vmatprep.subr.bf16.mxu0 %v2023
    %2267 = vmatpush1.bf16.msra.mxu0 %v2022
    %2268 = vmatprep.subr.bf16.mxu0 %v2027
    %2269 = vmatpush1.bf16.msra.mxu0 %v2026
    %2270 = vmatprep.subr.bf16.mxu0 %v2031
    %2271 = vmatpush1.bf16.msra.mxu0 %v2030
    %2272 = vmatprep.subr.bf16.mxu0 %v2035
    %2273 = vmatpush1.bf16.msra.mxu0 %v2034
    %2274 = vmatprep.subr.bf16.mxu0 %v2039
    %2275 = vmatpush1.bf16.msra.mxu0 %v2038
    %2276 = vmatprep.subr.bf16.mxu0 %v2043
    %2277 = vmatpush1.bf16.msra.mxu0 %v2042
    %2278 = vmatprep.subr.bf16.mxu0 %v2047
    %2279 = vmatpush1.bf16.msra.mxu0 %v2046
    %2280 = vmatprep.subr.bf16.mxu0 %v2051
    %2281 = vmatpush1.bf16.msra.mxu0 %v2050
    %2282 = vmatprep.subr.bf16.mxu0 %v2055
    %2283 = vmatpush1.bf16.msra.mxu0 %v2054
    %2284 = vmatprep.subr.bf16.mxu0 %v2059
    %2285 = vmatpush1.bf16.msra.mxu0 %v2058
    %2286 = vmatprep.mubr.bf16.mxu0 %v1447
    %2287 = vmatmul.mubr.bf16.gmra.mrb[0].mxu0 %v1446
    %v2288 = vpop.f32.mrb[0].mxu0
    %v2289 = vadd.f32 %v1601, %v2288
    %v2290 = vpop.f32.mrb[0].mxu0
    %v2291 = vadd.f32 %v1605, %v2290
    %v2292 = vpop.f32.mrb[0].mxu0
    %v2293 = vadd.f32 %v1601, %v2292
    %v2294 = vpop.f32.mrb[0].mxu0
    %v2295 = vadd.f32 %v1605, %v2294
    %2296 = vdwg.mxu0
    %2297 = vmatprep.subr.bf16.mxu0 %v2063
    %2298 = vmatpush1.bf16.msra.mxu0 %v2062
    %2299 = vmatprep.subr.bf16.mxu0 %v2067
    %2300 = vmatpush1.bf16.msra.mxu0 %v2066
    %2301 = vmatprep.subr.bf16.mxu0 %v2071
    %2302 = vmatpush1.bf16.msra.mxu0 %v2070
    %2303 = vmatprep.subr.bf16.mxu0 %v2075
    %2304 = vmatpush1.bf16.msra.mxu0 %v2074
    %2305 = vmatprep.subr.bf16.mxu0 %v2079
    %2306 = vmatpush1.bf16.msra.mxu0 %v2078
    %2307 = vmatprep.subr.bf16.mxu0 %v2083
    %2308 = vmatpush1.bf16.msra.mxu0 %v2082
    %2309 = vmatprep.subr.bf16.mxu0 %v2087
    %2310 = vmatpush1.bf16.msra.mxu0 %v2086
    %2311 = vmatprep.subr.bf16.mxu0 %v2091
    %2312 = vmatpush1.bf16.msra.mxu0 %v2090
    %2313 = vmatprep.subr.bf16.mxu0 %v2095
    %2314 = vmatpush1.bf16.msra.mxu0 %v2094
    %2315 = vmatprep.subr.bf16.mxu0 %v2099
    %2316 = vmatpush1.bf16.msra.mxu0 %v2098
    %2317 = vmatprep.subr.bf16.mxu0 %v2103
    %2318 = vmatpush1.bf16.msra.mxu0 %v2102
    %2319 = vmatprep.subr.bf16.mxu0 %v2107
    %2320 = vmatpush1.bf16.msra.mxu0 %v2106
    %2321 = vmatprep.subr.bf16.mxu0 %v2111
    %2322 = vmatpush1.bf16.msra.mxu0 %v2110
    %2323 = vmatprep.subr.bf16.mxu0 %v2115
    %2324 = vmatpush1.bf16.msra.mxu0 %v2114
    %2325 = vmatprep.subr.bf16.mxu0 %v2119
    %2326 = vmatpush1.bf16.msra.mxu0 %v2118
    %2327 = vmatprep.subr.bf16.mxu0 %v2123
    %2328 = vmatpush1.bf16.msra.mxu0 %v2122
    %2329 = vmatprep.mubr.bf16.mxu0 %v1449
    %2330 = vmatmul.mubr.bf16.gmra.mrb[0].mxu0 %v1448
    %v2331 = vpop.f32.mrb[0].mxu0
    %v2332 = vadd.f32 %v2289, %v2331
    %v2333 = vpop.f32.mrb[0].mxu0
    %v2334 = vadd.f32 %v2291, %v2333
    %v2335 = vpop.f32.mrb[0].mxu0
    %v2336 = vadd.f32 %v2293, %v2335
    %v2337 = vpop.f32.mrb[0].mxu0
    %v2338 = vadd.f32 %v2295, %v2337
    %2339 = vdwg.mxu0
    %2340 = vmatprep.subr.bf16.mxu0 %v2001
    %2341 = vmatpush1.bf16.msra.mxu0 %v2000
    %2342 = vmatprep.subr.bf16.mxu0 %v2005
    %2343 = vmatpush1.bf16.msra.mxu0 %v2004
    %2344 = vmatprep.subr.bf16.mxu0 %v2009
    %2345 = vmatpush1.bf16.msra.mxu0 %v2008
    %2346 = vmatprep.subr.bf16.mxu0 %v2013
    %2347 = vmatpush1.bf16.msra.mxu0 %v2012
    %2348 = vmatprep.subr.bf16.mxu0 %v2017
    %2349 = vmatpush1.bf16.msra.mxu0 %v2016
    %2350 = vmatprep.subr.bf16.mxu0 %v2021
    %2351 = vmatpush1.bf16.msra.mxu0 %v2020
    %2352 = vmatprep.subr.bf16.mxu0 %v2025
    %2353 = vmatpush1.bf16.msra.mxu0 %v2024
    %2354 = vmatprep.subr.bf16.mxu0 %v2029
    %2355 = vmatpush1.bf16.msra.mxu0 %v2028
    %2356 = vmatprep.subr.bf16.mxu0 %v2033
    %2357 = vmatpush1.bf16.msra.mxu0 %v2032
    %2358 = vmatprep.subr.bf16.mxu0 %v2037
    %2359 = vmatpush1.bf16.msra.mxu0 %v2036
    %2360 = vmatprep.subr.bf16.mxu0 %v2041
    %2361 = vmatpush1.bf16.msra.mxu0 %v2040
    %2362 = vmatprep.subr.bf16.mxu0 %v2045
    %2363 = vmatpush1.bf16.msra.mxu0 %v2044
    %2364 = vmatprep.subr.bf16.mxu0 %v2049
    %2365 = vmatpush1.bf16.msra.mxu0 %v2048
    %2366 = vmatprep.subr.bf16.mxu0 %v2053
    %2367 = vmatpush1.bf16.msra.mxu0 %v2052
    %2368 = vmatprep.subr.bf16.mxu0 %v2057
    %2369 = vmatpush1.bf16.msra.mxu0 %v2056
    %2370 = vmatprep.subr.bf16.mxu0 %v2061
    %2371 = vmatpush1.bf16.msra.mxu0 %v2060
    %2372 = vmatprep.mubr.bf16.mxu0 %v1447
    %2373 = vmatmul.mubr.bf16.gmra.mrb[0].mxu0 %v1446
    %v2374 = vpop.f32.mrb[0].mxu0
    %v2375 = vadd.f32 %v1609, %v2374
    %v2376 = vpop.f32.mrb[0].mxu0
    %v2377 = vadd.f32 %v1613, %v2376
    %v2378 = vpop.f32.mrb[0].mxu0
    %v2379 = vadd.f32 %v1609, %v2378
    %v2380 = vpop.f32.mrb[0].mxu0
    %v2381 = vadd.f32 %v1613, %v2380
    %2382 = vdwg.mxu0
    %2383 = vmatprep.subr.bf16.mxu0 %v2065
    %2384 = vmatpush1.bf16.msra.mxu0 %v2064
    %2385 = vmatprep.subr.bf16.mxu0 %v2069
    %2386 = vmatpush1.bf16.msra.mxu0 %v2068
    %2387 = vmatprep.subr.bf16.mxu0 %v2073
    %2388 = vmatpush1.bf16.msra.mxu0 %v2072
    %2389 = vmatprep.subr.bf16.mxu0 %v2077
    %2390 = vmatpush1.bf16.msra.mxu0 %v2076
    %2391 = vmatprep.subr.bf16.mxu0 %v2081
    %2392 = vmatpush1.bf16.msra.mxu0 %v2080
    %2393 = vmatprep.subr.bf16.mxu0 %v2085
    %2394 = vmatpush1.bf16.msra.mxu0 %v2084
    %2395 = vmatprep.subr.bf16.mxu0 %v2089
    %2396 = vmatpush1.bf16.msra.mxu0 %v2088
    %2397 = vmatprep.subr.bf16.mxu0 %v2093
    %2398 = vmatpush1.bf16.msra.mxu0 %v2092
    %2399 = vmatprep.subr.bf16.mxu0 %v2097
    %2400 = vmatpush1.bf16.msra.mxu0 %v2096
    %2401 = vmatprep.subr.bf16.mxu0 %v2101
    %2402 = vmatpush1.bf16.msra.mxu0 %v2100
    %2403 = vmatprep.subr.bf16.mxu0 %v2105
    %2404 = vmatpush1.bf16.msra.mxu0 %v2104
    %2405 = vmatprep.subr.bf16.mxu0 %v2109
    %2406 = vmatpush1.bf16.msra.mxu0 %v2108
    %2407 = vmatprep.subr.bf16.mxu0 %v2113
    %2408 = vmatpush1.bf16.msra.mxu0 %v2112
    %2409 = vmatprep.subr.bf16.mxu0 %v2117
    %2410 = vmatpush1.bf16.msra.mxu0 %v2116
    %2411 = vmatprep.subr.bf16.mxu0 %v2121
    %2412 = vmatpush1.bf16.msra.mxu0 %v2120
    %2413 = vmatprep.subr.bf16.mxu0 %v2125
    %2414 = vmatpush1.bf16.msra.mxu0 %v2124
    %2415 = vmatprep.mubr.bf16.mxu0 %v1449
    %2416 = vmatmul.mubr.bf16.gmra.mrb[0].mxu0 %v1448
    %v2417 = vpop.f32.mrb[0].mxu0
    %v2418 = vadd.f32 %v2375, %v2417
    %v2419 = vpop.f32.mrb[0].mxu0
    %v2420 = vadd.f32 %v2377, %v2419
    %v2421 = vpop.f32.mrb[0].mxu0
    %v2422 = vadd.f32 %v2379, %v2421
    %v2423 = vpop.f32.mrb[0].mxu0
    %v2424 = vadd.f32 %v2381, %v2423
    %2425 = vdwg.mxu0
    %vm2426 = vcmp.gt.f32.partialorder %v2332, 0.0
    %vm2427 = vcmp.gt.f32.partialorder %v2334, 0.0
    %vm2428 = vcmp.gt.f32.partialorder %v2418, 0.0
    %vm2429 = vcmp.gt.f32.partialorder %v2420, 0.0
    %vm2430 = vcmp.gt.f32.partialorder %v2336, 0.0
    %vm2431 = vcmp.gt.f32.partialorder %v2338, 0.0
    %vm2432 = vcmp.gt.f32.partialorder %v2422, 0.0
    %vm2433 = vcmp.gt.f32.partialorder %v2424, 0.0
    %v2434 = vmul.f32 %v2332, 0.01
    %v2435 = vmul.f32 %v2334, 0.01
    %v2436 = vmul.f32 %v2418, 0.01
    %v2437 = vmul.f32 %v2420, 0.01
    %v2438 = vmul.f32 %v2336, 0.01
    %v2439 = vmul.f32 %v2338, 0.01
    %v2440 = vmul.f32 %v2422, 0.01
    %v2441 = vmul.f32 %v2424, 0.01
    %v2442 = vsel %vm2426, %v2332, %v2434
    %v2443 = vsel %vm2427, %v2334, %v2435
    %v2444 = vsel %vm2428, %v2418, %v2436
    %v2445 = vsel %vm2429, %v2420, %v2437
    %v2446 = vsel %vm2430, %v2336, %v2438
    %v2447 = vsel %vm2431, %v2338, %v2439
    %v2448 = vsel %vm2432, %v2422, %v2440
    %v2449 = vsel %vm2433, %v2424, %v2441
    %v2450 = vpack.c.bf16 %v2446, %v2442
    %v2451 = vpack.c.bf16 %v2447, %v2443
    %v2452 = vpack.c.bf16 %v2448, %v2444
    %v2453 = vpack.c.bf16 %v2449, %v2445
    %v2454 = vld [vmem:[#allocation8] sm:$0xff]
    %v2455 = vld [vmem:[#allocation8 + $0x8] sm:$0xff]
    %v2456 = vld [vmem:[#allocation8 + $0x10] sm:$0xff]
    %v2457 = vld [vmem:[#allocation8 + $0x18] sm:$0xff]
    %v2458 = vld [vmem:[#allocation8 + $0x20] sm:$0xff]
    %v2459 = vld [vmem:[#allocation8 + $0x28] sm:$0xff]
    %v2460 = vld [vmem:[#allocation8 + $0x30] sm:$0xff]
    %v2461 = vld [vmem:[#allocation8 + $0x38] sm:$0xff]
    %v2462 = vld [vmem:[#allocation8 + $0x40] sm:$0xff]
    %v2463 = vld [vmem:[#allocation8 + $0x48] sm:$0xff]
    %v2464 = vld [vmem:[#allocation8 + $0x50] sm:$0xff]
    %v2465 = vld [vmem:[#allocation8 + $0x58] sm:$0xff]
    %v2466 = vld [vmem:[#allocation8 + $0x60] sm:$0xff]
    %v2467 = vld [vmem:[#allocation8 + $0x68] sm:$0xff]
    %v2468 = vld [vmem:[#allocation8 + $0x70] sm:$0xff]
    %v2469 = vld [vmem:[#allocation8 + $0x78] sm:$0xff]
    %v2470 = vld [vmem:[#allocation8 + $0x80] sm:$0xff]
    %v2471 = vld [vmem:[#allocation8 + $0x88] sm:$0xff]
    %v2472 = vld [vmem:[#allocation8 + $0x90] sm:$0xff]
    %v2473 = vld [vmem:[#allocation8 + $0x98] sm:$0xff]
    %v2474 = vld [vmem:[#allocation8 + $0xa0] sm:$0xff]
    %v2475 = vld [vmem:[#allocation8 + $0xa8] sm:$0xff]
    %v2476 = vld [vmem:[#allocation8 + $0xb0] sm:$0xff]
    %v2477 = vld [vmem:[#allocation8 + $0xb8] sm:$0xff]
    %v2478 = vld [vmem:[#allocation8 + $0xc0] sm:$0xff]
    %v2479 = vld [vmem:[#allocation8 + $0xc8] sm:$0xff]
    %v2480 = vld [vmem:[#allocation8 + $0xd0] sm:$0xff]
    %v2481 = vld [vmem:[#allocation8 + $0xd8] sm:$0xff]
    %v2482 = vld [vmem:[#allocation8 + $0xe0] sm:$0xff]
    %v2483 = vld [vmem:[#allocation8 + $0xe8] sm:$0xff]
    %v2484 = vld [vmem:[#allocation8 + $0xf0] sm:$0xff]
    %v2485 = vld [vmem:[#allocation8 + $0xf8] sm:$0xff]
    %v2486 = vld [vmem:[#allocation8 + $0x100] sm:$0xff]
    %v2487 = vld [vmem:[#allocation8 + $0x108] sm:$0xff]
    %v2488 = vld [vmem:[#allocation8 + $0x110] sm:$0xff]
    %v2489 = vld [vmem:[#allocation8 + $0x118] sm:$0xff]
    %v2490 = vld [vmem:[#allocation8 + $0x120] sm:$0xff]
    %v2491 = vld [vmem:[#allocation8 + $0x128] sm:$0xff]
    %v2492 = vld [vmem:[#allocation8 + $0x130] sm:$0xff]
    %v2493 = vld [vmem:[#allocation8 + $0x138] sm:$0xff]
    %v2494 = vld [vmem:[#allocation8 + $0x140] sm:$0xff]
    %v2495 = vld [vmem:[#allocation8 + $0x148] sm:$0xff]
    %v2496 = vld [vmem:[#allocation8 + $0x150] sm:$0xff]
    %v2497 = vld [vmem:[#allocation8 + $0x158] sm:$0xff]
    %v2498 = vld [vmem:[#allocation8 + $0x160] sm:$0xff]
    %v2499 = vld [vmem:[#allocation8 + $0x168] sm:$0xff]
    %v2500 = vld [vmem:[#allocation8 + $0x170] sm:$0xff]
    %v2501 = vld [vmem:[#allocation8 + $0x178] sm:$0xff]
    %v2502 = vld [vmem:[#allocation8 + $0x180] sm:$0xff]
    %v2503 = vld [vmem:[#allocation8 + $0x188] sm:$0xff]
    %v2504 = vld [vmem:[#allocation8 + $0x190] sm:$0xff]
    %v2505 = vld [vmem:[#allocation8 + $0x198] sm:$0xff]
    %v2506 = vld [vmem:[#allocation8 + $0x1a0] sm:$0xff]
    %v2507 = vld [vmem:[#allocation8 + $0x1a8] sm:$0xff]
    %v2508 = vld [vmem:[#allocation8 + $0x1b0] sm:$0xff]
    %v2509 = vld [vmem:[#allocation8 + $0x1b8] sm:$0xff]
    %v2510 = vld [vmem:[#allocation8 + $0x1c0] sm:$0xff]
    %v2511 = vld [vmem:[#allocation8 + $0x1c8] sm:$0xff]
    %v2512 = vld [vmem:[#allocation8 + $0x1d0] sm:$0xff]
    %v2513 = vld [vmem:[#allocation8 + $0x1d8] sm:$0xff]
    %v2514 = vld [vmem:[#allocation8 + $0x1e0] sm:$0xff]
    %v2515 = vld [vmem:[#allocation8 + $0x1e8] sm:$0xff]
    %v2516 = vld [vmem:[#allocation8 + $0x1f0] sm:$0xff]
    %v2517 = vld [vmem:[#allocation8 + $0x1f8] sm:$0xff]
    %v2518 = vld [vmem:[#allocation8 + $0x200] sm:$0xff]
    %v2519 = vld [vmem:[#allocation8 + $0x208] sm:$0xff]
    %v2520 = vld [vmem:[#allocation8 + $0x210] sm:$0xff]
    %v2521 = vld [vmem:[#allocation8 + $0x218] sm:$0xff]
    %v2522 = vld [vmem:[#allocation8 + $0x220] sm:$0xff]
    %v2523 = vld [vmem:[#allocation8 + $0x228] sm:$0xff]
    %v2524 = vld [vmem:[#allocation8 + $0x230] sm:$0xff]
    %v2525 = vld [vmem:[#allocation8 + $0x238] sm:$0xff]
    %v2526 = vld [vmem:[#allocation8 + $0x240] sm:$0xff]
    %v2527 = vld [vmem:[#allocation8 + $0x248] sm:$0xff]
    %v2528 = vld [vmem:[#allocation8 + $0x250] sm:$0xff]
    %v2529 = vld [vmem:[#allocation8 + $0x258] sm:$0xff]
    %v2530 = vld [vmem:[#allocation8 + $0x260] sm:$0xff]
    %v2531 = vld [vmem:[#allocation8 + $0x268] sm:$0xff]
    %v2532 = vld [vmem:[#allocation8 + $0x270] sm:$0xff]
    %v2533 = vld [vmem:[#allocation8 + $0x278] sm:$0xff]
    %v2534 = vld [vmem:[#allocation8 + $0x280] sm:$0xff]
    %v2535 = vld [vmem:[#allocation8 + $0x288] sm:$0xff]
    %v2536 = vld [vmem:[#allocation8 + $0x290] sm:$0xff]
    %v2537 = vld [vmem:[#allocation8 + $0x298] sm:$0xff]
    %v2538 = vld [vmem:[#allocation8 + $0x2a0] sm:$0xff]
    %v2539 = vld [vmem:[#allocation8 + $0x2a8] sm:$0xff]
    %v2540 = vld [vmem:[#allocation8 + $0x2b0] sm:$0xff]
    %v2541 = vld [vmem:[#allocation8 + $0x2b8] sm:$0xff]
    %v2542 = vld [vmem:[#allocation8 + $0x2c0] sm:$0xff]
    %v2543 = vld [vmem:[#allocation8 + $0x2c8] sm:$0xff]
    %v2544 = vld [vmem:[#allocation8 + $0x2d0] sm:$0xff]
    %v2545 = vld [vmem:[#allocation8 + $0x2d8] sm:$0xff]
    %v2546 = vld [vmem:[#allocation8 + $0x2e0] sm:$0xff]
    %v2547 = vld [vmem:[#allocation8 + $0x2e8] sm:$0xff]
    %v2548 = vld [vmem:[#allocation8 + $0x2f0] sm:$0xff]
    %v2549 = vld [vmem:[#allocation8 + $0x2f8] sm:$0xff]
    %v2550 = vld [vmem:[#allocation8 + $0x300] sm:$0xff]
    %v2551 = vld [vmem:[#allocation8 + $0x308] sm:$0xff]
    %v2552 = vld [vmem:[#allocation8 + $0x310] sm:$0xff]
    %v2553 = vld [vmem:[#allocation8 + $0x318] sm:$0xff]
    %v2554 = vld [vmem:[#allocation8 + $0x320] sm:$0xff]
    %v2555 = vld [vmem:[#allocation8 + $0x328] sm:$0xff]
    %v2556 = vld [vmem:[#allocation8 + $0x330] sm:$0xff]
    %v2557 = vld [vmem:[#allocation8 + $0x338] sm:$0xff]
    %v2558 = vld [vmem:[#allocation8 + $0x340] sm:$0xff]
    %v2559 = vld [vmem:[#allocation8 + $0x348] sm:$0xff]
    %v2560 = vld [vmem:[#allocation8 + $0x350] sm:$0xff]
    %v2561 = vld [vmem:[#allocation8 + $0x358] sm:$0xff]
    %v2562 = vld [vmem:[#allocation8 + $0x360] sm:$0xff]
    %v2563 = vld [vmem:[#allocation8 + $0x368] sm:$0xff]
    %v2564 = vld [vmem:[#allocation8 + $0x370] sm:$0xff]
    %v2565 = vld [vmem:[#allocation8 + $0x378] sm:$0xff]
    %v2566 = vld [vmem:[#allocation8 + $0x380] sm:$0xff]
    %v2567 = vld [vmem:[#allocation8 + $0x388] sm:$0xff]
    %v2568 = vld [vmem:[#allocation8 + $0x390] sm:$0xff]
    %v2569 = vld [vmem:[#allocation8 + $0x398] sm:$0xff]
    %v2570 = vld [vmem:[#allocation8 + $0x3a0] sm:$0xff]
    %v2571 = vld [vmem:[#allocation8 + $0x3a8] sm:$0xff]
    %v2572 = vld [vmem:[#allocation8 + $0x3b0] sm:$0xff]
    %v2573 = vld [vmem:[#allocation8 + $0x3b8] sm:$0xff]
    %v2574 = vld [vmem:[#allocation8 + $0x3c0] sm:$0xff]
    %v2575 = vld [vmem:[#allocation8 + $0x3c8] sm:$0xff]
    %v2576 = vld [vmem:[#allocation8 + $0x3d0] sm:$0xff]
    %v2577 = vld [vmem:[#allocation8 + $0x3d8] sm:$0xff]
    %v2578 = vld [vmem:[#allocation8 + $0x3e0] sm:$0xff]
    %v2579 = vld [vmem:[#allocation8 + $0x3e8] sm:$0xff]
    %v2580 = vld [vmem:[#allocation8 + $0x3f0] sm:$0xff]
    %v2581 = vld [vmem:[#allocation8 + $0x3f8] sm:$0xff]
    %v2582 = vlaneseq
    %v2583 = vshrl.u32 %v2582, 7
    %v2584 = vsub.s32 3, %v2583
    %v2585 = vrot.slane %v185, %v2584
    %v2586 = vlaneseq
    %v2587 = vshrl.u32 %v2586, 7
    %v2588 = vsub.s32 7, %v2587
    %v2589 = vrot.slane %v185, %v2588
    %v2590 = vlaneseq
    %v2591 = vshrl.u32 %v2590, 7
    %v2592 = vsub.s32 3, %v2591
    %v2593 = vrot.slane %v186, %v2592
    %v2594 = vlaneseq
    %v2595 = vshrl.u32 %v2594, 7
    %v2596 = vsub.s32 7, %v2595
    %v2597 = vrot.slane %v186, %v2596
    %v2602 = vlaneseq
    %v2603 = vshrl.u32 %v2602, 7
    %v2604 = vsub.s32 3, %v2603
    %v2605 = vrot.slane %v2585, %v2604
    %v2606 = vlaneseq
    %v2607 = vshrl.u32 %v2606, 7
    %v2608 = vsub.s32 3, %v2607
    %v2609 = vrot.slane %v2589, %v2608
    %v2610 = vlaneseq
    %v2611 = vshrl.u32 %v2610, 7
    %v2612 = vsub.s32 3, %v2611
    %v2613 = vrot.slane %v2593, %v2612
    %v2614 = vlaneseq
    %v2615 = vshrl.u32 %v2614, 7
    %v2616 = vsub.s32 3, %v2615
    %v2617 = vrot.slane %v2597, %v2616
    %v2746 = vunpack.c.l.b16 %v2454
    %v2747 = vunpack.c.h.b16 %v2454
    %v2748 = vunpack.c.l.b16 %v2455
    %v2749 = vunpack.c.h.b16 %v2455
    %v2750 = vunpack.c.l.b16 %v2456
    %v2751 = vunpack.c.h.b16 %v2456
    %v2752 = vunpack.c.l.b16 %v2457
    %v2753 = vunpack.c.h.b16 %v2457
    %v2754 = vunpack.c.l.b16 %v2458
    %v2755 = vunpack.c.h.b16 %v2458
    %v2756 = vunpack.c.l.b16 %v2459
    %v2757 = vunpack.c.h.b16 %v2459
    %v2758 = vunpack.c.l.b16 %v2460
    %v2759 = vunpack.c.h.b16 %v2460
    %v2760 = vunpack.c.l.b16 %v2461
    %v2761 = vunpack.c.h.b16 %v2461
    %v2762 = vunpack.c.l.b16 %v2462
    %v2763 = vunpack.c.h.b16 %v2462
    %v2764 = vunpack.c.l.b16 %v2463
    %v2765 = vunpack.c.h.b16 %v2463
    %v2766 = vunpack.c.l.b16 %v2464
    %v2767 = vunpack.c.h.b16 %v2464
    %v2768 = vunpack.c.l.b16 %v2465
    %v2769 = vunpack.c.h.b16 %v2465
    %v2770 = vunpack.c.l.b16 %v2466
    %v2771 = vunpack.c.h.b16 %v2466
    %v2772 = vunpack.c.l.b16 %v2467
    %v2773 = vunpack.c.h.b16 %v2467
    %v2774 = vunpack.c.l.b16 %v2468
    %v2775 = vunpack.c.h.b16 %v2468
    %v2776 = vunpack.c.l.b16 %v2469
    %v2777 = vunpack.c.h.b16 %v2469
    %v2778 = vunpack.c.l.b16 %v2470
    %v2779 = vunpack.c.h.b16 %v2470
    %v2780 = vunpack.c.l.b16 %v2471
    %v2781 = vunpack.c.h.b16 %v2471
    %v2782 = vunpack.c.l.b16 %v2472
    %v2783 = vunpack.c.h.b16 %v2472
    %v2784 = vunpack.c.l.b16 %v2473
    %v2785 = vunpack.c.h.b16 %v2473
    %v2786 = vunpack.c.l.b16 %v2474
    %v2787 = vunpack.c.h.b16 %v2474
    %v2788 = vunpack.c.l.b16 %v2475
    %v2789 = vunpack.c.h.b16 %v2475
    %v2790 = vunpack.c.l.b16 %v2476
    %v2791 = vunpack.c.h.b16 %v2476
    %v2792 = vunpack.c.l.b16 %v2477
    %v2793 = vunpack.c.h.b16 %v2477
    %v2794 = vunpack.c.l.b16 %v2478
    %v2795 = vunpack.c.h.b16 %v2478
    %v2796 = vunpack.c.l.b16 %v2479
    %v2797 = vunpack.c.h.b16 %v2479
    %v2798 = vunpack.c.l.b16 %v2480
    %v2799 = vunpack.c.h.b16 %v2480
    %v2800 = vunpack.c.l.b16 %v2481
    %v2801 = vunpack.c.h.b16 %v2481
    %v2802 = vunpack.c.l.b16 %v2482
    %v2803 = vunpack.c.h.b16 %v2482
    %v2804 = vunpack.c.l.b16 %v2483
    %v2805 = vunpack.c.h.b16 %v2483
    %v2806 = vunpack.c.l.b16 %v2484
    %v2807 = vunpack.c.h.b16 %v2484
    %v2808 = vunpack.c.l.b16 %v2485
    %v2809 = vunpack.c.h.b16 %v2485
    %v2810 = vunpack.c.l.b16 %v2486
    %v2811 = vunpack.c.h.b16 %v2486
    %v2812 = vunpack.c.l.b16 %v2487
    %v2813 = vunpack.c.h.b16 %v2487
    %v2814 = vunpack.c.l.b16 %v2488
    %v2815 = vunpack.c.h.b16 %v2488
    %v2816 = vunpack.c.l.b16 %v2489
    %v2817 = vunpack.c.h.b16 %v2489
    %v2818 = vunpack.c.l.b16 %v2490
    %v2819 = vunpack.c.h.b16 %v2490
    %v2820 = vunpack.c.l.b16 %v2491
    %v2821 = vunpack.c.h.b16 %v2491
    %v2822 = vunpack.c.l.b16 %v2492
    %v2823 = vunpack.c.h.b16 %v2492
    %v2824 = vunpack.c.l.b16 %v2493
    %v2825 = vunpack.c.h.b16 %v2493
    %v2826 = vunpack.c.l.b16 %v2494
    %v2827 = vunpack.c.h.b16 %v2494
    %v2828 = vunpack.c.l.b16 %v2495
    %v2829 = vunpack.c.h.b16 %v2495
    %v2830 = vunpack.c.l.b16 %v2496
    %v2831 = vunpack.c.h.b16 %v2496
    %v2832 = vunpack.c.l.b16 %v2497
    %v2833 = vunpack.c.h.b16 %v2497
    %v2834 = vunpack.c.l.b16 %v2498
    %v2835 = vunpack.c.h.b16 %v2498
    %v2836 = vunpack.c.l.b16 %v2499
    %v2837 = vunpack.c.h.b16 %v2499
    %v2838 = vunpack.c.l.b16 %v2500
    %v2839 = vunpack.c.h.b16 %v2500
    %v2840 = vunpack.c.l.b16 %v2501
    %v2841 = vunpack.c.h.b16 %v2501
    %v2842 = vunpack.c.l.b16 %v2502
    %v2843 = vunpack.c.h.b16 %v2502
    %v2844 = vunpack.c.l.b16 %v2503
    %v2845 = vunpack.c.h.b16 %v2503
    %v2846 = vunpack.c.l.b16 %v2504
    %v2847 = vunpack.c.h.b16 %v2504
    %v2848 = vunpack.c.l.b16 %v2505
    %v2849 = vunpack.c.h.b16 %v2505
    %v2850 = vunpack.c.l.b16 %v2506
    %v2851 = vunpack.c.h.b16 %v2506
    %v2852 = vunpack.c.l.b16 %v2507
    %v2853 = vunpack.c.h.b16 %v2507
    %v2854 = vunpack.c.l.b16 %v2508
    %v2855 = vunpack.c.h.b16 %v2508
    %v2856 = vunpack.c.l.b16 %v2509
    %v2857 = vunpack.c.h.b16 %v2509
    %v2858 = vunpack.c.l.b16 %v2510
    %v2859 = vunpack.c.h.b16 %v2510
    %v2860 = vunpack.c.l.b16 %v2511
    %v2861 = vunpack.c.h.b16 %v2511
    %v2862 = vunpack.c.l.b16 %v2512
    %v2863 = vunpack.c.h.b16 %v2512
    %v2864 = vunpack.c.l.b16 %v2513
    %v2865 = vunpack.c.h.b16 %v2513
    %v2866 = vunpack.c.l.b16 %v2514
    %v2867 = vunpack.c.h.b16 %v2514
    %v2868 = vunpack.c.l.b16 %v2515
    %v2869 = vunpack.c.h.b16 %v2515
    %v2870 = vunpack.c.l.b16 %v2516
    %v2871 = vunpack.c.h.b16 %v2516
    %v2872 = vunpack.c.l.b16 %v2517
    %v2873 = vunpack.c.h.b16 %v2517
    %v2874 = vunpack.c.l.b16 %v2518
    %v2875 = vunpack.c.h.b16 %v2518
    %v2876 = vunpack.c.l.b16 %v2519
    %v2877 = vunpack.c.h.b16 %v2519
    %v2878 = vunpack.c.l.b16 %v2520
    %v2879 = vunpack.c.h.b16 %v2520
    %v2880 = vunpack.c.l.b16 %v2521
    %v2881 = vunpack.c.h.b16 %v2521
    %v2882 = vunpack.c.l.b16 %v2522
    %v2883 = vunpack.c.h.b16 %v2522
    %v2884 = vunpack.c.l.b16 %v2523
    %v2885 = vunpack.c.h.b16 %v2523
    %v2886 = vunpack.c.l.b16 %v2524
    %v2887 = vunpack.c.h.b16 %v2524
    %v2888 = vunpack.c.l.b16 %v2525
    %v2889 = vunpack.c.h.b16 %v2525
    %v2890 = vunpack.c.l.b16 %v2526
    %v2891 = vunpack.c.h.b16 %v2526
    %v2892 = vunpack.c.l.b16 %v2527
    %v2893 = vunpack.c.h.b16 %v2527
    %v2894 = vunpack.c.l.b16 %v2528
    %v2895 = vunpack.c.h.b16 %v2528
    %v2896 = vunpack.c.l.b16 %v2529
    %v2897 = vunpack.c.h.b16 %v2529
    %v2898 = vunpack.c.l.b16 %v2530
    %v2899 = vunpack.c.h.b16 %v2530
    %v2900 = vunpack.c.l.b16 %v2531
    %v2901 = vunpack.c.h.b16 %v2531
    %v2902 = vunpack.c.l.b16 %v2532
    %v2903 = vunpack.c.h.b16 %v2532
    %v2904 = vunpack.c.l.b16 %v2533
    %v2905 = vunpack.c.h.b16 %v2533
    %v2906 = vunpack.c.l.b16 %v2534
    %v2907 = vunpack.c.h.b16 %v2534
    %v2908 = vunpack.c.l.b16 %v2535
    %v2909 = vunpack.c.h.b16 %v2535
    %v2910 = vunpack.c.l.b16 %v2536
    %v2911 = vunpack.c.h.b16 %v2536
    %v2912 = vunpack.c.l.b16 %v2537
    %v2913 = vunpack.c.h.b16 %v2537
    %v2914 = vunpack.c.l.b16 %v2538
    %v2915 = vunpack.c.h.b16 %v2538
    %v2916 = vunpack.c.l.b16 %v2539
    %v2917 = vunpack.c.h.b16 %v2539
    %v2918 = vunpack.c.l.b16 %v2540
    %v2919 = vunpack.c.h.b16 %v2540
    %v2920 = vunpack.c.l.b16 %v2541
    %v2921 = vunpack.c.h.b16 %v2541
    %v2922 = vunpack.c.l.b16 %v2542
    %v2923 = vunpack.c.h.b16 %v2542
    %v2924 = vunpack.c.l.b16 %v2543
    %v2925 = vunpack.c.h.b16 %v2543
    %v2926 = vunpack.c.l.b16 %v2544
    %v2927 = vunpack.c.h.b16 %v2544
    %v2928 = vunpack.c.l.b16 %v2545
    %v2929 = vunpack.c.h.b16 %v2545
    %v2930 = vunpack.c.l.b16 %v2546
    %v2931 = vunpack.c.h.b16 %v2546
    %v2932 = vunpack.c.l.b16 %v2547
    %v2933 = vunpack.c.h.b16 %v2547
    %v2934 = vunpack.c.l.b16 %v2548
    %v2935 = vunpack.c.h.b16 %v2548
    %v2936 = vunpack.c.l.b16 %v2549
    %v2937 = vunpack.c.h.b16 %v2549
    %v2938 = vunpack.c.l.b16 %v2550
    %v2939 = vunpack.c.h.b16 %v2550
    %v2940 = vunpack.c.l.b16 %v2551
    %v2941 = vunpack.c.h.b16 %v2551
    %v2942 = vunpack.c.l.b16 %v2552
    %v2943 = vunpack.c.h.b16 %v2552
    %v2944 = vunpack.c.l.b16 %v2553
    %v2945 = vunpack.c.h.b16 %v2553
    %v2946 = vunpack.c.l.b16 %v2554
    %v2947 = vunpack.c.h.b16 %v2554
    %v2948 = vunpack.c.l.b16 %v2555
    %v2949 = vunpack.c.h.b16 %v2555
    %v2950 = vunpack.c.l.b16 %v2556
    %v2951 = vunpack.c.h.b16 %v2556
    %v2952 = vunpack.c.l.b16 %v2557
    %v2953 = vunpack.c.h.b16 %v2557
    %v2954 = vunpack.c.l.b16 %v2558
    %v2955 = vunpack.c.h.b16 %v2558
    %v2956 = vunpack.c.l.b16 %v2559
    %v2957 = vunpack.c.h.b16 %v2559
    %v2958 = vunpack.c.l.b16 %v2560
    %v2959 = vunpack.c.h.b16 %v2560
    %v2960 = vunpack.c.l.b16 %v2561
    %v2961 = vunpack.c.h.b16 %v2561
    %v2962 = vunpack.c.l.b16 %v2562
    %v2963 = vunpack.c.h.b16 %v2562
    %v2964 = vunpack.c.l.b16 %v2563
    %v2965 = vunpack.c.h.b16 %v2563
    %v2966 = vunpack.c.l.b16 %v2564
    %v2967 = vunpack.c.h.b16 %v2564
    %v2968 = vunpack.c.l.b16 %v2565
    %v2969 = vunpack.c.h.b16 %v2565
    %v2970 = vunpack.c.l.b16 %v2566
    %v2971 = vunpack.c.h.b16 %v2566
    %v2972 = vunpack.c.l.b16 %v2567
    %v2973 = vunpack.c.h.b16 %v2567
    %v2974 = vunpack.c.l.b16 %v2568
    %v2975 = vunpack.c.h.b16 %v2568
    %v2976 = vunpack.c.l.b16 %v2569
    %v2977 = vunpack.c.h.b16 %v2569
    %v2978 = vunpack.c.l.b16 %v2570
    %v2979 = vunpack.c.h.b16 %v2570
    %v2980 = vunpack.c.l.b16 %v2571
    %v2981 = vunpack.c.h.b16 %v2571
    %v2982 = vunpack.c.l.b16 %v2572
    %v2983 = vunpack.c.h.b16 %v2572
    %v2984 = vunpack.c.l.b16 %v2573
    %v2985 = vunpack.c.h.b16 %v2573
    %v2986 = vunpack.c.l.b16 %v2574
    %v2987 = vunpack.c.h.b16 %v2574
    %v2988 = vunpack.c.l.b16 %v2575
    %v2989 = vunpack.c.h.b16 %v2575
    %v2990 = vunpack.c.l.b16 %v2576
    %v2991 = vunpack.c.h.b16 %v2576
    %v2992 = vunpack.c.l.b16 %v2577
    %v2993 = vunpack.c.h.b16 %v2577
    %v2994 = vunpack.c.l.b16 %v2578
    %v2995 = vunpack.c.h.b16 %v2578
    %v2996 = vunpack.c.l.b16 %v2579
    %v2997 = vunpack.c.h.b16 %v2579
    %v2998 = vunpack.c.l.b16 %v2580
    %v2999 = vunpack.c.h.b16 %v2580
    %v3000 = vunpack.c.l.b16 %v2581
    %v3001 = vunpack.c.h.b16 %v2581
    %v3002 = vpack.c.b16 %v2750, %v2746
    %v3003 = vpack.c.b16 %v2751, %v2747
    %v3004 = vpack.c.b16 %v2752, %v2748
    %v3005 = vpack.c.b16 %v2753, %v2749
    %v3006 = vpack.c.b16 %v2758, %v2754
    %v3007 = vpack.c.b16 %v2759, %v2755
    %v3008 = vpack.c.b16 %v2760, %v2756
    %v3009 = vpack.c.b16 %v2761, %v2757
    %v3010 = vpack.c.b16 %v2766, %v2762
    %v3011 = vpack.c.b16 %v2767, %v2763
    %v3012 = vpack.c.b16 %v2768, %v2764
    %v3013 = vpack.c.b16 %v2769, %v2765
    %v3014 = vpack.c.b16 %v2774, %v2770
    %v3015 = vpack.c.b16 %v2775, %v2771
    %v3016 = vpack.c.b16 %v2776, %v2772
    %v3017 = vpack.c.b16 %v2777, %v2773
    %v3018 = vpack.c.b16 %v2782, %v2778
    %v3019 = vpack.c.b16 %v2783, %v2779
    %v3020 = vpack.c.b16 %v2784, %v2780
    %v3021 = vpack.c.b16 %v2785, %v2781
    %v3022 = vpack.c.b16 %v2790, %v2786
    %v3023 = vpack.c.b16 %v2791, %v2787
    %v3024 = vpack.c.b16 %v2792, %v2788
    %v3025 = vpack.c.b16 %v2793, %v2789
    %v3026 = vpack.c.b16 %v2798, %v2794
    %v3027 = vpack.c.b16 %v2799, %v2795
    %v3028 = vpack.c.b16 %v2800, %v2796
    %v3029 = vpack.c.b16 %v2801, %v2797
    %v3030 = vpack.c.b16 %v2806, %v2802
    %v3031 = vpack.c.b16 %v2807, %v2803
    %v3032 = vpack.c.b16 %v2808, %v2804
    %v3033 = vpack.c.b16 %v2809, %v2805
    %v3034 = vpack.c.b16 %v2814, %v2810
    %v3035 = vpack.c.b16 %v2815, %v2811
    %v3036 = vpack.c.b16 %v2816, %v2812
    %v3037 = vpack.c.b16 %v2817, %v2813
    %v3038 = vpack.c.b16 %v2822, %v2818
    %v3039 = vpack.c.b16 %v2823, %v2819
    %v3040 = vpack.c.b16 %v2824, %v2820
    %v3041 = vpack.c.b16 %v2825, %v2821
    %v3042 = vpack.c.b16 %v2830, %v2826
    %v3043 = vpack.c.b16 %v2831, %v2827
    %v3044 = vpack.c.b16 %v2832, %v2828
    %v3045 = vpack.c.b16 %v2833, %v2829
    %v3046 = vpack.c.b16 %v2838, %v2834
    %v3047 = vpack.c.b16 %v2839, %v2835
    %v3048 = vpack.c.b16 %v2840, %v2836
    %v3049 = vpack.c.b16 %v2841, %v2837
    %v3050 = vpack.c.b16 %v2846, %v2842
    %v3051 = vpack.c.b16 %v2847, %v2843
    %v3052 = vpack.c.b16 %v2848, %v2844
    %v3053 = vpack.c.b16 %v2849, %v2845
    %v3054 = vpack.c.b16 %v2854, %v2850
    %v3055 = vpack.c.b16 %v2855, %v2851
    %v3056 = vpack.c.b16 %v2856, %v2852
    %v3057 = vpack.c.b16 %v2857, %v2853
    %v3058 = vpack.c.b16 %v2862, %v2858
    %v3059 = vpack.c.b16 %v2863, %v2859
    %v3060 = vpack.c.b16 %v2864, %v2860
    %v3061 = vpack.c.b16 %v2865, %v2861
    %v3062 = vpack.c.b16 %v2870, %v2866
    %v3063 = vpack.c.b16 %v2871, %v2867
    %v3064 = vpack.c.b16 %v2872, %v2868
    %v3065 = vpack.c.b16 %v2873, %v2869
    %v3066 = vpack.c.b16 %v2878, %v2874
    %v3067 = vpack.c.b16 %v2879, %v2875
    %v3068 = vpack.c.b16 %v2880, %v2876
    %v3069 = vpack.c.b16 %v2881, %v2877
    %v3070 = vpack.c.b16 %v2886, %v2882
    %v3071 = vpack.c.b16 %v2887, %v2883
    %v3072 = vpack.c.b16 %v2888, %v2884
    %v3073 = vpack.c.b16 %v2889, %v2885
    %v3074 = vpack.c.b16 %v2894, %v2890
    %v3075 = vpack.c.b16 %v2895, %v2891
    %v3076 = vpack.c.b16 %v2896, %v2892
    %v3077 = vpack.c.b16 %v2897, %v2893
    %v3078 = vpack.c.b16 %v2902, %v2898
    %v3079 = vpack.c.b16 %v2903, %v2899
    %v3080 = vpack.c.b16 %v2904, %v2900
    %v3081 = vpack.c.b16 %v2905, %v2901
    %v3082 = vpack.c.b16 %v2910, %v2906
    %v3083 = vpack.c.b16 %v2911, %v2907
    %v3084 = vpack.c.b16 %v2912, %v2908
    %v3085 = vpack.c.b16 %v2913, %v2909
    %v3086 = vpack.c.b16 %v2918, %v2914
    %v3087 = vpack.c.b16 %v2919, %v2915
    %v3088 = vpack.c.b16 %v2920, %v2916
    %v3089 = vpack.c.b16 %v2921, %v2917
    %v3090 = vpack.c.b16 %v2926, %v2922
    %v3091 = vpack.c.b16 %v2927, %v2923
    %v3092 = vpack.c.b16 %v2928, %v2924
    %v3093 = vpack.c.b16 %v2929, %v2925
    %v3094 = vpack.c.b16 %v2934, %v2930
    %v3095 = vpack.c.b16 %v2935, %v2931
    %v3096 = vpack.c.b16 %v2936, %v2932
    %v3097 = vpack.c.b16 %v2937, %v2933
    %v3098 = vpack.c.b16 %v2942, %v2938
    %v3099 = vpack.c.b16 %v2943, %v2939
    %v3100 = vpack.c.b16 %v2944, %v2940
    %v3101 = vpack.c.b16 %v2945, %v2941
    %v3102 = vpack.c.b16 %v2950, %v2946
    %v3103 = vpack.c.b16 %v2951, %v2947
    %v3104 = vpack.c.b16 %v2952, %v2948
    %v3105 = vpack.c.b16 %v2953, %v2949
    %v3106 = vpack.c.b16 %v2958, %v2954
    %v3107 = vpack.c.b16 %v2959, %v2955
    %v3108 = vpack.c.b16 %v2960, %v2956
    %v3109 = vpack.c.b16 %v2961, %v2957
    %v3110 = vpack.c.b16 %v2966, %v2962
    %v3111 = vpack.c.b16 %v2967, %v2963
    %v3112 = vpack.c.b16 %v2968, %v2964
    %v3113 = vpack.c.b16 %v2969, %v2965
    %v3114 = vpack.c.b16 %v2974, %v2970
    %v3115 = vpack.c.b16 %v2975, %v2971
    %v3116 = vpack.c.b16 %v2976, %v2972
    %v3117 = vpack.c.b16 %v2977, %v2973
    %v3118 = vpack.c.b16 %v2982, %v2978
    %v3119 = vpack.c.b16 %v2983, %v2979
    %v3120 = vpack.c.b16 %v2984, %v2980
    %v3121 = vpack.c.b16 %v2985, %v2981
    %v3122 = vpack.c.b16 %v2990, %v2986
    %v3123 = vpack.c.b16 %v2991, %v2987
    %v3124 = vpack.c.b16 %v2992, %v2988
    %v3125 = vpack.c.b16 %v2993, %v2989
    %v3126 = vpack.c.b16 %v2998, %v2994
    %v3127 = vpack.c.b16 %v2999, %v2995
    %v3128 = vpack.c.b16 %v3000, %v2996
    %v3129 = vpack.c.b16 %v3001, %v2997
    %3258 = vmatprep.subr.bf16.mxu0 %v3003
    %3259 = vmatpush1.bf16.msra.mxu0 %v3002
    %3260 = vmatprep.subr.bf16.mxu0 %v3007
    %3261 = vmatpush1.bf16.msra.mxu0 %v3006
    %3262 = vmatprep.subr.bf16.mxu0 %v3011
    %3263 = vmatpush1.bf16.msra.mxu0 %v3010
    %3264 = vmatprep.subr.bf16.mxu0 %v3015
    %3265 = vmatpush1.bf16.msra.mxu0 %v3014
    %3266 = vmatprep.subr.bf16.mxu0 %v3019
    %3267 = vmatpush1.bf16.msra.mxu0 %v3018
    %3268 = vmatprep.subr.bf16.mxu0 %v3023
    %3269 = vmatpush1.bf16.msra.mxu0 %v3022
    %3270 = vmatprep.subr.bf16.mxu0 %v3027
    %3271 = vmatpush1.bf16.msra.mxu0 %v3026
    %3272 = vmatprep.subr.bf16.mxu0 %v3031
    %3273 = vmatpush1.bf16.msra.mxu0 %v3030
    %3274 = vmatprep.subr.bf16.mxu0 %v3035
    %3275 = vmatpush1.bf16.msra.mxu0 %v3034
    %3276 = vmatprep.subr.bf16.mxu0 %v3039
    %3277 = vmatpush1.bf16.msra.mxu0 %v3038
    %3278 = vmatprep.subr.bf16.mxu0 %v3043
    %3279 = vmatpush1.bf16.msra.mxu0 %v3042
    %3280 = vmatprep.subr.bf16.mxu0 %v3047
    %3281 = vmatpush1.bf16.msra.mxu0 %v3046
    %3282 = vmatprep.subr.bf16.mxu0 %v3051
    %3283 = vmatpush1.bf16.msra.mxu0 %v3050
    %3284 = vmatprep.subr.bf16.mxu0 %v3055
    %3285 = vmatpush1.bf16.msra.mxu0 %v3054
    %3286 = vmatprep.subr.bf16.mxu0 %v3059
    %3287 = vmatpush1.bf16.msra.mxu0 %v3058
    %3288 = vmatprep.subr.bf16.mxu0 %v3063
    %3289 = vmatpush1.bf16.msra.mxu0 %v3062
    %3290 = vmatprep.mubr.bf16.mxu0 %v2451
    %3291 = vmatmul.mubr.bf16.gmra.mrb[0].mxu0 %v2450
    %v3292 = vpop.f32.mrb[0].mxu0
    %v3293 = vadd.f32 %v2605, %v3292
    %v3294 = vpop.f32.mrb[0].mxu0
    %v3295 = vadd.f32 %v2609, %v3294
    %v3296 = vpop.f32.mrb[0].mxu0
    %v3297 = vadd.f32 %v2605, %v3296
    %v3298 = vpop.f32.mrb[0].mxu0
    %v3299 = vadd.f32 %v2609, %v3298
    %3300 = vdwg.mxu0
    %3301 = vmatprep.subr.bf16.mxu0 %v3067
    %3302 = vmatpush1.bf16.msra.mxu0 %v3066
    %3303 = vmatprep.subr.bf16.mxu0 %v3071
    %3304 = vmatpush1.bf16.msra.mxu0 %v3070
    %3305 = vmatprep.subr.bf16.mxu0 %v3075
    %3306 = vmatpush1.bf16.msra.mxu0 %v3074
    %3307 = vmatprep.subr.bf16.mxu0 %v3079
    %3308 = vmatpush1.bf16.msra.mxu0 %v3078
    %3309 = vmatprep.subr.bf16.mxu0 %v3083
    %3310 = vmatpush1.bf16.msra.mxu0 %v3082
    %3311 = vmatprep.subr.bf16.mxu0 %v3087
    %3312 = vmatpush1.bf16.msra.mxu0 %v3086
    %3313 = vmatprep.subr.bf16.mxu0 %v3091
    %3314 = vmatpush1.bf16.msra.mxu0 %v3090
    %3315 = vmatprep.subr.bf16.mxu0 %v3095
    %3316 = vmatpush1.bf16.msra.mxu0 %v3094
    %3317 = vmatprep.subr.bf16.mxu0 %v3099
    %3318 = vmatpush1.bf16.msra.mxu0 %v3098
    %3319 = vmatprep.subr.bf16.mxu0 %v3103
    %3320 = vmatpush1.bf16.msra.mxu0 %v3102
    %3321 = vmatprep.subr.bf16.mxu0 %v3107
    %3322 = vmatpush1.bf16.msra.mxu0 %v3106
    %3323 = vmatprep.subr.bf16.mxu0 %v3111
    %3324 = vmatpush1.bf16.msra.mxu0 %v3110
    %3325 = vmatprep.subr.bf16.mxu0 %v3115
    %3326 = vmatpush1.bf16.msra.mxu0 %v3114
    %3327 = vmatprep.subr.bf16.mxu0 %v3119
    %3328 = vmatpush1.bf16.msra.mxu0 %v3118
    %3329 = vmatprep.subr.bf16.mxu0 %v3123
    %3330 = vmatpush1.bf16.msra.mxu0 %v3122
    %3331 = vmatprep.subr.bf16.mxu0 %v3127
    %3332 = vmatpush1.bf16.msra.mxu0 %v3126
    %3333 = vmatprep.mubr.bf16.mxu0 %v2453
    %3334 = vmatmul.mubr.bf16.gmra.mrb[0].mxu0 %v2452
    %v3335 = vpop.f32.mrb[0].mxu0
    %v3336 = vadd.f32 %v3293, %v3335
    %v3337 = vpop.f32.mrb[0].mxu0
    %v3338 = vadd.f32 %v3295, %v3337
    %v3339 = vpop.f32.mrb[0].mxu0
    %v3340 = vadd.f32 %v3297, %v3339
    %v3341 = vpop.f32.mrb[0].mxu0
    %v3342 = vadd.f32 %v3299, %v3341
    %3343 = vdwg.mxu0
    %3344 = vmatprep.subr.bf16.mxu0 %v3005
    %3345 = vmatpush1.bf16.msra.mxu0 %v3004
    %3346 = vmatprep.subr.bf16.mxu0 %v3009
    %3347 = vmatpush1.bf16.msra.mxu0 %v3008
    %3348 = vmatprep.subr.bf16.mxu0 %v3013
    %3349 = vmatpush1.bf16.msra.mxu0 %v3012
    %3350 = vmatprep.subr.bf16.mxu0 %v3017
    %3351 = vmatpush1.bf16.msra.mxu0 %v3016
    %3352 = vmatprep.subr.bf16.mxu0 %v3021
    %3353 = vmatpush1.bf16.msra.mxu0 %v3020
    %3354 = vmatprep.subr.bf16.mxu0 %v3025
    %3355 = vmatpush1.bf16.msra.mxu0 %v3024
    %3356 = vmatprep.subr.bf16.mxu0 %v3029
    %3357 = vmatpush1.bf16.msra.mxu0 %v3028
    %3358 = vmatprep.subr.bf16.mxu0 %v3033
    %3359 = vmatpush1.bf16.msra.mxu0 %v3032
    %3360 = vmatprep.subr.bf16.mxu0 %v3037
    %3361 = vmatpush1.bf16.msra.mxu0 %v3036
    %3362 = vmatprep.subr.bf16.mxu0 %v3041
    %3363 = vmatpush1.bf16.msra.mxu0 %v3040
    %3364 = vmatprep.subr.bf16.mxu0 %v3045
    %3365 = vmatpush1.bf16.msra.mxu0 %v3044
    %3366 = vmatprep.subr.bf16.mxu0 %v3049
    %3367 = vmatpush1.bf16.msra.mxu0 %v3048
    %3368 = vmatprep.subr.bf16.mxu0 %v3053
    %3369 = vmatpush1.bf16.msra.mxu0 %v3052
    %3370 = vmatprep.subr.bf16.mxu0 %v3057
    %3371 = vmatpush1.bf16.msra.mxu0 %v3056
    %3372 = vmatprep.subr.bf16.mxu0 %v3061
    %3373 = vmatpush1.bf16.msra.mxu0 %v3060
    %3374 = vmatprep.subr.bf16.mxu0 %v3065
    %3375 = vmatpush1.bf16.msra.mxu0 %v3064
    %3376 = vmatprep.mubr.bf16.mxu0 %v2451
    %3377 = vmatmul.mubr.bf16.gmra.mrb[0].mxu0 %v2450
    %v3378 = vpop.f32.mrb[0].mxu0
    %v3379 = vadd.f32 %v2613, %v3378
    %v3380 = vpop.f32.mrb[0].mxu0
    %v3381 = vadd.f32 %v2617, %v3380
    %v3382 = vpop.f32.mrb[0].mxu0
    %v3383 = vadd.f32 %v2613, %v3382
    %v3384 = vpop.f32.mrb[0].mxu0
    %v3385 = vadd.f32 %v2617, %v3384
    %3386 = vdwg.mxu0
    %3387 = vmatprep.subr.bf16.mxu0 %v3069
    %3388 = vmatpush1.bf16.msra.mxu0 %v3068
    %3389 = vmatprep.subr.bf16.mxu0 %v3073
    %3390 = vmatpush1.bf16.msra.mxu0 %v3072
    %3391 = vmatprep.subr.bf16.mxu0 %v3077
    %3392 = vmatpush1.bf16.msra.mxu0 %v3076
    %3393 = vmatprep.subr.bf16.mxu0 %v3081
    %3394 = vmatpush1.bf16.msra.mxu0 %v3080
    %3395 = vmatprep.subr.bf16.mxu0 %v3085
    %3396 = vmatpush1.bf16.msra.mxu0 %v3084
    %3397 = vmatprep.subr.bf16.mxu0 %v3089
    %3398 = vmatpush1.bf16.msra.mxu0 %v3088
    %3399 = vmatprep.subr.bf16.mxu0 %v3093
    %3400 = vmatpush1.bf16.msra.mxu0 %v3092
    %3401 = vmatprep.subr.bf16.mxu0 %v3097
    %3402 = vmatpush1.bf16.msra.mxu0 %v3096
    %3403 = vmatprep.subr.bf16.mxu0 %v3101
    %3404 = vmatpush1.bf16.msra.mxu0 %v3100
    %3405 = vmatprep.subr.bf16.mxu0 %v3105
    %3406 = vmatpush1.bf16.msra.mxu0 %v3104
    %3407 = vmatprep.subr.bf16.mxu0 %v3109
    %3408 = vmatpush1.bf16.msra.mxu0 %v3108
    %3409 = vmatprep.subr.bf16.mxu0 %v3113
    %3410 = vmatpush1.bf16.msra.mxu0 %v3112
    %3411 = vmatprep.subr.bf16.mxu0 %v3117
    %3412 = vmatpush1.bf16.msra.mxu0 %v3116
    %3413 = vmatprep.subr.bf16.mxu0 %v3121
    %3414 = vmatpush1.bf16.msra.mxu0 %v3120
    %3415 = vmatprep.subr.bf16.mxu0 %v3125
    %3416 = vmatpush1.bf16.msra.mxu0 %v3124
    %3417 = vmatprep.subr.bf16.mxu0 %v3129
    %3418 = vmatpush1.bf16.msra.mxu0 %v3128
    %3419 = vmatprep.mubr.bf16.mxu0 %v2453
    %3420 = vmatmul.mubr.bf16.gmra.mrb[0].mxu0 %v2452
    %v3421 = vpop.f32.mrb[0].mxu0
    %v3422 = vadd.f32 %v3379, %v3421
    %v3423 = vpop.f32.mrb[0].mxu0
    %v3424 = vadd.f32 %v3381, %v3423
    %v3425 = vpop.f32.mrb[0].mxu0
    %v3426 = vadd.f32 %v3383, %v3425
    %v3427 = vpop.f32.mrb[0].mxu0
    %v3428 = vadd.f32 %v3385, %v3427
    %3429 = vdwg.mxu0
    %vm3430 = vcmp.gt.f32.partialorder %v3336, 0.0
    %vm3431 = vcmp.gt.f32.partialorder %v3338, 0.0
    %vm3432 = vcmp.gt.f32.partialorder %v3422, 0.0
    %vm3433 = vcmp.gt.f32.partialorder %v3424, 0.0
    %vm3434 = vcmp.gt.f32.partialorder %v3340, 0.0
    %vm3435 = vcmp.gt.f32.partialorder %v3342, 0.0
    %vm3436 = vcmp.gt.f32.partialorder %v3426, 0.0
    %vm3437 = vcmp.gt.f32.partialorder %v3428, 0.0
    %v3438 = vmul.f32 %v3336, 0.01
    %v3439 = vmul.f32 %v3338, 0.01
    %v3440 = vmul.f32 %v3422, 0.01
    %v3441 = vmul.f32 %v3424, 0.01
    %v3442 = vmul.f32 %v3340, 0.01
    %v3443 = vmul.f32 %v3342, 0.01
    %v3444 = vmul.f32 %v3426, 0.01
    %v3445 = vmul.f32 %v3428, 0.01
    %v3446 = vsel %vm3430, %v3336, %v3438
    %v3447 = vsel %vm3431, %v3338, %v3439
    %v3448 = vsel %vm3432, %v3422, %v3440
    %v3449 = vsel %vm3433, %v3424, %v3441
    %v3450 = vsel %vm3434, %v3340, %v3442
    %v3451 = vsel %vm3435, %v3342, %v3443
    %v3452 = vsel %vm3436, %v3426, %v3444
    %v3453 = vsel %vm3437, %v3428, %v3445
    %v3454 = vld [vmem:[%s7] sm:$0xf]
    %v3456 = vlaneseq
    %v3457 = vshrl.u32 %v3456, 7
    %v3458 = vsub.s32 0, %v3457
    %v3459 = vrot.slane %v3454, %v3458
    %v3460 = vlaneseq
    %v3461 = vshrl.u32 %v3460, 7
    %v3462 = vsub.s32 1, %v3461
    %v3463 = vrot.slane %v3454, %v3462
    %v3464 = vlaneseq
    %v3465 = vshrl.u32 %v3464, 7
    %v3466 = vsub.s32 2, %v3465
    %v3467 = vrot.slane %v3454, %v3466
    %v3468 = vlaneseq
    %v3469 = vshrl.u32 %v3468, 7
    %v3470 = vsub.s32 3, %v3469
    %v3471 = vrot.slane %v3454, %v3470
    %v3476 = vmul.f32 %v3446, %v3459
    %v3477 = vmul.f32 %v3447, %v3463
    %v3478 = vmul.f32 %v3448, %v3467
    %v3479 = vmul.f32 %v3449, %v3471
    %v3480 = vmul.f32 %v3450, %v3459
    %v3481 = vmul.f32 %v3451, %v3463
    %v3482 = vmul.f32 %v3452, %v3467
    %v3483 = vmul.f32 %v3453, %v3471
    %v3484 = vadd.f32 %v3476, %v3477
    %v3485 = vadd.f32 %v3484, %v3478
    %v3486 = vadd.f32 %v3485, %v3479
    %3487 = vadd.xlane.f32.xlu0 %v3486
    %v3488 = vpop.xlane.xlu0 %3487
    %v3489 = vadd.f32 %v3480, %v3481
    %v3490 = vadd.f32 %v3489, %v3482
    %v3491 = vadd.f32 %v3490, %v3483
    %3492 = vadd.xlane.f32.xlu0 %v3491
    %v3493 = vpop.xlane.xlu0 %3492
    %v3494 = vld [vmem:[#allocation2] sm:$0x1]
    %v3496 = vlaneseq
    %v3497 = vshrl.u32 %v3496, 7
    %v3498 = vsub.s32 0, %v3497
    %v3499 = vrot.slane %v3494, %v3498
    %v3501 = vadd.f32 %v3488, %v3499
    %v3502 = vadd.f32 %v3493, %v3499
    %vm3503 = vcmask 7168
    %3504 = vst.msk [vmem:[%s10] sm:$0xff] %vm3503, %v3501
    %3505 = vst.msk [vmem:[%s10 + $0x8] sm:$0xff] %vm3503, %v3502
    // Predicated region
    $region58: #{hyper_network_forward.1} parent=1 // pred_check
      _
    $region59: #{hyper_network_forward.1} parent=1 // pred_check_branch
      %3507 = sbr.rel (0) target = $region61
    $region60: #{hyper_network_forward.1} parent=1 // pred_region
      _
    $region61: #{hyper_network_forward.1} parent=1 // pred_fallthru
      _
    // Predicated region
    $region62: #{hyper_network_forward.1} parent=1 // pred_check
      _
    $region63: #{hyper_network_forward.1} parent=1 // pred_check_branch
      %3509 = sbr.rel (0) target = $region65
    $region64: #{hyper_network_forward.1} parent=1 // pred_region
      _
    $region65: #{hyper_network_forward.1} parent=1 // pred_fallthru
      _
    %3510 = vsyncpa [#allocation4], 1
    %3511 = vsyncpa [#allocation6], 1
    %3512 = vsyncpa [#allocation9], 1

</llo_original>
